<compile_context>
chip_gen: v7x
topology: tpu7x:2x2x1
jax: 0.10.0
libtpu: 0.0.40
codegen_flags: <defaults>
</compile_context>

<pallas_src>
import jax
import jax.numpy as jnp
from jax import lax
from jax.experimental import pallas as pl
from jax.experimental.pallas import tpu as pltpu

# MXU operand dtype. bf16 is native on v5e/v6e/v7x MXUs (f32 accumulation via
# preferred_element_type); gate math and h/c state stay f32.
MXU_DTYPE = jnp.bfloat16

_SUBLANE = 8          # f32 sublane tile == batch-tile rows
_FULL_UNROLL_T = 32   # fully unroll the time loop up to this length


def _round_up(x, m):
    return (x + m - 1) // m * m


# ---------------------------------------------------------------------------
# Fused kernel: all LSTM layers (encoder + decoder) over the full sequence in
# a single Pallas body, one grid step per batch tile of 8 rows.
# Activation row layout inside a tile: row = t * 8 + b_local (time-major).
# Kernel ref layout:
#   [x, (W_ih^T, W_hh^T, bias) * L, out, act_scratch_0..L-2, xp_scratch_0..L-1]
# ---------------------------------------------------------------------------
def _make_autoencoder_kernel(T, Bt, dims, unrolled):
    L = len(dims)

    def kernel(*refs):
        x_ref = refs[0]
        w_refs = refs[1:1 + 3 * L]
        out_ref = refs[1 + 3 * L]
        scratch = refs[2 + 3 * L:]
        act_refs = scratch[:L - 1]   # inter-layer activations (VMEM resident)
        xp_refs = scratch[L - 1:]    # hoisted input projections (VMEM)

        for l in range(L):
            d_in, h_sz = dims[l]
            w_ih_t = w_refs[3 * l][...]      # (d_in, 4H), MXU_DTYPE
            w_hh_t = w_refs[3 * l + 1][...]  # (H,    4H), MXU_DTYPE
            bias = w_refs[3 * l + 2][...]    # (1,    4H), f32

            inp_ref = x_ref if l == 0 else act_refs[l - 1]
            xp_ref = xp_refs[l]
            last = (l == L - 1)
            dst_ref = out_ref if last else act_refs[l]

            # Hoisted input projection: ONE (T*Bt, d_in) x (d_in, 4H) matmul
            # for the whole sequence, materialized into explicit VMEM scratch
            # (bounds the live range of the f32 projection).
            xp_ref[...] = jnp.dot(inp_ref[...].astype(MXU_DTYPE), w_ih_t,
                                  preferred_element_type=jnp.float32) + bias

            def step(t, h, c):
                dyn = not isinstance(t, int)
                row = t * Bt
                if dyn:
                    row = pl.multiple_of(row, _SUBLANE)
                gates = xp_ref[pl.ds(row, Bt), :] + jnp.dot(
                    h.astype(MXU_DTYPE), w_hh_t,
                    preferred_element_type=jnp.float32)
                # Consolidated nonlinearities: one full-width sigmoid pass,
                # one quarter-width tanh for g, one for c.
                sg = jax.nn.sigmoid(gates)                   # (Bt, 4H)
                g_g = jnp.tanh(gates[:, 2 * h_sz:3 * h_sz])  # (Bt, H)
                c = sg[:, h_sz:2 * h_sz] * c + sg[:, 0:h_sz] * g_g
                h = sg[:, 3 * h_sz:4 * h_sz] * jnp.tanh(c)
                if last and unrolled:
                    # Lane-dense output: (Bt, T*H_last), time along lanes.
                    col = t * h_sz
                    dst_ref[:, col:col + h_sz] = h
                else:
                    dst_ref[pl.ds(row, Bt), :] = h
                return h, c

            h = jnp.zeros((Bt, h_sz), jnp.float32)
            c = jnp.zeros((Bt, h_sz), jnp.float32)
            if unrolled:
                for t in range(T):
                    h, c = step(t, h, c)
            else:
                def body(t, carry):
                    return step(t, *carry)
                h, c = lax.fori_loop(0, T, body, (h, c), unroll=4)

    return kernel


# ---------------------------------------------------------------------------
# Wrapper
# ---------------------------------------------------------------------------
def _prep_layer_params(w_ih, w_hh, b_ih, b_hh):
    # Kernel computes x @ W^T, so pre-transpose / pre-cast once (XLA glue).
    w_ih_t = jnp.transpose(w_ih).astype(MXU_DTYPE)   # (D_in, 4H)
    w_hh_t = jnp.transpose(w_hh).astype(MXU_DTYPE)   # (H,    4H)
    bias = (b_ih + b_hh).reshape(1, -1).astype(jnp.float32)
    return w_ih_t, w_hh_t, bias


@jax.jit
def lstm_autoencoder_forward(x, params):
    """x: (B, T, input_size) batch_first (torch layout). Returns (B, T, input_size)."""
    layers = list(params["encoder"]) + list(params["decoder"])
    dims = []
    flat_w = []
    for (w_ih, w_hh, b_ih, b_hh) in layers:
        dims.append((w_ih.shape[1], w_ih.shape[0] // 4))   # (D_in, H)
        flat_w.extend(_prep_layer_params(w_ih, w_hh, b_ih, b_hh))

    B, T, D0 = x.shape
    L = len(dims)
    H_last = dims[-1][1]
    Bt = _SUBLANE
    n_bt = _round_up(max(B, 1), Bt) // Bt
    PB = n_bt * Bt
    unrolled = T <= _FULL_UNROLL_T

    # batch_first -> per-tile time-major rows (row = t*8 + b_local), padded batch.
    x_pad = jnp.pad(x.astype(jnp.float32), ((0, PB - B), (0, 0), (0, 0)))
    xa = (x_pad.reshape(n_bt, Bt, T, D0)
               .transpose(0, 2, 1, 3)
               .reshape(n_bt, T * Bt, D0))

    kernel = _make_autoencoder_kernel(T, Bt, tuple(dims), unrolled)

    # Scratch: L-1 inter-layer activation slabs + L hoisted-projection slabs.
    act_scratch = [pltpu.VMEM((T * Bt, dims[l][1]), jnp.float32) for l in range(L - 1)]
    xp_scratch = [pltpu.VMEM((T * Bt, 4 * dims[l][1]), jnp.float32) for l in range(L)]

    in_specs = [pl.BlockSpec((None, T * Bt, D0), lambda i: (i, 0, 0))]
    for w in flat_w:
        in_specs.append(pl.BlockSpec(w.shape, lambda i: (0, 0)))

    if unrolled:
        out_shape = jax.ShapeDtypeStruct((n_bt, Bt, T * H_last), jnp.float32)
        out_specs = pl.BlockSpec((None, Bt, T * H_last), lambda i: (i, 0, 0))
    else:
        out_shape = jax.ShapeDtypeStruct((n_bt, T * Bt, H_last), jnp.float32)
        out_specs = pl.BlockSpec((None, T * Bt, H_last), lambda i: (i, 0, 0))

    # Explicit VMEM budget from the actual resident buffers (+ headroom).
    wsz = jnp.dtype(MXU_DTYPE).itemsize
    resident = T * Bt * D0 * 4 + Bt * T * H_last * 4
    for (d_in, h) in dims:
        resident += (d_in * 4 * h + h * 4 * h) * wsz + 4 * h * 4
    for l in range(L - 1):
        resident += T * Bt * dims[l][1] * 4
    for l in range(L):
        resident += T * Bt * 4 * dims[l][1] * 4
    vmem_limit = int(min(max(2 * resident + (8 << 20), 32 << 20), 64 << 20))

    flops = 0
    transcendentals = 0
    for (d_in, h) in dims:
        flops += 2 * T * PB * (d_in + h) * 4 * h
        transcendentals += T * PB * 6 * h
    bytes_accessed = int(xa.size) * 4 + PB * T * H_last * 4 + sum(
        int(w.size) * jnp.dtype(w.dtype).itemsize for w in flat_w)

    y = pl.pallas_call(
        kernel,
        grid=(n_bt,),
        in_specs=in_specs,
        out_specs=out_specs,
        out_shape=out_shape,
        scratch_shapes=act_scratch + xp_scratch,
        compiler_params=pltpu.CompilerParams(
            dimension_semantics=("parallel",),
            vmem_limit_bytes=vmem_limit),
        cost_estimate=pl.CostEstimate(flops=flops,
                                      transcendentals=transcendentals,
                                      bytes_accessed=bytes_accessed),
    )(xa, *flat_w)

    if unrolled:
        # (n_bt, Bt, T*H) -> (PB, T, H)
        y = y.reshape(PB, T, H_last)
    else:
        # (n_bt, T*Bt, H): row = t*Bt + b_local -> (PB, T, H)
        y = (y.reshape(n_bt, T, Bt, H_last)
              .transpose(0, 2, 1, 3)
              .reshape(PB, T, H_last))
    return y[:B]


# ---------------------------------------------------------------------------
# Parameter init (PyTorch-style uniform(-1/sqrt(H), 1/sqrt(H)))
# ---------------------------------------------------------------------------
def init_lstm_params(key, input_size, hidden_size, num_layers):
    bound = 1.0 / jnp.sqrt(jnp.float32(hidden_size))
    params = []
    for layer in range(num_layers):
        in_sz = input_size if layer == 0 else hidden_size
        key, k1, k2, k3, k4 = jax.random.split(key, 5)
        w_ih = jax.random.uniform(k1, (4 * hidden_size, in_sz), jnp.float32, -bound, bound)
        w_hh = jax.random.uniform(k2, (4 * hidden_size, hidden_size), jnp.float32, -bound, bound)
        b_ih = jax.random.uniform(k3, (4 * hidden_size,), jnp.float32, -bound, bound)
        b_hh = jax.random.uniform(k4, (4 * hidden_size,), jnp.float32, -bound, bound)
        params.append((w_ih, w_hh, b_ih, b_hh))
    return params, key


def make_lstm_autoencoder_params(key, input_size, hidden_size, num_layers):
    enc_params, key = init_lstm_params(key, input_size, hidden_size, num_layers)
    dec_params, key = init_lstm_params(key, hidden_size, input_size, num_layers)
    return {"encoder": enc_params, "decoder": dec_params}


# ---------------------------------------------------------------------------
# Pure-JAX reference (torch.nn.LSTM semantics) for a sanity check
# ---------------------------------------------------------------------------
def _lstm_stack_ref(x_btd, layers):
    y = x_btd.astype(jnp.float32)
    for (w_ih, w_hh, b_ih, b_hh) in layers:
        H = w_ih.shape[0] // 4
        Bsz, Tsz, _ = y.shape
        h = jnp.zeros((Bsz, H), jnp.float32)
        c = jnp.zeros((Bsz, H), jnp.float32)
        outs = []
        for t in range(Tsz):
            g = y[:, t, :] @ w_ih.T + h @ w_hh.T + b_ih + b_hh
            i = jax.nn.sigmoid(g[:, 0 * H:1 * H])
            f = jax.nn.sigmoid(g[:, 1 * H:2 * H])
            gg = jnp.tanh(g[:, 2 * H:3 * H])
            o = jax.nn.sigmoid(g[:, 3 * H:4 * H])
            c = f * c + i * gg
            h = o * jnp.tanh(c)
            outs.append(h)
        y = jnp.stack(outs, axis=1)
    return y


if __name__ == "__main__":
    input_size = 16
    hidden_size = 32
    num_layers = 2
    batch = 2
    seq_len = 8

    key = jax.random.PRNGKey(0)
    key, xkey = jax.random.split(key)
    x = jax.random.normal(xkey, (batch, seq_len, input_size), dtype=jnp.float32)

    params = make_lstm_autoencoder_params(key, input_size, hidden_size, num_layers)

    y = lstm_autoencoder_forward(x, params)
    y = jax.block_until_ready(y)
    assert y.shape == (batch, seq_len, input_size), y.shape

    # Sanity check against a pure-JAX f32 reference. bf16 MXU operands change
    # numerics vs the f32 reference, so the tolerance is dtype-aware (gate
    # math and h/c stay f32 inside the kernel).
    y_ref = _lstm_stack_ref(_lstm_stack_ref(x, params["encoder"]), params["decoder"])
    max_err = float(jnp.max(jnp.abs(y - y_ref)))
    tol = 2e-2 if MXU_DTYPE == jnp.float32 else 1.5e-1
    assert max_err < tol, f"mismatch vs reference: {max_err}"

    print("KERNEL_OK")
</pallas_src>

<mosaic_0001>
module attributes {stable_mosaic.version = 11 : i64} {
  func.func @kernel(%arg0: i32, %arg1: memref<1x64x16xf32, #tpu.memory_space<vmem>>, %arg2: memref<16x128xbf16, #tpu.memory_space<vmem>>, %arg3: memref<32x128xbf16, #tpu.memory_space<vmem>>, %arg4: memref<1x128xf32, #tpu.memory_space<vmem>>, %arg5: memref<32x128xbf16, #tpu.memory_space<vmem>>, %arg6: memref<32x128xbf16, #tpu.memory_space<vmem>>, %arg7: memref<1x128xf32, #tpu.memory_space<vmem>>, %arg8: memref<32x64xbf16, #tpu.memory_space<vmem>>, %arg9: memref<16x64xbf16, #tpu.memory_space<vmem>>, %arg10: memref<1x64xf32, #tpu.memory_space<vmem>>, %arg11: memref<16x64xbf16, #tpu.memory_space<vmem>>, %arg12: memref<16x64xbf16, #tpu.memory_space<vmem>>, %arg13: memref<1x64xf32, #tpu.memory_space<vmem>>, %arg14: memref<1x8x128xf32, #tpu.memory_space<vmem>>, %arg15: memref<64x32xf32, #tpu.memory_space<vmem>>, %arg16: memref<64x32xf32, #tpu.memory_space<vmem>>, %arg17: memref<64x16xf32, #tpu.memory_space<vmem>>, %arg18: memref<64x128xf32, #tpu.memory_space<vmem>>, %arg19: memref<64x128xf32, #tpu.memory_space<vmem>>, %arg20: memref<64x64xf32, #tpu.memory_space<vmem>>, %arg21: memref<64x64xf32, #tpu.memory_space<vmem>>) attributes {dimension_semantics = [#tpu.dimension_semantics<parallel>], iteration_bounds = array<i64: 1>, scalar_prefetch = 0 : i64, scratch_operands = 7 : i64, tpu.core_type = #tpu.core_type<tc>, window_params = [{transform_indices = @transform_0, window_bounds = array<i64: 1, 64, 16>}, {pipeline_mode = #tpu.pipeline_mode<synchronous>, transform_indices = @transform_1, window_bounds = array<i64: 16, 128>}, {pipeline_mode = #tpu.pipeline_mode<synchronous>, transform_indices = @transform_2, window_bounds = array<i64: 32, 128>}, {pipeline_mode = #tpu.pipeline_mode<synchronous>, transform_indices = @transform_3, window_bounds = array<i64: 1, 128>}, {pipeline_mode = #tpu.pipeline_mode<synchronous>, transform_indices = @transform_4, window_bounds = array<i64: 32, 128>}, {pipeline_mode = #tpu.pipeline_mode<synchronous>, transform_indices = @transform_5, window_bounds = array<i64: 32, 128>}, {pipeline_mode = #tpu.pipeline_mode<synchronous>, transform_indices = @transform_6, window_bounds = array<i64: 1, 128>}, {pipeline_mode = #tpu.pipeline_mode<synchronous>, transform_indices = @transform_7, window_bounds = array<i64: 32, 64>}, {pipeline_mode = #tpu.pipeline_mode<synchronous>, transform_indices = @transform_8, window_bounds = array<i64: 16, 64>}, {pipeline_mode = #tpu.pipeline_mode<synchronous>, transform_indices = @transform_9, window_bounds = array<i64: 1, 64>}, {pipeline_mode = #tpu.pipeline_mode<synchronous>, transform_indices = @transform_10, window_bounds = array<i64: 16, 64>}, {pipeline_mode = #tpu.pipeline_mode<synchronous>, transform_indices = @transform_11, window_bounds = array<i64: 16, 64>}, {pipeline_mode = #tpu.pipeline_mode<synchronous>, transform_indices = @transform_12, window_bounds = array<i64: 1, 64>}, {transform_indices = @transform_13, window_bounds = array<i64: 1, 8, 128>}]} {
    %c0 = arith.constant 0 : index
    %c0_0 = arith.constant 0 : index
    %0 = vector.load %arg2[%c0, %c0_0] : memref<16x128xbf16, #tpu.memory_space<vmem>>, vector<16x128xbf16>
    %c0_1 = arith.constant 0 : index
    %c0_2 = arith.constant 0 : index
    %1 = vector.load %arg3[%c0_1, %c0_2] : memref<32x128xbf16, #tpu.memory_space<vmem>>, vector<32x128xbf16>
    %c0_3 = arith.constant 0 : index
    %c0_4 = arith.constant 0 : index
    %2 = vector.load %arg4[%c0_3, %c0_4] : memref<1x128xf32, #tpu.memory_space<vmem>>, vector<1x128xf32>
    %c0_5 = arith.constant 0 : index
    %c0_6 = arith.constant 0 : index
    %c0_7 = arith.constant 0 : index
    %3 = vector.load %arg1[%c0_5, %c0_6, %c0_7] : memref<1x64x16xf32, #tpu.memory_space<vmem>>, vector<1x64x16xf32>
    %4 = vector.shape_cast %3 : vector<1x64x16xf32> to vector<64x16xf32>
    %5 = arith.truncf %4 : vector<64x16xf32> to vector<64x16xbf16>
    %cst = arith.constant dense<0.000000e+00> : vector<64x128xf32>
    %6 = tpu.matmul %5, %0, %cst {dimension_numbers = #tpu.dot_dimension_numbers<[1], [0], [0], [1], [0, 0, 1, 1], [], []>} : vector<64x16xbf16>, vector<16x128xbf16>, vector<64x128xf32> -> vector<64x128xf32>
    %7 = vector.broadcast %2 : vector<1x128xf32> to vector<64x128xf32>
    %8 = arith.addf %6, %7 : vector<64x128xf32>
    %c0_8 = arith.constant 0 : index
    %c0_9 = arith.constant 0 : index
    %9 = vector.load %arg18[%c0_8, %c0_9] : memref<64x128xf32, #tpu.memory_space<vmem>>, vector<64x128xf32>
    tpu.vector_store %arg18[%c0_8, %c0_9], %8 {strides = array<i32>} : memref<64x128xf32, #tpu.memory_space<vmem>>, vector<64x128xf32>,
    %cst_10 = arith.constant 0.000000e+00 : f32
    %10 = vector.broadcast %cst_10 : f32 to vector<8x32xf32>
    %cst_11 = arith.constant 0.000000e+00 : f32
    %11 = vector.broadcast %cst_11 : f32 to vector<8x32xf32>
    %c0_12 = arith.constant 0 : index
    %c0_13 = arith.constant 0 : index
    %12 = vector.load %arg18[%c0_12, %c0_13] : memref<64x128xf32, #tpu.memory_space<vmem>>, vector<8x128xf32>
    %13 = arith.truncf %10 : vector<8x32xf32> to vector<8x32xbf16>
    %cst_14 = arith.constant dense<0.000000e+00> : vector<8x128xf32>
    %14 = tpu.matmul %13, %1, %cst_14 {dimension_numbers = #tpu.dot_dimension_numbers<[1], [0], [0], [1], [0, 0, 1, 1], [], []>} : vector<8x32xbf16>, vector<32x128xbf16>, vector<8x128xf32> -> vector<8x128xf32>
    %15 = arith.addf %12, %14 : vector<8x128xf32>
    %16 = arith.negf %15 : vector<8x128xf32>
    %17 = math.exp %16 : vector<8x128xf32>
    %cst_15 = arith.constant 1.000000e+00 : f32
    %18 = vector.broadcast %cst_15 : f32 to vector<8x128xf32>
    %19 = arith.addf %18, %17 : vector<8x128xf32>
    %20 = arith.divf %18, %19 : vector<8x128xf32>
    %21 = vector.extract_strided_slice %15 {offsets = [0, 64], sizes = [8, 32], strides = [1, 1]} : vector<8x128xf32> to vector<8x32xf32>
    %22 = math.tanh %21 : vector<8x32xf32>
    %23 = vector.extract_strided_slice %20 {offsets = [0, 32], sizes = [8, 32], strides = [1, 1]} : vector<8x128xf32> to vector<8x32xf32>
    %24 = arith.mulf %23, %11 : vector<8x32xf32>
    %25 = vector.extract_strided_slice %20 {offsets = [0, 0], sizes = [8, 32], strides = [1, 1]} : vector<8x128xf32> to vector<8x32xf32>
    %26 = arith.mulf %25, %22 : vector<8x32xf32>
    %27 = arith.addf %24, %26 : vector<8x32xf32>
    %28 = vector.extract_strided_slice %20 {offsets = [0, 96], sizes = [8, 32], strides = [1, 1]} : vector<8x128xf32> to vector<8x32xf32>
    %29 = math.tanh %27 : vector<8x32xf32>
    %30 = arith.mulf %28, %29 : vector<8x32xf32>
    %c0_16 = arith.constant 0 : index
    %c0_17 = arith.constant 0 : index
    %31 = vector.load %arg15[%c0_16, %c0_17] : memref<64x32xf32, #tpu.memory_space<vmem>>, vector<8x32xf32>
    tpu.vector_store %arg15[%c0_16, %c0_17], %30 {strides = array<i32>} : memref<64x32xf32, #tpu.memory_space<vmem>>, vector<8x32xf32>,
    %c8 = arith.constant 8 : index
    %c0_18 = arith.constant 0 : index
    %32 = vector.load %arg18[%c8, %c0_18] : memref<64x128xf32, #tpu.memory_space<vmem>>, vector<8x128xf32>
    %33 = arith.truncf %30 : vector<8x32xf32> to vector<8x32xbf16>
    %cst_19 = arith.constant dense<0.000000e+00> : vector<8x128xf32>
    %34 = tpu.matmul %33, %1, %cst_19 {dimension_numbers = #tpu.dot_dimension_numbers<[1], [0], [0], [1], [0, 0, 1, 1], [], []>} : vector<8x32xbf16>, vector<32x128xbf16>, vector<8x128xf32> -> vector<8x128xf32>
    %35 = arith.addf %32, %34 : vector<8x128xf32>
    %36 = arith.negf %35 : vector<8x128xf32>
    %37 = math.exp %36 : vector<8x128xf32>
    %cst_20 = arith.constant 1.000000e+00 : f32
    %38 = vector.broadcast %cst_20 : f32 to vector<8x128xf32>
    %39 = arith.addf %38, %37 : vector<8x128xf32>
    %40 = arith.divf %38, %39 : vector<8x128xf32>
    %41 = vector.extract_strided_slice %35 {offsets = [0, 64], sizes = [8, 32], strides = [1, 1]} : vector<8x128xf32> to vector<8x32xf32>
    %42 = math.tanh %41 : vector<8x32xf32>
    %43 = vector.extract_strided_slice %40 {offsets = [0, 32], sizes = [8, 32], strides = [1, 1]} : vector<8x128xf32> to vector<8x32xf32>
    %44 = arith.mulf %43, %27 : vector<8x32xf32>
    %45 = vector.extract_strided_slice %40 {offsets = [0, 0], sizes = [8, 32], strides = [1, 1]} : vector<8x128xf32> to vector<8x32xf32>
    %46 = arith.mulf %45, %42 : vector<8x32xf32>
    %47 = arith.addf %44, %46 : vector<8x32xf32>
    %48 = vector.extract_strided_slice %40 {offsets = [0, 96], sizes = [8, 32], strides = [1, 1]} : vector<8x128xf32> to vector<8x32xf32>
    %49 = math.tanh %47 : vector<8x32xf32>
    %50 = arith.mulf %48, %49 : vector<8x32xf32>
    %c8_21 = arith.constant 8 : index
    %c0_22 = arith.constant 0 : index
    %51 = vector.load %arg15[%c8_21, %c0_22] : memref<64x32xf32, #tpu.memory_space<vmem>>, vector<8x32xf32>
    tpu.vector_store %arg15[%c8_21, %c0_22], %50 {strides = array<i32>} : memref<64x32xf32, #tpu.memory_space<vmem>>, vector<8x32xf32>,
    %c16 = arith.constant 16 : index
    %c0_23 = arith.constant 0 : index
    %52 = vector.load %arg18[%c16, %c0_23] : memref<64x128xf32, #tpu.memory_space<vmem>>, vector<8x128xf32>
    %53 = arith.truncf %50 : vector<8x32xf32> to vector<8x32xbf16>
    %cst_24 = arith.constant dense<0.000000e+00> : vector<8x128xf32>
    %54 = tpu.matmul %53, %1, %cst_24 {dimension_numbers = #tpu.dot_dimension_numbers<[1], [0], [0], [1], [0, 0, 1, 1], [], []>} : vector<8x32xbf16>, vector<32x128xbf16>, vector<8x128xf32> -> vector<8x128xf32>
    %55 = arith.addf %52, %54 : vector<8x128xf32>
    %56 = arith.negf %55 : vector<8x128xf32>
    %57 = math.exp %56 : vector<8x128xf32>
    %cst_25 = arith.constant 1.000000e+00 : f32
    %58 = vector.broadcast %cst_25 : f32 to vector<8x128xf32>
    %59 = arith.addf %58, %57 : vector<8x128xf32>
    %60 = arith.divf %58, %59 : vector<8x128xf32>
    %61 = vector.extract_strided_slice %55 {offsets = [0, 64], sizes = [8, 32], strides = [1, 1]} : vector<8x128xf32> to vector<8x32xf32>
    %62 = math.tanh %61 : vector<8x32xf32>
    %63 = vector.extract_strided_slice %60 {offsets = [0, 32], sizes = [8, 32], strides = [1, 1]} : vector<8x128xf32> to vector<8x32xf32>
    %64 = arith.mulf %63, %47 : vector<8x32xf32>
    %65 = vector.extract_strided_slice %60 {offsets = [0, 0], sizes = [8, 32], strides = [1, 1]} : vector<8x128xf32> to vector<8x32xf32>
    %66 = arith.mulf %65, %62 : vector<8x32xf32>
    %67 = arith.addf %64, %66 : vector<8x32xf32>
    %68 = vector.extract_strided_slice %60 {offsets = [0, 96], sizes = [8, 32], strides = [1, 1]} : vector<8x128xf32> to vector<8x32xf32>
    %69 = math.tanh %67 : vector<8x32xf32>
    %70 = arith.mulf %68, %69 : vector<8x32xf32>
    %c16_26 = arith.constant 16 : index
    %c0_27 = arith.constant 0 : index
    %71 = vector.load %arg15[%c16_26, %c0_27] : memref<64x32xf32, #tpu.memory_space<vmem>>, vector<8x32xf32>
    tpu.vector_store %arg15[%c16_26, %c0_27], %70 {strides = array<i32>} : memref<64x32xf32, #tpu.memory_space<vmem>>, vector<8x32xf32>,
    %c24 = arith.constant 24 : index
    %c0_28 = arith.constant 0 : index
    %72 = vector.load %arg18[%c24, %c0_28] : memref<64x128xf32, #tpu.memory_space<vmem>>, vector<8x128xf32>
    %73 = arith.truncf %70 : vector<8x32xf32> to vector<8x32xbf16>
    %cst_29 = arith.constant dense<0.000000e+00> : vector<8x128xf32>
    %74 = tpu.matmul %73, %1, %cst_29 {dimension_numbers = #tpu.dot_dimension_numbers<[1], [0], [0], [1], [0, 0, 1, 1], [], []>} : vector<8x32xbf16>, vector<32x128xbf16>, vector<8x128xf32> -> vector<8x128xf32>
    %75 = arith.addf %72, %74 : vector<8x128xf32>
    %76 = arith.negf %75 : vector<8x128xf32>
    %77 = math.exp %76 : vector<8x128xf32>
    %cst_30 = arith.constant 1.000000e+00 : f32
    %78 = vector.broadcast %cst_30 : f32 to vector<8x128xf32>
    %79 = arith.addf %78, %77 : vector<8x128xf32>
    %80 = arith.divf %78, %79 : vector<8x128xf32>
    %81 = vector.extract_strided_slice %75 {offsets = [0, 64], sizes = [8, 32], strides = [1, 1]} : vector<8x128xf32> to vector<8x32xf32>
    %82 = math.tanh %81 : vector<8x32xf32>
    %83 = vector.extract_strided_slice %80 {offsets = [0, 32], sizes = [8, 32], strides = [1, 1]} : vector<8x128xf32> to vector<8x32xf32>
    %84 = arith.mulf %83, %67 : vector<8x32xf32>
    %85 = vector.extract_strided_slice %80 {offsets = [0, 0], sizes = [8, 32], strides = [1, 1]} : vector<8x128xf32> to vector<8x32xf32>
    %86 = arith.mulf %85, %82 : vector<8x32xf32>
    %87 = arith.addf %84, %86 : vector<8x32xf32>
    %88 = vector.extract_strided_slice %80 {offsets = [0, 96], sizes = [8, 32], strides = [1, 1]} : vector<8x128xf32> to vector<8x32xf32>
    %89 = math.tanh %87 : vector<8x32xf32>
    %90 = arith.mulf %88, %89 : vector<8x32xf32>
    %c24_31 = arith.constant 24 : index
    %c0_32 = arith.constant 0 : index
    %91 = vector.load %arg15[%c24_31, %c0_32] : memref<64x32xf32, #tpu.memory_space<vmem>>, vector<8x32xf32>
    tpu.vector_store %arg15[%c24_31, %c0_32], %90 {strides = array<i32>} : memref<64x32xf32, #tpu.memory_space<vmem>>, vector<8x32xf32>,
    %c32 = arith.constant 32 : index
    %c0_33 = arith.constant 0 : index
    %92 = vector.load %arg18[%c32, %c0_33] : memref<64x128xf32, #tpu.memory_space<vmem>>, vector<8x128xf32>
    %93 = arith.truncf %90 : vector<8x32xf32> to vector<8x32xbf16>
    %cst_34 = arith.constant dense<0.000000e+00> : vector<8x128xf32>
    %94 = tpu.matmul %93, %1, %cst_34 {dimension_numbers = #tpu.dot_dimension_numbers<[1], [0], [0], [1], [0, 0, 1, 1], [], []>} : vector<8x32xbf16>, vector<32x128xbf16>, vector<8x128xf32> -> vector<8x128xf32>
    %95 = arith.addf %92, %94 : vector<8x128xf32>
    %96 = arith.negf %95 : vector<8x128xf32>
    %97 = math.exp %96 : vector<8x128xf32>
    %cst_35 = arith.constant 1.000000e+00 : f32
    %98 = vector.broadcast %cst_35 : f32 to vector<8x128xf32>
    %99 = arith.addf %98, %97 : vector<8x128xf32>
    %100 = arith.divf %98, %99 : vector<8x128xf32>
    %101 = vector.extract_strided_slice %95 {offsets = [0, 64], sizes = [8, 32], strides = [1, 1]} : vector<8x128xf32> to vector<8x32xf32>
    %102 = math.tanh %101 : vector<8x32xf32>
    %103 = vector.extract_strided_slice %100 {offsets = [0, 32], sizes = [8, 32], strides = [1, 1]} : vector<8x128xf32> to vector<8x32xf32>
    %104 = arith.mulf %103, %87 : vector<8x32xf32>
    %105 = vector.extract_strided_slice %100 {offsets = [0, 0], sizes = [8, 32], strides = [1, 1]} : vector<8x128xf32> to vector<8x32xf32>
    %106 = arith.mulf %105, %102 : vector<8x32xf32>
    %107 = arith.addf %104, %106 : vector<8x32xf32>
    %108 = vector.extract_strided_slice %100 {offsets = [0, 96], sizes = [8, 32], strides = [1, 1]} : vector<8x128xf32> to vector<8x32xf32>
    %109 = math.tanh %107 : vector<8x32xf32>
    %110 = arith.mulf %108, %109 : vector<8x32xf32>
    %c32_36 = arith.constant 32 : index
    %c0_37 = arith.constant 0 : index
    %111 = vector.load %arg15[%c32_36, %c0_37] : memref<64x32xf32, #tpu.memory_space<vmem>>, vector<8x32xf32>
    tpu.vector_store %arg15[%c32_36, %c0_37], %110 {strides = array<i32>} : memref<64x32xf32, #tpu.memory_space<vmem>>, vector<8x32xf32>,
    %c40 = arith.constant 40 : index
    %c0_38 = arith.constant 0 : index
    %112 = vector.load %arg18[%c40, %c0_38] : memref<64x128xf32, #tpu.memory_space<vmem>>, vector<8x128xf32>
    %113 = arith.truncf %110 : vector<8x32xf32> to vector<8x32xbf16>
    %cst_39 = arith.constant dense<0.000000e+00> : vector<8x128xf32>
    %114 = tpu.matmul %113, %1, %cst_39 {dimension_numbers = #tpu.dot_dimension_numbers<[1], [0], [0], [1], [0, 0, 1, 1], [], []>} : vector<8x32xbf16>, vector<32x128xbf16>, vector<8x128xf32> -> vector<8x128xf32>
    %115 = arith.addf %112, %114 : vector<8x128xf32>
    %116 = arith.negf %115 : vector<8x128xf32>
    %117 = math.exp %116 : vector<8x128xf32>
    %cst_40 = arith.constant 1.000000e+00 : f32
    %118 = vector.broadcast %cst_40 : f32 to vector<8x128xf32>
    %119 = arith.addf %118, %117 : vector<8x128xf32>
    %120 = arith.divf %118, %119 : vector<8x128xf32>
    %121 = vector.extract_strided_slice %115 {offsets = [0, 64], sizes = [8, 32], strides = [1, 1]} : vector<8x128xf32> to vector<8x32xf32>
    %122 = math.tanh %121 : vector<8x32xf32>
    %123 = vector.extract_strided_slice %120 {offsets = [0, 32], sizes = [8, 32], strides = [1, 1]} : vector<8x128xf32> to vector<8x32xf32>
    %124 = arith.mulf %123, %107 : vector<8x32xf32>
    %125 = vector.extract_strided_slice %120 {offsets = [0, 0], sizes = [8, 32], strides = [1, 1]} : vector<8x128xf32> to vector<8x32xf32>
    %126 = arith.mulf %125, %122 : vector<8x32xf32>
    %127 = arith.addf %124, %126 : vector<8x32xf32>
    %128 = vector.extract_strided_slice %120 {offsets = [0, 96], sizes = [8, 32], strides = [1, 1]} : vector<8x128xf32> to vector<8x32xf32>
    %129 = math.tanh %127 : vector<8x32xf32>
    %130 = arith.mulf %128, %129 : vector<8x32xf32>
    %c40_41 = arith.constant 40 : index
    %c0_42 = arith.constant 0 : index
    %131 = vector.load %arg15[%c40_41, %c0_42] : memref<64x32xf32, #tpu.memory_space<vmem>>, vector<8x32xf32>
    tpu.vector_store %arg15[%c40_41, %c0_42], %130 {strides = array<i32>} : memref<64x32xf32, #tpu.memory_space<vmem>>, vector<8x32xf32>,
    %c48 = arith.constant 48 : index
    %c0_43 = arith.constant 0 : index
    %132 = vector.load %arg18[%c48, %c0_43] : memref<64x128xf32, #tpu.memory_space<vmem>>, vector<8x128xf32>
    %133 = arith.truncf %130 : vector<8x32xf32> to vector<8x32xbf16>
    %cst_44 = arith.constant dense<0.000000e+00> : vector<8x128xf32>
    %134 = tpu.matmul %133, %1, %cst_44 {dimension_numbers = #tpu.dot_dimension_numbers<[1], [0], [0], [1], [0, 0, 1, 1], [], []>} : vector<8x32xbf16>, vector<32x128xbf16>, vector<8x128xf32> -> vector<8x128xf32>
    %135 = arith.addf %132, %134 : vector<8x128xf32>
    %136 = arith.negf %135 : vector<8x128xf32>
    %137 = math.exp %136 : vector<8x128xf32>
    %cst_45 = arith.constant 1.000000e+00 : f32
    %138 = vector.broadcast %cst_45 : f32 to vector<8x128xf32>
    %139 = arith.addf %138, %137 : vector<8x128xf32>
    %140 = arith.divf %138, %139 : vector<8x128xf32>
    %141 = vector.extract_strided_slice %135 {offsets = [0, 64], sizes = [8, 32], strides = [1, 1]} : vector<8x128xf32> to vector<8x32xf32>
    %142 = math.tanh %141 : vector<8x32xf32>
    %143 = vector.extract_strided_slice %140 {offsets = [0, 32], sizes = [8, 32], strides = [1, 1]} : vector<8x128xf32> to vector<8x32xf32>
    %144 = arith.mulf %143, %127 : vector<8x32xf32>
    %145 = vector.extract_strided_slice %140 {offsets = [0, 0], sizes = [8, 32], strides = [1, 1]} : vector<8x128xf32> to vector<8x32xf32>
    %146 = arith.mulf %145, %142 : vector<8x32xf32>
    %147 = arith.addf %144, %146 : vector<8x32xf32>
    %148 = vector.extract_strided_slice %140 {offsets = [0, 96], sizes = [8, 32], strides = [1, 1]} : vector<8x128xf32> to vector<8x32xf32>
    %149 = math.tanh %147 : vector<8x32xf32>
    %150 = arith.mulf %148, %149 : vector<8x32xf32>
    %c48_46 = arith.constant 48 : index
    %c0_47 = arith.constant 0 : index
    %151 = vector.load %arg15[%c48_46, %c0_47] : memref<64x32xf32, #tpu.memory_space<vmem>>, vector<8x32xf32>
    tpu.vector_store %arg15[%c48_46, %c0_47], %150 {strides = array<i32>} : memref<64x32xf32, #tpu.memory_space<vmem>>, vector<8x32xf32>,
    %c56 = arith.constant 56 : index
    %c0_48 = arith.constant 0 : index
    %152 = vector.load %arg18[%c56, %c0_48] : memref<64x128xf32, #tpu.memory_space<vmem>>, vector<8x128xf32>
    %153 = arith.truncf %150 : vector<8x32xf32> to vector<8x32xbf16>
    %cst_49 = arith.constant dense<0.000000e+00> : vector<8x128xf32>
    %154 = tpu.matmul %153, %1, %cst_49 {dimension_numbers = #tpu.dot_dimension_numbers<[1], [0], [0], [1], [0, 0, 1, 1], [], []>} : vector<8x32xbf16>, vector<32x128xbf16>, vector<8x128xf32> -> vector<8x128xf32>
    %155 = arith.addf %152, %154 : vector<8x128xf32>
    %156 = arith.negf %155 : vector<8x128xf32>
    %157 = math.exp %156 : vector<8x128xf32>
    %cst_50 = arith.constant 1.000000e+00 : f32
    %158 = vector.broadcast %cst_50 : f32 to vector<8x128xf32>
    %159 = arith.addf %158, %157 : vector<8x128xf32>
    %160 = arith.divf %158, %159 : vector<8x128xf32>
    %161 = vector.extract_strided_slice %155 {offsets = [0, 64], sizes = [8, 32], strides = [1, 1]} : vector<8x128xf32> to vector<8x32xf32>
    %162 = math.tanh %161 : vector<8x32xf32>
    %163 = vector.extract_strided_slice %160 {offsets = [0, 32], sizes = [8, 32], strides = [1, 1]} : vector<8x128xf32> to vector<8x32xf32>
    %164 = arith.mulf %163, %147 : vector<8x32xf32>
    %165 = vector.extract_strided_slice %160 {offsets = [0, 0], sizes = [8, 32], strides = [1, 1]} : vector<8x128xf32> to vector<8x32xf32>
    %166 = arith.mulf %165, %162 : vector<8x32xf32>
    %167 = arith.addf %164, %166 : vector<8x32xf32>
    %168 = vector.extract_strided_slice %160 {offsets = [0, 96], sizes = [8, 32], strides = [1, 1]} : vector<8x128xf32> to vector<8x32xf32>
    %169 = math.tanh %167 : vector<8x32xf32>
    %170 = arith.mulf %168, %169 : vector<8x32xf32>
    %c56_51 = arith.constant 56 : index
    %c0_52 = arith.constant 0 : index
    %171 = vector.load %arg15[%c56_51, %c0_52] : memref<64x32xf32, #tpu.memory_space<vmem>>, vector<8x32xf32>
    tpu.vector_store %arg15[%c56_51, %c0_52], %170 {strides = array<i32>} : memref<64x32xf32, #tpu.memory_space<vmem>>, vector<8x32xf32>,
    %c0_53 = arith.constant 0 : index
    %c0_54 = arith.constant 0 : index
    %172 = vector.load %arg5[%c0_53, %c0_54] : memref<32x128xbf16, #tpu.memory_space<vmem>>, vector<32x128xbf16>
    %c0_55 = arith.constant 0 : index
    %c0_56 = arith.constant 0 : index
    %173 = vector.load %arg6[%c0_55, %c0_56] : memref<32x128xbf16, #tpu.memory_space<vmem>>, vector<32x128xbf16>
    %c0_57 = arith.constant 0 : index
    %c0_58 = arith.constant 0 : index
    %174 = vector.load %arg7[%c0_57, %c0_58] : memref<1x128xf32, #tpu.memory_space<vmem>>, vector<1x128xf32>
    %c0_59 = arith.constant 0 : index
    %c0_60 = arith.constant 0 : index
    %175 = vector.load %arg15[%c0_59, %c0_60] : memref<64x32xf32, #tpu.memory_space<vmem>>, vector<64x32xf32>
    %176 = arith.truncf %175 : vector<64x32xf32> to vector<64x32xbf16>
    %cst_61 = arith.constant dense<0.000000e+00> : vector<64x128xf32>
    %177 = tpu.matmul %176, %172, %cst_61 {dimension_numbers = #tpu.dot_dimension_numbers<[1], [0], [0], [1], [0, 0, 1, 1], [], []>} : vector<64x32xbf16>, vector<32x128xbf16>, vector<64x128xf32> -> vector<64x128xf32>
    %178 = vector.broadcast %174 : vector<1x128xf32> to vector<64x128xf32>
    %179 = arith.addf %177, %178 : vector<64x128xf32>
    %c0_62 = arith.constant 0 : index
    %c0_63 = arith.constant 0 : index
    %180 = vector.load %arg19[%c0_62, %c0_63] : memref<64x128xf32, #tpu.memory_space<vmem>>, vector<64x128xf32>
    tpu.vector_store %arg19[%c0_62, %c0_63], %179 {strides = array<i32>} : memref<64x128xf32, #tpu.memory_space<vmem>>, vector<64x128xf32>,
    %cst_64 = arith.constant 0.000000e+00 : f32
    %181 = vector.broadcast %cst_64 : f32 to vector<8x32xf32>
    %cst_65 = arith.constant 0.000000e+00 : f32
    %182 = vector.broadcast %cst_65 : f32 to vector<8x32xf32>
    %c0_66 = arith.constant 0 : index
    %c0_67 = arith.constant 0 : index
    %183 = vector.load %arg19[%c0_66, %c0_67] : memref<64x128xf32, #tpu.memory_space<vmem>>, vector<8x128xf32>
    %184 = arith.truncf %181 : vector<8x32xf32> to vector<8x32xbf16>
    %cst_68 = arith.constant dense<0.000000e+00> : vector<8x128xf32>
    %185 = tpu.matmul %184, %173, %cst_68 {dimension_numbers = #tpu.dot_dimension_numbers<[1], [0], [0], [1], [0, 0, 1, 1], [], []>} : vector<8x32xbf16>, vector<32x128xbf16>, vector<8x128xf32> -> vector<8x128xf32>
    %186 = arith.addf %183, %185 : vector<8x128xf32>
    %187 = arith.negf %186 : vector<8x128xf32>
    %188 = math.exp %187 : vector<8x128xf32>
    %cst_69 = arith.constant 1.000000e+00 : f32
    %189 = vector.broadcast %cst_69 : f32 to vector<8x128xf32>
    %190 = arith.addf %189, %188 : vector<8x128xf32>
    %191 = arith.divf %189, %190 : vector<8x128xf32>
    %192 = vector.extract_strided_slice %186 {offsets = [0, 64], sizes = [8, 32], strides = [1, 1]} : vector<8x128xf32> to vector<8x32xf32>
    %193 = math.tanh %192 : vector<8x32xf32>
    %194 = vector.extract_strided_slice %191 {offsets = [0, 32], sizes = [8, 32], strides = [1, 1]} : vector<8x128xf32> to vector<8x32xf32>
    %195 = arith.mulf %194, %182 : vector<8x32xf32>
    %196 = vector.extract_strided_slice %191 {offsets = [0, 0], sizes = [8, 32], strides = [1, 1]} : vector<8x128xf32> to vector<8x32xf32>
    %197 = arith.mulf %196, %193 : vector<8x32xf32>
    %198 = arith.addf %195, %197 : vector<8x32xf32>
    %199 = vector.extract_strided_slice %191 {offsets = [0, 96], sizes = [8, 32], strides = [1, 1]} : vector<8x128xf32> to vector<8x32xf32>
    %200 = math.tanh %198 : vector<8x32xf32>
    %201 = arith.mulf %199, %200 : vector<8x32xf32>
    %c0_70 = arith.constant 0 : index
    %c0_71 = arith.constant 0 : index
    %202 = vector.load %arg16[%c0_70, %c0_71] : memref<64x32xf32, #tpu.memory_space<vmem>>, vector<8x32xf32>
    tpu.vector_store %arg16[%c0_70, %c0_71], %201 {strides = array<i32>} : memref<64x32xf32, #tpu.memory_space<vmem>>, vector<8x32xf32>,
    %c8_72 = arith.constant 8 : index
    %c0_73 = arith.constant 0 : index
    %203 = vector.load %arg19[%c8_72, %c0_73] : memref<64x128xf32, #tpu.memory_space<vmem>>, vector<8x128xf32>
    %204 = arith.truncf %201 : vector<8x32xf32> to vector<8x32xbf16>
    %cst_74 = arith.constant dense<0.000000e+00> : vector<8x128xf32>
    %205 = tpu.matmul %204, %173, %cst_74 {dimension_numbers = #tpu.dot_dimension_numbers<[1], [0], [0], [1], [0, 0, 1, 1], [], []>} : vector<8x32xbf16>, vector<32x128xbf16>, vector<8x128xf32> -> vector<8x128xf32>
    %206 = arith.addf %203, %205 : vector<8x128xf32>
    %207 = arith.negf %206 : vector<8x128xf32>
    %208 = math.exp %207 : vector<8x128xf32>
    %cst_75 = arith.constant 1.000000e+00 : f32
    %209 = vector.broadcast %cst_75 : f32 to vector<8x128xf32>
    %210 = arith.addf %209, %208 : vector<8x128xf32>
    %211 = arith.divf %209, %210 : vector<8x128xf32>
    %212 = vector.extract_strided_slice %206 {offsets = [0, 64], sizes = [8, 32], strides = [1, 1]} : vector<8x128xf32> to vector<8x32xf32>
    %213 = math.tanh %212 : vector<8x32xf32>
    %214 = vector.extract_strided_slice %211 {offsets = [0, 32], sizes = [8, 32], strides = [1, 1]} : vector<8x128xf32> to vector<8x32xf32>
    %215 = arith.mulf %214, %198 : vector<8x32xf32>
    %216 = vector.extract_strided_slice %211 {offsets = [0, 0], sizes = [8, 32], strides = [1, 1]} : vector<8x128xf32> to vector<8x32xf32>
    %217 = arith.mulf %216, %213 : vector<8x32xf32>
    %218 = arith.addf %215, %217 : vector<8x32xf32>
    %219 = vector.extract_strided_slice %211 {offsets = [0, 96], sizes = [8, 32], strides = [1, 1]} : vector<8x128xf32> to vector<8x32xf32>
    %220 = math.tanh %218 : vector<8x32xf32>
    %221 = arith.mulf %219, %220 : vector<8x32xf32>
    %c8_76 = arith.constant 8 : index
    %c0_77 = arith.constant 0 : index
    %222 = vector.load %arg16[%c8_76, %c0_77] : memref<64x32xf32, #tpu.memory_space<vmem>>, vector<8x32xf32>
    tpu.vector_store %arg16[%c8_76, %c0_77], %221 {strides = array<i32>} : memref<64x32xf32, #tpu.memory_space<vmem>>, vector<8x32xf32>,
    %c16_78 = arith.constant 16 : index
    %c0_79 = arith.constant 0 : index
    %223 = vector.load %arg19[%c16_78, %c0_79] : memref<64x128xf32, #tpu.memory_space<vmem>>, vector<8x128xf32>
    %224 = arith.truncf %221 : vector<8x32xf32> to vector<8x32xbf16>
    %cst_80 = arith.constant dense<0.000000e+00> : vector<8x128xf32>
    %225 = tpu.matmul %224, %173, %cst_80 {dimension_numbers = #tpu.dot_dimension_numbers<[1], [0], [0], [1], [0, 0, 1, 1], [], []>} : vector<8x32xbf16>, vector<32x128xbf16>, vector<8x128xf32> -> vector<8x128xf32>
    %226 = arith.addf %223, %225 : vector<8x128xf32>
    %227 = arith.negf %226 : vector<8x128xf32>
    %228 = math.exp %227 : vector<8x128xf32>
    %cst_81 = arith.constant 1.000000e+00 : f32
    %229 = vector.broadcast %cst_81 : f32 to vector<8x128xf32>
    %230 = arith.addf %229, %228 : vector<8x128xf32>
    %231 = arith.divf %229, %230 : vector<8x128xf32>
    %232 = vector.extract_strided_slice %226 {offsets = [0, 64], sizes = [8, 32], strides = [1, 1]} : vector<8x128xf32> to vector<8x32xf32>
    %233 = math.tanh %232 : vector<8x32xf32>
    %234 = vector.extract_strided_slice %231 {offsets = [0, 32], sizes = [8, 32], strides = [1, 1]} : vector<8x128xf32> to vector<8x32xf32>
    %235 = arith.mulf %234, %218 : vector<8x32xf32>
    %236 = vector.extract_strided_slice %231 {offsets = [0, 0], sizes = [8, 32], strides = [1, 1]} : vector<8x128xf32> to vector<8x32xf32>
    %237 = arith.mulf %236, %233 : vector<8x32xf32>
    %238 = arith.addf %235, %237 : vector<8x32xf32>
    %239 = vector.extract_strided_slice %231 {offsets = [0, 96], sizes = [8, 32], strides = [1, 1]} : vector<8x128xf32> to vector<8x32xf32>
    %240 = math.tanh %238 : vector<8x32xf32>
    %241 = arith.mulf %239, %240 : vector<8x32xf32>
    %c16_82 = arith.constant 16 : index
    %c0_83 = arith.constant 0 : index
    %242 = vector.load %arg16[%c16_82, %c0_83] : memref<64x32xf32, #tpu.memory_space<vmem>>, vector<8x32xf32>
    tpu.vector_store %arg16[%c16_82, %c0_83], %241 {strides = array<i32>} : memref<64x32xf32, #tpu.memory_space<vmem>>, vector<8x32xf32>,
    %c24_84 = arith.constant 24 : index
    %c0_85 = arith.constant 0 : index
    %243 = vector.load %arg19[%c24_84, %c0_85] : memref<64x128xf32, #tpu.memory_space<vmem>>, vector<8x128xf32>
    %244 = arith.truncf %241 : vector<8x32xf32> to vector<8x32xbf16>
    %cst_86 = arith.constant dense<0.000000e+00> : vector<8x128xf32>
    %245 = tpu.matmul %244, %173, %cst_86 {dimension_numbers = #tpu.dot_dimension_numbers<[1], [0], [0], [1], [0, 0, 1, 1], [], []>} : vector<8x32xbf16>, vector<32x128xbf16>, vector<8x128xf32> -> vector<8x128xf32>
    %246 = arith.addf %243, %245 : vector<8x128xf32>
    %247 = arith.negf %246 : vector<8x128xf32>
    %248 = math.exp %247 : vector<8x128xf32>
    %cst_87 = arith.constant 1.000000e+00 : f32
    %249 = vector.broadcast %cst_87 : f32 to vector<8x128xf32>
    %250 = arith.addf %249, %248 : vector<8x128xf32>
    %251 = arith.divf %249, %250 : vector<8x128xf32>
    %252 = vector.extract_strided_slice %246 {offsets = [0, 64], sizes = [8, 32], strides = [1, 1]} : vector<8x128xf32> to vector<8x32xf32>
    %253 = math.tanh %252 : vector<8x32xf32>
    %254 = vector.extract_strided_slice %251 {offsets = [0, 32], sizes = [8, 32], strides = [1, 1]} : vector<8x128xf32> to vector<8x32xf32>
    %255 = arith.mulf %254, %238 : vector<8x32xf32>
    %256 = vector.extract_strided_slice %251 {offsets = [0, 0], sizes = [8, 32], strides = [1, 1]} : vector<8x128xf32> to vector<8x32xf32>
    %257 = arith.mulf %256, %253 : vector<8x32xf32>
    %258 = arith.addf %255, %257 : vector<8x32xf32>
    %259 = vector.extract_strided_slice %251 {offsets = [0, 96], sizes = [8, 32], strides = [1, 1]} : vector<8x128xf32> to vector<8x32xf32>
    %260 = math.tanh %258 : vector<8x32xf32>
    %261 = arith.mulf %259, %260 : vector<8x32xf32>
    %c24_88 = arith.constant 24 : index
    %c0_89 = arith.constant 0 : index
    %262 = vector.load %arg16[%c24_88, %c0_89] : memref<64x32xf32, #tpu.memory_space<vmem>>, vector<8x32xf32>
    tpu.vector_store %arg16[%c24_88, %c0_89], %261 {strides = array<i32>} : memref<64x32xf32, #tpu.memory_space<vmem>>, vector<8x32xf32>,
    %c32_90 = arith.constant 32 : index
    %c0_91 = arith.constant 0 : index
    %263 = vector.load %arg19[%c32_90, %c0_91] : memref<64x128xf32, #tpu.memory_space<vmem>>, vector<8x128xf32>
    %264 = arith.truncf %261 : vector<8x32xf32> to vector<8x32xbf16>
    %cst_92 = arith.constant dense<0.000000e+00> : vector<8x128xf32>
    %265 = tpu.matmul %264, %173, %cst_92 {dimension_numbers = #tpu.dot_dimension_numbers<[1], [0], [0], [1], [0, 0, 1, 1], [], []>} : vector<8x32xbf16>, vector<32x128xbf16>, vector<8x128xf32> -> vector<8x128xf32>
    %266 = arith.addf %263, %265 : vector<8x128xf32>
    %267 = arith.negf %266 : vector<8x128xf32>
    %268 = math.exp %267 : vector<8x128xf32>
    %cst_93 = arith.constant 1.000000e+00 : f32
    %269 = vector.broadcast %cst_93 : f32 to vector<8x128xf32>
    %270 = arith.addf %269, %268 : vector<8x128xf32>
    %271 = arith.divf %269, %270 : vector<8x128xf32>
    %272 = vector.extract_strided_slice %266 {offsets = [0, 64], sizes = [8, 32], strides = [1, 1]} : vector<8x128xf32> to vector<8x32xf32>
    %273 = math.tanh %272 : vector<8x32xf32>
    %274 = vector.extract_strided_slice %271 {offsets = [0, 32], sizes = [8, 32], strides = [1, 1]} : vector<8x128xf32> to vector<8x32xf32>
    %275 = arith.mulf %274, %258 : vector<8x32xf32>
    %276 = vector.extract_strided_slice %271 {offsets = [0, 0], sizes = [8, 32], strides = [1, 1]} : vector<8x128xf32> to vector<8x32xf32>
    %277 = arith.mulf %276, %273 : vector<8x32xf32>
    %278 = arith.addf %275, %277 : vector<8x32xf32>
    %279 = vector.extract_strided_slice %271 {offsets = [0, 96], sizes = [8, 32], strides = [1, 1]} : vector<8x128xf32> to vector<8x32xf32>
    %280 = math.tanh %278 : vector<8x32xf32>
    %281 = arith.mulf %279, %280 : vector<8x32xf32>
    %c32_94 = arith.constant 32 : index
    %c0_95 = arith.constant 0 : index
    %282 = vector.load %arg16[%c32_94, %c0_95] : memref<64x32xf32, #tpu.memory_space<vmem>>, vector<8x32xf32>
    tpu.vector_store %arg16[%c32_94, %c0_95], %281 {strides = array<i32>} : memref<64x32xf32, #tpu.memory_space<vmem>>, vector<8x32xf32>,
    %c40_96 = arith.constant 40 : index
    %c0_97 = arith.constant 0 : index
    %283 = vector.load %arg19[%c40_96, %c0_97] : memref<64x128xf32, #tpu.memory_space<vmem>>, vector<8x128xf32>
    %284 = arith.truncf %281 : vector<8x32xf32> to vector<8x32xbf16>
    %cst_98 = arith.constant dense<0.000000e+00> : vector<8x128xf32>
    %285 = tpu.matmul %284, %173, %cst_98 {dimension_numbers = #tpu.dot_dimension_numbers<[1], [0], [0], [1], [0, 0, 1, 1], [], []>} : vector<8x32xbf16>, vector<32x128xbf16>, vector<8x128xf32> -> vector<8x128xf32>
    %286 = arith.addf %283, %285 : vector<8x128xf32>
    %287 = arith.negf %286 : vector<8x128xf32>
    %288 = math.exp %287 : vector<8x128xf32>
    %cst_99 = arith.constant 1.000000e+00 : f32
    %289 = vector.broadcast %cst_99 : f32 to vector<8x128xf32>
    %290 = arith.addf %289, %288 : vector<8x128xf32>
    %291 = arith.divf %289, %290 : vector<8x128xf32>
    %292 = vector.extract_strided_slice %286 {offsets = [0, 64], sizes = [8, 32], strides = [1, 1]} : vector<8x128xf32> to vector<8x32xf32>
    %293 = math.tanh %292 : vector<8x32xf32>
    %294 = vector.extract_strided_slice %291 {offsets = [0, 32], sizes = [8, 32], strides = [1, 1]} : vector<8x128xf32> to vector<8x32xf32>
    %295 = arith.mulf %294, %278 : vector<8x32xf32>
    %296 = vector.extract_strided_slice %291 {offsets = [0, 0], sizes = [8, 32], strides = [1, 1]} : vector<8x128xf32> to vector<8x32xf32>
    %297 = arith.mulf %296, %293 : vector<8x32xf32>
    %298 = arith.addf %295, %297 : vector<8x32xf32>
    %299 = vector.extract_strided_slice %291 {offsets = [0, 96], sizes = [8, 32], strides = [1, 1]} : vector<8x128xf32> to vector<8x32xf32>
    %300 = math.tanh %298 : vector<8x32xf32>
    %301 = arith.mulf %299, %300 : vector<8x32xf32>
    %c40_100 = arith.constant 40 : index
    %c0_101 = arith.constant 0 : index
    %302 = vector.load %arg16[%c40_100, %c0_101] : memref<64x32xf32, #tpu.memory_space<vmem>>, vector<8x32xf32>
    tpu.vector_store %arg16[%c40_100, %c0_101], %301 {strides = array<i32>} : memref<64x32xf32, #tpu.memory_space<vmem>>, vector<8x32xf32>,
    %c48_102 = arith.constant 48 : index
    %c0_103 = arith.constant 0 : index
    %303 = vector.load %arg19[%c48_102, %c0_103] : memref<64x128xf32, #tpu.memory_space<vmem>>, vector<8x128xf32>
    %304 = arith.truncf %301 : vector<8x32xf32> to vector<8x32xbf16>
    %cst_104 = arith.constant dense<0.000000e+00> : vector<8x128xf32>
    %305 = tpu.matmul %304, %173, %cst_104 {dimension_numbers = #tpu.dot_dimension_numbers<[1], [0], [0], [1], [0, 0, 1, 1], [], []>} : vector<8x32xbf16>, vector<32x128xbf16>, vector<8x128xf32> -> vector<8x128xf32>
    %306 = arith.addf %303, %305 : vector<8x128xf32>
    %307 = arith.negf %306 : vector<8x128xf32>
    %308 = math.exp %307 : vector<8x128xf32>
    %cst_105 = arith.constant 1.000000e+00 : f32
    %309 = vector.broadcast %cst_105 : f32 to vector<8x128xf32>
    %310 = arith.addf %309, %308 : vector<8x128xf32>
    %311 = arith.divf %309, %310 : vector<8x128xf32>
    %312 = vector.extract_strided_slice %306 {offsets = [0, 64], sizes = [8, 32], strides = [1, 1]} : vector<8x128xf32> to vector<8x32xf32>
    %313 = math.tanh %312 : vector<8x32xf32>
    %314 = vector.extract_strided_slice %311 {offsets = [0, 32], sizes = [8, 32], strides = [1, 1]} : vector<8x128xf32> to vector<8x32xf32>
    %315 = arith.mulf %314, %298 : vector<8x32xf32>
    %316 = vector.extract_strided_slice %311 {offsets = [0, 0], sizes = [8, 32], strides = [1, 1]} : vector<8x128xf32> to vector<8x32xf32>
    %317 = arith.mulf %316, %313 : vector<8x32xf32>
    %318 = arith.addf %315, %317 : vector<8x32xf32>
    %319 = vector.extract_strided_slice %311 {offsets = [0, 96], sizes = [8, 32], strides = [1, 1]} : vector<8x128xf32> to vector<8x32xf32>
    %320 = math.tanh %318 : vector<8x32xf32>
    %321 = arith.mulf %319, %320 : vector<8x32xf32>
    %c48_106 = arith.constant 48 : index
    %c0_107 = arith.constant 0 : index
    %322 = vector.load %arg16[%c48_106, %c0_107] : memref<64x32xf32, #tpu.memory_space<vmem>>, vector<8x32xf32>
    tpu.vector_store %arg16[%c48_106, %c0_107], %321 {strides = array<i32>} : memref<64x32xf32, #tpu.memory_space<vmem>>, vector<8x32xf32>,
    %c56_108 = arith.constant 56 : index
    %c0_109 = arith.constant 0 : index
    %323 = vector.load %arg19[%c56_108, %c0_109] : memref<64x128xf32, #tpu.memory_space<vmem>>, vector<8x128xf32>
    %324 = arith.truncf %321 : vector<8x32xf32> to vector<8x32xbf16>
    %cst_110 = arith.constant dense<0.000000e+00> : vector<8x128xf32>
    %325 = tpu.matmul %324, %173, %cst_110 {dimension_numbers = #tpu.dot_dimension_numbers<[1], [0], [0], [1], [0, 0, 1, 1], [], []>} : vector<8x32xbf16>, vector<32x128xbf16>, vector<8x128xf32> -> vector<8x128xf32>
    %326 = arith.addf %323, %325 : vector<8x128xf32>
    %327 = arith.negf %326 : vector<8x128xf32>
    %328 = math.exp %327 : vector<8x128xf32>
    %cst_111 = arith.constant 1.000000e+00 : f32
    %329 = vector.broadcast %cst_111 : f32 to vector<8x128xf32>
    %330 = arith.addf %329, %328 : vector<8x128xf32>
    %331 = arith.divf %329, %330 : vector<8x128xf32>
    %332 = vector.extract_strided_slice %326 {offsets = [0, 64], sizes = [8, 32], strides = [1, 1]} : vector<8x128xf32> to vector<8x32xf32>
    %333 = math.tanh %332 : vector<8x32xf32>
    %334 = vector.extract_strided_slice %331 {offsets = [0, 32], sizes = [8, 32], strides = [1, 1]} : vector<8x128xf32> to vector<8x32xf32>
    %335 = arith.mulf %334, %318 : vector<8x32xf32>
    %336 = vector.extract_strided_slice %331 {offsets = [0, 0], sizes = [8, 32], strides = [1, 1]} : vector<8x128xf32> to vector<8x32xf32>
    %337 = arith.mulf %336, %333 : vector<8x32xf32>
    %338 = arith.addf %335, %337 : vector<8x32xf32>
    %339 = vector.extract_strided_slice %331 {offsets = [0, 96], sizes = [8, 32], strides = [1, 1]} : vector<8x128xf32> to vector<8x32xf32>
    %340 = math.tanh %338 : vector<8x32xf32>
    %341 = arith.mulf %339, %340 : vector<8x32xf32>
    %c56_112 = arith.constant 56 : index
    %c0_113 = arith.constant 0 : index
    %342 = vector.load %arg16[%c56_112, %c0_113] : memref<64x32xf32, #tpu.memory_space<vmem>>, vector<8x32xf32>
    tpu.vector_store %arg16[%c56_112, %c0_113], %341 {strides = array<i32>} : memref<64x32xf32, #tpu.memory_space<vmem>>, vector<8x32xf32>,
    %c0_114 = arith.constant 0 : index
    %c0_115 = arith.constant 0 : index
    %343 = vector.load %arg8[%c0_114, %c0_115] : memref<32x64xbf16, #tpu.memory_space<vmem>>, vector<32x64xbf16>
    %c0_116 = arith.constant 0 : index
    %c0_117 = arith.constant 0 : index
    %344 = vector.load %arg9[%c0_116, %c0_117] : memref<16x64xbf16, #tpu.memory_space<vmem>>, vector<16x64xbf16>
    %c0_118 = arith.constant 0 : index
    %c0_119 = arith.constant 0 : index
    %345 = vector.load %arg10[%c0_118, %c0_119] : memref<1x64xf32, #tpu.memory_space<vmem>>, vector<1x64xf32>
    %c0_120 = arith.constant 0 : index
    %c0_121 = arith.constant 0 : index
    %346 = vector.load %arg16[%c0_120, %c0_121] : memref<64x32xf32, #tpu.memory_space<vmem>>, vector<64x32xf32>
    %347 = arith.truncf %346 : vector<64x32xf32> to vector<64x32xbf16>
    %cst_122 = arith.constant dense<0.000000e+00> : vector<64x64xf32>
    %348 = tpu.matmul %347, %343, %cst_122 {dimension_numbers = #tpu.dot_dimension_numbers<[1], [0], [0], [1], [0, 0, 1, 1], [], []>} : vector<64x32xbf16>, vector<32x64xbf16>, vector<64x64xf32> -> vector<64x64xf32>
    %349 = vector.broadcast %345 : vector<1x64xf32> to vector<64x64xf32>
    %350 = arith.addf %348, %349 : vector<64x64xf32>
    %c0_123 = arith.constant 0 : index
    %c0_124 = arith.constant 0 : index
    %351 = vector.load %arg20[%c0_123, %c0_124] : memref<64x64xf32, #tpu.memory_space<vmem>>, vector<64x64xf32>
    tpu.vector_store %arg20[%c0_123, %c0_124], %350 {strides = array<i32>} : memref<64x64xf32, #tpu.memory_space<vmem>>, vector<64x64xf32>,
    %cst_125 = arith.constant 0.000000e+00 : f32
    %352 = vector.broadcast %cst_125 : f32 to vector<8x16xf32>
    %cst_126 = arith.constant 0.000000e+00 : f32
    %353 = vector.broadcast %cst_126 : f32 to vector<8x16xf32>
    %c0_127 = arith.constant 0 : index
    %c0_128 = arith.constant 0 : index
    %354 = vector.load %arg20[%c0_127, %c0_128] : memref<64x64xf32, #tpu.memory_space<vmem>>, vector<8x64xf32>
    %355 = arith.truncf %352 : vector<8x16xf32> to vector<8x16xbf16>
    %cst_129 = arith.constant dense<0.000000e+00> : vector<8x64xf32>
    %356 = tpu.matmul %355, %344, %cst_129 {dimension_numbers = #tpu.dot_dimension_numbers<[1], [0], [0], [1], [0, 0, 1, 1], [], []>} : vector<8x16xbf16>, vector<16x64xbf16>, vector<8x64xf32> -> vector<8x64xf32>
    %357 = arith.addf %354, %356 : vector<8x64xf32>
    %358 = arith.negf %357 : vector<8x64xf32>
    %359 = math.exp %358 : vector<8x64xf32>
    %cst_130 = arith.constant 1.000000e+00 : f32
    %360 = vector.broadcast %cst_130 : f32 to vector<8x64xf32>
    %361 = arith.addf %360, %359 : vector<8x64xf32>
    %362 = arith.divf %360, %361 : vector<8x64xf32>
    %363 = vector.extract_strided_slice %357 {offsets = [0, 32], sizes = [8, 16], strides = [1, 1]} : vector<8x64xf32> to vector<8x16xf32>
    %364 = math.tanh %363 : vector<8x16xf32>
    %365 = vector.extract_strided_slice %362 {offsets = [0, 16], sizes = [8, 16], strides = [1, 1]} : vector<8x64xf32> to vector<8x16xf32>
    %366 = arith.mulf %365, %353 : vector<8x16xf32>
    %367 = vector.extract_strided_slice %362 {offsets = [0, 0], sizes = [8, 16], strides = [1, 1]} : vector<8x64xf32> to vector<8x16xf32>
    %368 = arith.mulf %367, %364 : vector<8x16xf32>
    %369 = arith.addf %366, %368 : vector<8x16xf32>
    %370 = vector.extract_strided_slice %362 {offsets = [0, 48], sizes = [8, 16], strides = [1, 1]} : vector<8x64xf32> to vector<8x16xf32>
    %371 = math.tanh %369 : vector<8x16xf32>
    %372 = arith.mulf %370, %371 : vector<8x16xf32>
    %c0_131 = arith.constant 0 : index
    %c0_132 = arith.constant 0 : index
    %373 = vector.load %arg17[%c0_131, %c0_132] : memref<64x16xf32, #tpu.memory_space<vmem>>, vector<8x16xf32>
    tpu.vector_store %arg17[%c0_131, %c0_132], %372 {strides = array<i32>} : memref<64x16xf32, #tpu.memory_space<vmem>>, vector<8x16xf32>,
    %c8_133 = arith.constant 8 : index
    %c0_134 = arith.constant 0 : index
    %374 = vector.load %arg20[%c8_133, %c0_134] : memref<64x64xf32, #tpu.memory_space<vmem>>, vector<8x64xf32>
    %375 = arith.truncf %372 : vector<8x16xf32> to vector<8x16xbf16>
    %cst_135 = arith.constant dense<0.000000e+00> : vector<8x64xf32>
    %376 = tpu.matmul %375, %344, %cst_135 {dimension_numbers = #tpu.dot_dimension_numbers<[1], [0], [0], [1], [0, 0, 1, 1], [], []>} : vector<8x16xbf16>, vector<16x64xbf16>, vector<8x64xf32> -> vector<8x64xf32>
    %377 = arith.addf %374, %376 : vector<8x64xf32>
    %378 = arith.negf %377 : vector<8x64xf32>
    %379 = math.exp %378 : vector<8x64xf32>
    %cst_136 = arith.constant 1.000000e+00 : f32
    %380 = vector.broadcast %cst_136 : f32 to vector<8x64xf32>
    %381 = arith.addf %380, %379 : vector<8x64xf32>
    %382 = arith.divf %380, %381 : vector<8x64xf32>
    %383 = vector.extract_strided_slice %377 {offsets = [0, 32], sizes = [8, 16], strides = [1, 1]} : vector<8x64xf32> to vector<8x16xf32>
    %384 = math.tanh %383 : vector<8x16xf32>
    %385 = vector.extract_strided_slice %382 {offsets = [0, 16], sizes = [8, 16], strides = [1, 1]} : vector<8x64xf32> to vector<8x16xf32>
    %386 = arith.mulf %385, %369 : vector<8x16xf32>
    %387 = vector.extract_strided_slice %382 {offsets = [0, 0], sizes = [8, 16], strides = [1, 1]} : vector<8x64xf32> to vector<8x16xf32>
    %388 = arith.mulf %387, %384 : vector<8x16xf32>
    %389 = arith.addf %386, %388 : vector<8x16xf32>
    %390 = vector.extract_strided_slice %382 {offsets = [0, 48], sizes = [8, 16], strides = [1, 1]} : vector<8x64xf32> to vector<8x16xf32>
    %391 = math.tanh %389 : vector<8x16xf32>
    %392 = arith.mulf %390, %391 : vector<8x16xf32>
    %c8_137 = arith.constant 8 : index
    %c0_138 = arith.constant 0 : index
    %393 = vector.load %arg17[%c8_137, %c0_138] : memref<64x16xf32, #tpu.memory_space<vmem>>, vector<8x16xf32>
    tpu.vector_store %arg17[%c8_137, %c0_138], %392 {strides = array<i32>} : memref<64x16xf32, #tpu.memory_space<vmem>>, vector<8x16xf32>,
    %c16_139 = arith.constant 16 : index
    %c0_140 = arith.constant 0 : index
    %394 = vector.load %arg20[%c16_139, %c0_140] : memref<64x64xf32, #tpu.memory_space<vmem>>, vector<8x64xf32>
    %395 = arith.truncf %392 : vector<8x16xf32> to vector<8x16xbf16>
    %cst_141 = arith.constant dense<0.000000e+00> : vector<8x64xf32>
    %396 = tpu.matmul %395, %344, %cst_141 {dimension_numbers = #tpu.dot_dimension_numbers<[1], [0], [0], [1], [0, 0, 1, 1], [], []>} : vector<8x16xbf16>, vector<16x64xbf16>, vector<8x64xf32> -> vector<8x64xf32>
    %397 = arith.addf %394, %396 : vector<8x64xf32>
    %398 = arith.negf %397 : vector<8x64xf32>
    %399 = math.exp %398 : vector<8x64xf32>
    %cst_142 = arith.constant 1.000000e+00 : f32
    %400 = vector.broadcast %cst_142 : f32 to vector<8x64xf32>
    %401 = arith.addf %400, %399 : vector<8x64xf32>
    %402 = arith.divf %400, %401 : vector<8x64xf32>
    %403 = vector.extract_strided_slice %397 {offsets = [0, 32], sizes = [8, 16], strides = [1, 1]} : vector<8x64xf32> to vector<8x16xf32>
    %404 = math.tanh %403 : vector<8x16xf32>
    %405 = vector.extract_strided_slice %402 {offsets = [0, 16], sizes = [8, 16], strides = [1, 1]} : vector<8x64xf32> to vector<8x16xf32>
    %406 = arith.mulf %405, %389 : vector<8x16xf32>
    %407 = vector.extract_strided_slice %402 {offsets = [0, 0], sizes = [8, 16], strides = [1, 1]} : vector<8x64xf32> to vector<8x16xf32>
    %408 = arith.mulf %407, %404 : vector<8x16xf32>
    %409 = arith.addf %406, %408 : vector<8x16xf32>
    %410 = vector.extract_strided_slice %402 {offsets = [0, 48], sizes = [8, 16], strides = [1, 1]} : vector<8x64xf32> to vector<8x16xf32>
    %411 = math.tanh %409 : vector<8x16xf32>
    %412 = arith.mulf %410, %411 : vector<8x16xf32>
    %c16_143 = arith.constant 16 : index
    %c0_144 = arith.constant 0 : index
    %413 = vector.load %arg17[%c16_143, %c0_144] : memref<64x16xf32, #tpu.memory_space<vmem>>, vector<8x16xf32>
    tpu.vector_store %arg17[%c16_143, %c0_144], %412 {strides = array<i32>} : memref<64x16xf32, #tpu.memory_space<vmem>>, vector<8x16xf32>,
    %c24_145 = arith.constant 24 : index
    %c0_146 = arith.constant 0 : index
    %414 = vector.load %arg20[%c24_145, %c0_146] : memref<64x64xf32, #tpu.memory_space<vmem>>, vector<8x64xf32>
    %415 = arith.truncf %412 : vector<8x16xf32> to vector<8x16xbf16>
    %cst_147 = arith.constant dense<0.000000e+00> : vector<8x64xf32>
    %416 = tpu.matmul %415, %344, %cst_147 {dimension_numbers = #tpu.dot_dimension_numbers<[1], [0], [0], [1], [0, 0, 1, 1], [], []>} : vector<8x16xbf16>, vector<16x64xbf16>, vector<8x64xf32> -> vector<8x64xf32>
    %417 = arith.addf %414, %416 : vector<8x64xf32>
    %418 = arith.negf %417 : vector<8x64xf32>
    %419 = math.exp %418 : vector<8x64xf32>
    %cst_148 = arith.constant 1.000000e+00 : f32
    %420 = vector.broadcast %cst_148 : f32 to vector<8x64xf32>
    %421 = arith.addf %420, %419 : vector<8x64xf32>
    %422 = arith.divf %420, %421 : vector<8x64xf32>
    %423 = vector.extract_strided_slice %417 {offsets = [0, 32], sizes = [8, 16], strides = [1, 1]} : vector<8x64xf32> to vector<8x16xf32>
    %424 = math.tanh %423 : vector<8x16xf32>
    %425 = vector.extract_strided_slice %422 {offsets = [0, 16], sizes = [8, 16], strides = [1, 1]} : vector<8x64xf32> to vector<8x16xf32>
    %426 = arith.mulf %425, %409 : vector<8x16xf32>
    %427 = vector.extract_strided_slice %422 {offsets = [0, 0], sizes = [8, 16], strides = [1, 1]} : vector<8x64xf32> to vector<8x16xf32>
    %428 = arith.mulf %427, %424 : vector<8x16xf32>
    %429 = arith.addf %426, %428 : vector<8x16xf32>
    %430 = vector.extract_strided_slice %422 {offsets = [0, 48], sizes = [8, 16], strides = [1, 1]} : vector<8x64xf32> to vector<8x16xf32>
    %431 = math.tanh %429 : vector<8x16xf32>
    %432 = arith.mulf %430, %431 : vector<8x16xf32>
    %c24_149 = arith.constant 24 : index
    %c0_150 = arith.constant 0 : index
    %433 = vector.load %arg17[%c24_149, %c0_150] : memref<64x16xf32, #tpu.memory_space<vmem>>, vector<8x16xf32>
    tpu.vector_store %arg17[%c24_149, %c0_150], %432 {strides = array<i32>} : memref<64x16xf32, #tpu.memory_space<vmem>>, vector<8x16xf32>,
    %c32_151 = arith.constant 32 : index
    %c0_152 = arith.constant 0 : index
    %434 = vector.load %arg20[%c32_151, %c0_152] : memref<64x64xf32, #tpu.memory_space<vmem>>, vector<8x64xf32>
    %435 = arith.truncf %432 : vector<8x16xf32> to vector<8x16xbf16>
    %cst_153 = arith.constant dense<0.000000e+00> : vector<8x64xf32>
    %436 = tpu.matmul %435, %344, %cst_153 {dimension_numbers = #tpu.dot_dimension_numbers<[1], [0], [0], [1], [0, 0, 1, 1], [], []>} : vector<8x16xbf16>, vector<16x64xbf16>, vector<8x64xf32> -> vector<8x64xf32>
    %437 = arith.addf %434, %436 : vector<8x64xf32>
    %438 = arith.negf %437 : vector<8x64xf32>
    %439 = math.exp %438 : vector<8x64xf32>
    %cst_154 = arith.constant 1.000000e+00 : f32
    %440 = vector.broadcast %cst_154 : f32 to vector<8x64xf32>
    %441 = arith.addf %440, %439 : vector<8x64xf32>
    %442 = arith.divf %440, %441 : vector<8x64xf32>
    %443 = vector.extract_strided_slice %437 {offsets = [0, 32], sizes = [8, 16], strides = [1, 1]} : vector<8x64xf32> to vector<8x16xf32>
    %444 = math.tanh %443 : vector<8x16xf32>
    %445 = vector.extract_strided_slice %442 {offsets = [0, 16], sizes = [8, 16], strides = [1, 1]} : vector<8x64xf32> to vector<8x16xf32>
    %446 = arith.mulf %445, %429 : vector<8x16xf32>
    %447 = vector.extract_strided_slice %442 {offsets = [0, 0], sizes = [8, 16], strides = [1, 1]} : vector<8x64xf32> to vector<8x16xf32>
    %448 = arith.mulf %447, %444 : vector<8x16xf32>
    %449 = arith.addf %446, %448 : vector<8x16xf32>
    %450 = vector.extract_strided_slice %442 {offsets = [0, 48], sizes = [8, 16], strides = [1, 1]} : vector<8x64xf32> to vector<8x16xf32>
    %451 = math.tanh %449 : vector<8x16xf32>
    %452 = arith.mulf %450, %451 : vector<8x16xf32>
    %c32_155 = arith.constant 32 : index
    %c0_156 = arith.constant 0 : index
    %453 = vector.load %arg17[%c32_155, %c0_156] : memref<64x16xf32, #tpu.memory_space<vmem>>, vector<8x16xf32>
    tpu.vector_store %arg17[%c32_155, %c0_156], %452 {strides = array<i32>} : memref<64x16xf32, #tpu.memory_space<vmem>>, vector<8x16xf32>,
    %c40_157 = arith.constant 40 : index
    %c0_158 = arith.constant 0 : index
    %454 = vector.load %arg20[%c40_157, %c0_158] : memref<64x64xf32, #tpu.memory_space<vmem>>, vector<8x64xf32>
    %455 = arith.truncf %452 : vector<8x16xf32> to vector<8x16xbf16>
    %cst_159 = arith.constant dense<0.000000e+00> : vector<8x64xf32>
    %456 = tpu.matmul %455, %344, %cst_159 {dimension_numbers = #tpu.dot_dimension_numbers<[1], [0], [0], [1], [0, 0, 1, 1], [], []>} : vector<8x16xbf16>, vector<16x64xbf16>, vector<8x64xf32> -> vector<8x64xf32>
    %457 = arith.addf %454, %456 : vector<8x64xf32>
    %458 = arith.negf %457 : vector<8x64xf32>
    %459 = math.exp %458 : vector<8x64xf32>
    %cst_160 = arith.constant 1.000000e+00 : f32
    %460 = vector.broadcast %cst_160 : f32 to vector<8x64xf32>
    %461 = arith.addf %460, %459 : vector<8x64xf32>
    %462 = arith.divf %460, %461 : vector<8x64xf32>
    %463 = vector.extract_strided_slice %457 {offsets = [0, 32], sizes = [8, 16], strides = [1, 1]} : vector<8x64xf32> to vector<8x16xf32>
    %464 = math.tanh %463 : vector<8x16xf32>
    %465 = vector.extract_strided_slice %462 {offsets = [0, 16], sizes = [8, 16], strides = [1, 1]} : vector<8x64xf32> to vector<8x16xf32>
    %466 = arith.mulf %465, %449 : vector<8x16xf32>
    %467 = vector.extract_strided_slice %462 {offsets = [0, 0], sizes = [8, 16], strides = [1, 1]} : vector<8x64xf32> to vector<8x16xf32>
    %468 = arith.mulf %467, %464 : vector<8x16xf32>
    %469 = arith.addf %466, %468 : vector<8x16xf32>
    %470 = vector.extract_strided_slice %462 {offsets = [0, 48], sizes = [8, 16], strides = [1, 1]} : vector<8x64xf32> to vector<8x16xf32>
    %471 = math.tanh %469 : vector<8x16xf32>
    %472 = arith.mulf %470, %471 : vector<8x16xf32>
    %c40_161 = arith.constant 40 : index
    %c0_162 = arith.constant 0 : index
    %473 = vector.load %arg17[%c40_161, %c0_162] : memref<64x16xf32, #tpu.memory_space<vmem>>, vector<8x16xf32>
    tpu.vector_store %arg17[%c40_161, %c0_162], %472 {strides = array<i32>} : memref<64x16xf32, #tpu.memory_space<vmem>>, vector<8x16xf32>,
    %c48_163 = arith.constant 48 : index
    %c0_164 = arith.constant 0 : index
    %474 = vector.load %arg20[%c48_163, %c0_164] : memref<64x64xf32, #tpu.memory_space<vmem>>, vector<8x64xf32>
    %475 = arith.truncf %472 : vector<8x16xf32> to vector<8x16xbf16>
    %cst_165 = arith.constant dense<0.000000e+00> : vector<8x64xf32>
    %476 = tpu.matmul %475, %344, %cst_165 {dimension_numbers = #tpu.dot_dimension_numbers<[1], [0], [0], [1], [0, 0, 1, 1], [], []>} : vector<8x16xbf16>, vector<16x64xbf16>, vector<8x64xf32> -> vector<8x64xf32>
    %477 = arith.addf %474, %476 : vector<8x64xf32>
    %478 = arith.negf %477 : vector<8x64xf32>
    %479 = math.exp %478 : vector<8x64xf32>
    %cst_166 = arith.constant 1.000000e+00 : f32
    %480 = vector.broadcast %cst_166 : f32 to vector<8x64xf32>
    %481 = arith.addf %480, %479 : vector<8x64xf32>
    %482 = arith.divf %480, %481 : vector<8x64xf32>
    %483 = vector.extract_strided_slice %477 {offsets = [0, 32], sizes = [8, 16], strides = [1, 1]} : vector<8x64xf32> to vector<8x16xf32>
    %484 = math.tanh %483 : vector<8x16xf32>
    %485 = vector.extract_strided_slice %482 {offsets = [0, 16], sizes = [8, 16], strides = [1, 1]} : vector<8x64xf32> to vector<8x16xf32>
    %486 = arith.mulf %485, %469 : vector<8x16xf32>
    %487 = vector.extract_strided_slice %482 {offsets = [0, 0], sizes = [8, 16], strides = [1, 1]} : vector<8x64xf32> to vector<8x16xf32>
    %488 = arith.mulf %487, %484 : vector<8x16xf32>
    %489 = arith.addf %486, %488 : vector<8x16xf32>
    %490 = vector.extract_strided_slice %482 {offsets = [0, 48], sizes = [8, 16], strides = [1, 1]} : vector<8x64xf32> to vector<8x16xf32>
    %491 = math.tanh %489 : vector<8x16xf32>
    %492 = arith.mulf %490, %491 : vector<8x16xf32>
    %c48_167 = arith.constant 48 : index
    %c0_168 = arith.constant 0 : index
    %493 = vector.load %arg17[%c48_167, %c0_168] : memref<64x16xf32, #tpu.memory_space<vmem>>, vector<8x16xf32>
    tpu.vector_store %arg17[%c48_167, %c0_168], %492 {strides = array<i32>} : memref<64x16xf32, #tpu.memory_space<vmem>>, vector<8x16xf32>,
    %c56_169 = arith.constant 56 : index
    %c0_170 = arith.constant 0 : index
    %494 = vector.load %arg20[%c56_169, %c0_170] : memref<64x64xf32, #tpu.memory_space<vmem>>, vector<8x64xf32>
    %495 = arith.truncf %492 : vector<8x16xf32> to vector<8x16xbf16>
    %cst_171 = arith.constant dense<0.000000e+00> : vector<8x64xf32>
    %496 = tpu.matmul %495, %344, %cst_171 {dimension_numbers = #tpu.dot_dimension_numbers<[1], [0], [0], [1], [0, 0, 1, 1], [], []>} : vector<8x16xbf16>, vector<16x64xbf16>, vector<8x64xf32> -> vector<8x64xf32>
    %497 = arith.addf %494, %496 : vector<8x64xf32>
    %498 = arith.negf %497 : vector<8x64xf32>
    %499 = math.exp %498 : vector<8x64xf32>
    %cst_172 = arith.constant 1.000000e+00 : f32
    %500 = vector.broadcast %cst_172 : f32 to vector<8x64xf32>
    %501 = arith.addf %500, %499 : vector<8x64xf32>
    %502 = arith.divf %500, %501 : vector<8x64xf32>
    %503 = vector.extract_strided_slice %497 {offsets = [0, 32], sizes = [8, 16], strides = [1, 1]} : vector<8x64xf32> to vector<8x16xf32>
    %504 = math.tanh %503 : vector<8x16xf32>
    %505 = vector.extract_strided_slice %502 {offsets = [0, 16], sizes = [8, 16], strides = [1, 1]} : vector<8x64xf32> to vector<8x16xf32>
    %506 = arith.mulf %505, %489 : vector<8x16xf32>
    %507 = vector.extract_strided_slice %502 {offsets = [0, 0], sizes = [8, 16], strides = [1, 1]} : vector<8x64xf32> to vector<8x16xf32>
    %508 = arith.mulf %507, %504 : vector<8x16xf32>
    %509 = arith.addf %506, %508 : vector<8x16xf32>
    %510 = vector.extract_strided_slice %502 {offsets = [0, 48], sizes = [8, 16], strides = [1, 1]} : vector<8x64xf32> to vector<8x16xf32>
    %511 = math.tanh %509 : vector<8x16xf32>
    %512 = arith.mulf %510, %511 : vector<8x16xf32>
    %c56_173 = arith.constant 56 : index
    %c0_174 = arith.constant 0 : index
    %513 = vector.load %arg17[%c56_173, %c0_174] : memref<64x16xf32, #tpu.memory_space<vmem>>, vector<8x16xf32>
    tpu.vector_store %arg17[%c56_173, %c0_174], %512 {strides = array<i32>} : memref<64x16xf32, #tpu.memory_space<vmem>>, vector<8x16xf32>,
    %c0_175 = arith.constant 0 : index
    %c0_176 = arith.constant 0 : index
    %514 = vector.load %arg11[%c0_175, %c0_176] : memref<16x64xbf16, #tpu.memory_space<vmem>>, vector<16x64xbf16>
    %c0_177 = arith.constant 0 : index
    %c0_178 = arith.constant 0 : index
    %515 = vector.load %arg12[%c0_177, %c0_178] : memref<16x64xbf16, #tpu.memory_space<vmem>>, vector<16x64xbf16>
    %c0_179 = arith.constant 0 : index
    %c0_180 = arith.constant 0 : index
    %516 = vector.load %arg13[%c0_179, %c0_180] : memref<1x64xf32, #tpu.memory_space<vmem>>, vector<1x64xf32>
    %c0_181 = arith.constant 0 : index
    %c0_182 = arith.constant 0 : index
    %517 = vector.load %arg17[%c0_181, %c0_182] : memref<64x16xf32, #tpu.memory_space<vmem>>, vector<64x16xf32>
    %518 = arith.truncf %517 : vector<64x16xf32> to vector<64x16xbf16>
    %cst_183 = arith.constant dense<0.000000e+00> : vector<64x64xf32>
    %519 = tpu.matmul %518, %514, %cst_183 {dimension_numbers = #tpu.dot_dimension_numbers<[1], [0], [0], [1], [0, 0, 1, 1], [], []>} : vector<64x16xbf16>, vector<16x64xbf16>, vector<64x64xf32> -> vector<64x64xf32>
    %520 = vector.broadcast %516 : vector<1x64xf32> to vector<64x64xf32>
    %521 = arith.addf %519, %520 : vector<64x64xf32>
    %c0_184 = arith.constant 0 : index
    %c0_185 = arith.constant 0 : index
    %522 = vector.load %arg21[%c0_184, %c0_185] : memref<64x64xf32, #tpu.memory_space<vmem>>, vector<64x64xf32>
    tpu.vector_store %arg21[%c0_184, %c0_185], %521 {strides = array<i32>} : memref<64x64xf32, #tpu.memory_space<vmem>>, vector<64x64xf32>,
    %cst_186 = arith.constant 0.000000e+00 : f32
    %523 = vector.broadcast %cst_186 : f32 to vector<8x16xf32>
    %cst_187 = arith.constant 0.000000e+00 : f32
    %524 = vector.broadcast %cst_187 : f32 to vector<8x16xf32>
    %c0_188 = arith.constant 0 : index
    %c0_189 = arith.constant 0 : index
    %525 = vector.load %arg21[%c0_188, %c0_189] : memref<64x64xf32, #tpu.memory_space<vmem>>, vector<8x64xf32>
    %526 = arith.truncf %523 : vector<8x16xf32> to vector<8x16xbf16>
    %cst_190 = arith.constant dense<0.000000e+00> : vector<8x64xf32>
    %527 = tpu.matmul %526, %515, %cst_190 {dimension_numbers = #tpu.dot_dimension_numbers<[1], [0], [0], [1], [0, 0, 1, 1], [], []>} : vector<8x16xbf16>, vector<16x64xbf16>, vector<8x64xf32> -> vector<8x64xf32>
    %528 = arith.addf %525, %527 : vector<8x64xf32>
    %529 = arith.negf %528 : vector<8x64xf32>
    %530 = math.exp %529 : vector<8x64xf32>
    %cst_191 = arith.constant 1.000000e+00 : f32
    %531 = vector.broadcast %cst_191 : f32 to vector<8x64xf32>
    %532 = arith.addf %531, %530 : vector<8x64xf32>
    %533 = arith.divf %531, %532 : vector<8x64xf32>
    %534 = vector.extract_strided_slice %528 {offsets = [0, 32], sizes = [8, 16], strides = [1, 1]} : vector<8x64xf32> to vector<8x16xf32>
    %535 = math.tanh %534 : vector<8x16xf32>
    %536 = vector.extract_strided_slice %533 {offsets = [0, 16], sizes = [8, 16], strides = [1, 1]} : vector<8x64xf32> to vector<8x16xf32>
    %537 = arith.mulf %536, %524 : vector<8x16xf32>
    %538 = vector.extract_strided_slice %533 {offsets = [0, 0], sizes = [8, 16], strides = [1, 1]} : vector<8x64xf32> to vector<8x16xf32>
    %539 = arith.mulf %538, %535 : vector<8x16xf32>
    %540 = arith.addf %537, %539 : vector<8x16xf32>
    %541 = vector.extract_strided_slice %533 {offsets = [0, 48], sizes = [8, 16], strides = [1, 1]} : vector<8x64xf32> to vector<8x16xf32>
    %542 = math.tanh %540 : vector<8x16xf32>
    %543 = arith.mulf %541, %542 : vector<8x16xf32>
    %c0_192 = arith.constant 0 : index
    %c0_193 = arith.constant 0 : index
    %c0_194 = arith.constant 0 : index
    %544 = vector.load %arg14[%c0_192, %c0_193, %c0_194] : memref<1x8x128xf32, #tpu.memory_space<vmem>>, vector<1x8x16xf32>
    %545 = vector.shape_cast %544 : vector<1x8x16xf32> to vector<8x16xf32>
    %546 = vector.shape_cast %543 : vector<8x16xf32> to vector<1x8x16xf32>
    tpu.vector_store %arg14[%c0_192, %c0_193, %c0_194], %546 {strides = array<i32>} : memref<1x8x128xf32, #tpu.memory_space<vmem>>, vector<1x8x16xf32>,
    %c8_195 = arith.constant 8 : index
    %c0_196 = arith.constant 0 : index
    %547 = vector.load %arg21[%c8_195, %c0_196] : memref<64x64xf32, #tpu.memory_space<vmem>>, vector<8x64xf32>
    %548 = arith.truncf %543 : vector<8x16xf32> to vector<8x16xbf16>
    %cst_197 = arith.constant dense<0.000000e+00> : vector<8x64xf32>
    %549 = tpu.matmul %548, %515, %cst_197 {dimension_numbers = #tpu.dot_dimension_numbers<[1], [0], [0], [1], [0, 0, 1, 1], [], []>} : vector<8x16xbf16>, vector<16x64xbf16>, vector<8x64xf32> -> vector<8x64xf32>
    %550 = arith.addf %547, %549 : vector<8x64xf32>
    %551 = arith.negf %550 : vector<8x64xf32>
    %552 = math.exp %551 : vector<8x64xf32>
    %cst_198 = arith.constant 1.000000e+00 : f32
    %553 = vector.broadcast %cst_198 : f32 to vector<8x64xf32>
    %554 = arith.addf %553, %552 : vector<8x64xf32>
    %555 = arith.divf %553, %554 : vector<8x64xf32>
    %556 = vector.extract_strided_slice %550 {offsets = [0, 32], sizes = [8, 16], strides = [1, 1]} : vector<8x64xf32> to vector<8x16xf32>
    %557 = math.tanh %556 : vector<8x16xf32>
    %558 = vector.extract_strided_slice %555 {offsets = [0, 16], sizes = [8, 16], strides = [1, 1]} : vector<8x64xf32> to vector<8x16xf32>
    %559 = arith.mulf %558, %540 : vector<8x16xf32>
    %560 = vector.extract_strided_slice %555 {offsets = [0, 0], sizes = [8, 16], strides = [1, 1]} : vector<8x64xf32> to vector<8x16xf32>
    %561 = arith.mulf %560, %557 : vector<8x16xf32>
    %562 = arith.addf %559, %561 : vector<8x16xf32>
    %563 = vector.extract_strided_slice %555 {offsets = [0, 48], sizes = [8, 16], strides = [1, 1]} : vector<8x64xf32> to vector<8x16xf32>
    %564 = math.tanh %562 : vector<8x16xf32>
    %565 = arith.mulf %563, %564 : vector<8x16xf32>
    %c0_199 = arith.constant 0 : index
    %c0_200 = arith.constant 0 : index
    %c16_201 = arith.constant 16 : index
    %566 = vector.load %arg14[%c0_199, %c0_200, %c16_201] : memref<1x8x128xf32, #tpu.memory_space<vmem>>, vector<1x8x16xf32>
    %567 = vector.shape_cast %566 : vector<1x8x16xf32> to vector<8x16xf32>
    %568 = vector.shape_cast %565 : vector<8x16xf32> to vector<1x8x16xf32>
    tpu.vector_store %arg14[%c0_199, %c0_200, %c16_201], %568 {strides = array<i32>} : memref<1x8x128xf32, #tpu.memory_space<vmem>>, vector<1x8x16xf32>,
    %c16_202 = arith.constant 16 : index
    %c0_203 = arith.constant 0 : index
    %569 = vector.load %arg21[%c16_202, %c0_203] : memref<64x64xf32, #tpu.memory_space<vmem>>, vector<8x64xf32>
    %570 = arith.truncf %565 : vector<8x16xf32> to vector<8x16xbf16>
    %cst_204 = arith.constant dense<0.000000e+00> : vector<8x64xf32>
    %571 = tpu.matmul %570, %515, %cst_204 {dimension_numbers = #tpu.dot_dimension_numbers<[1], [0], [0], [1], [0, 0, 1, 1], [], []>} : vector<8x16xbf16>, vector<16x64xbf16>, vector<8x64xf32> -> vector<8x64xf32>
    %572 = arith.addf %569, %571 : vector<8x64xf32>
    %573 = arith.negf %572 : vector<8x64xf32>
    %574 = math.exp %573 : vector<8x64xf32>
    %cst_205 = arith.constant 1.000000e+00 : f32
    %575 = vector.broadcast %cst_205 : f32 to vector<8x64xf32>
    %576 = arith.addf %575, %574 : vector<8x64xf32>
    %577 = arith.divf %575, %576 : vector<8x64xf32>
    %578 = vector.extract_strided_slice %572 {offsets = [0, 32], sizes = [8, 16], strides = [1, 1]} : vector<8x64xf32> to vector<8x16xf32>
    %579 = math.tanh %578 : vector<8x16xf32>
    %580 = vector.extract_strided_slice %577 {offsets = [0, 16], sizes = [8, 16], strides = [1, 1]} : vector<8x64xf32> to vector<8x16xf32>
    %581 = arith.mulf %580, %562 : vector<8x16xf32>
    %582 = vector.extract_strided_slice %577 {offsets = [0, 0], sizes = [8, 16], strides = [1, 1]} : vector<8x64xf32> to vector<8x16xf32>
    %583 = arith.mulf %582, %579 : vector<8x16xf32>
    %584 = arith.addf %581, %583 : vector<8x16xf32>
    %585 = vector.extract_strided_slice %577 {offsets = [0, 48], sizes = [8, 16], strides = [1, 1]} : vector<8x64xf32> to vector<8x16xf32>
    %586 = math.tanh %584 : vector<8x16xf32>
    %587 = arith.mulf %585, %586 : vector<8x16xf32>
    %c0_206 = arith.constant 0 : index
    %c0_207 = arith.constant 0 : index
    %c32_208 = arith.constant 32 : index
    %588 = vector.load %arg14[%c0_206, %c0_207, %c32_208] : memref<1x8x128xf32, #tpu.memory_space<vmem>>, vector<1x8x16xf32>
    %589 = vector.shape_cast %588 : vector<1x8x16xf32> to vector<8x16xf32>
    %590 = vector.shape_cast %587 : vector<8x16xf32> to vector<1x8x16xf32>
    tpu.vector_store %arg14[%c0_206, %c0_207, %c32_208], %590 {strides = array<i32>} : memref<1x8x128xf32, #tpu.memory_space<vmem>>, vector<1x8x16xf32>,
    %c24_209 = arith.constant 24 : index
    %c0_210 = arith.constant 0 : index
    %591 = vector.load %arg21[%c24_209, %c0_210] : memref<64x64xf32, #tpu.memory_space<vmem>>, vector<8x64xf32>
    %592 = arith.truncf %587 : vector<8x16xf32> to vector<8x16xbf16>
    %cst_211 = arith.constant dense<0.000000e+00> : vector<8x64xf32>
    %593 = tpu.matmul %592, %515, %cst_211 {dimension_numbers = #tpu.dot_dimension_numbers<[1], [0], [0], [1], [0, 0, 1, 1], [], []>} : vector<8x16xbf16>, vector<16x64xbf16>, vector<8x64xf32> -> vector<8x64xf32>
    %594 = arith.addf %591, %593 : vector<8x64xf32>
    %595 = arith.negf %594 : vector<8x64xf32>
    %596 = math.exp %595 : vector<8x64xf32>
    %cst_212 = arith.constant 1.000000e+00 : f32
    %597 = vector.broadcast %cst_212 : f32 to vector<8x64xf32>
    %598 = arith.addf %597, %596 : vector<8x64xf32>
    %599 = arith.divf %597, %598 : vector<8x64xf32>
    %600 = vector.extract_strided_slice %594 {offsets = [0, 32], sizes = [8, 16], strides = [1, 1]} : vector<8x64xf32> to vector<8x16xf32>
    %601 = math.tanh %600 : vector<8x16xf32>
    %602 = vector.extract_strided_slice %599 {offsets = [0, 16], sizes = [8, 16], strides = [1, 1]} : vector<8x64xf32> to vector<8x16xf32>
    %603 = arith.mulf %602, %584 : vector<8x16xf32>
    %604 = vector.extract_strided_slice %599 {offsets = [0, 0], sizes = [8, 16], strides = [1, 1]} : vector<8x64xf32> to vector<8x16xf32>
    %605 = arith.mulf %604, %601 : vector<8x16xf32>
    %606 = arith.addf %603, %605 : vector<8x16xf32>
    %607 = vector.extract_strided_slice %599 {offsets = [0, 48], sizes = [8, 16], strides = [1, 1]} : vector<8x64xf32> to vector<8x16xf32>
    %608 = math.tanh %606 : vector<8x16xf32>
    %609 = arith.mulf %607, %608 : vector<8x16xf32>
    %c0_213 = arith.constant 0 : index
    %c0_214 = arith.constant 0 : index
    %c48_215 = arith.constant 48 : index
    %610 = vector.load %arg14[%c0_213, %c0_214, %c48_215] : memref<1x8x128xf32, #tpu.memory_space<vmem>>, vector<1x8x16xf32>
    %611 = vector.shape_cast %610 : vector<1x8x16xf32> to vector<8x16xf32>
    %612 = vector.shape_cast %609 : vector<8x16xf32> to vector<1x8x16xf32>
    tpu.vector_store %arg14[%c0_213, %c0_214, %c48_215], %612 {strides = array<i32>} : memref<1x8x128xf32, #tpu.memory_space<vmem>>, vector<1x8x16xf32>,
    %c32_216 = arith.constant 32 : index
    %c0_217 = arith.constant 0 : index
    %613 = vector.load %arg21[%c32_216, %c0_217] : memref<64x64xf32, #tpu.memory_space<vmem>>, vector<8x64xf32>
    %614 = arith.truncf %609 : vector<8x16xf32> to vector<8x16xbf16>
    %cst_218 = arith.constant dense<0.000000e+00> : vector<8x64xf32>
    %615 = tpu.matmul %614, %515, %cst_218 {dimension_numbers = #tpu.dot_dimension_numbers<[1], [0], [0], [1], [0, 0, 1, 1], [], []>} : vector<8x16xbf16>, vector<16x64xbf16>, vector<8x64xf32> -> vector<8x64xf32>
    %616 = arith.addf %613, %615 : vector<8x64xf32>
    %617 = arith.negf %616 : vector<8x64xf32>
    %618 = math.exp %617 : vector<8x64xf32>
    %cst_219 = arith.constant 1.000000e+00 : f32
    %619 = vector.broadcast %cst_219 : f32 to vector<8x64xf32>
    %620 = arith.addf %619, %618 : vector<8x64xf32>
    %621 = arith.divf %619, %620 : vector<8x64xf32>
    %622 = vector.extract_strided_slice %616 {offsets = [0, 32], sizes = [8, 16], strides = [1, 1]} : vector<8x64xf32> to vector<8x16xf32>
    %623 = math.tanh %622 : vector<8x16xf32>
    %624 = vector.extract_strided_slice %621 {offsets = [0, 16], sizes = [8, 16], strides = [1, 1]} : vector<8x64xf32> to vector<8x16xf32>
    %625 = arith.mulf %624, %606 : vector<8x16xf32>
    %626 = vector.extract_strided_slice %621 {offsets = [0, 0], sizes = [8, 16], strides = [1, 1]} : vector<8x64xf32> to vector<8x16xf32>
    %627 = arith.mulf %626, %623 : vector<8x16xf32>
    %628 = arith.addf %625, %627 : vector<8x16xf32>
    %629 = vector.extract_strided_slice %621 {offsets = [0, 48], sizes = [8, 16], strides = [1, 1]} : vector<8x64xf32> to vector<8x16xf32>
    %630 = math.tanh %628 : vector<8x16xf32>
    %631 = arith.mulf %629, %630 : vector<8x16xf32>
    %c0_220 = arith.constant 0 : index
    %c0_221 = arith.constant 0 : index
    %c64 = arith.constant 64 : index
    %632 = vector.load %arg14[%c0_220, %c0_221, %c64] : memref<1x8x128xf32, #tpu.memory_space<vmem>>, vector<1x8x16xf32>
    %633 = vector.shape_cast %632 : vector<1x8x16xf32> to vector<8x16xf32>
    %634 = vector.shape_cast %631 : vector<8x16xf32> to vector<1x8x16xf32>
    tpu.vector_store %arg14[%c0_220, %c0_221, %c64], %634 {strides = array<i32>} : memref<1x8x128xf32, #tpu.memory_space<vmem>>, vector<1x8x16xf32>,
    %c40_222 = arith.constant 40 : index
    %c0_223 = arith.constant 0 : index
    %635 = vector.load %arg21[%c40_222, %c0_223] : memref<64x64xf32, #tpu.memory_space<vmem>>, vector<8x64xf32>
    %636 = arith.truncf %631 : vector<8x16xf32> to vector<8x16xbf16>
    %cst_224 = arith.constant dense<0.000000e+00> : vector<8x64xf32>
    %637 = tpu.matmul %636, %515, %cst_224 {dimension_numbers = #tpu.dot_dimension_numbers<[1], [0], [0], [1], [0, 0, 1, 1], [], []>} : vector<8x16xbf16>, vector<16x64xbf16>, vector<8x64xf32> -> vector<8x64xf32>
    %638 = arith.addf %635, %637 : vector<8x64xf32>
    %639 = arith.negf %638 : vector<8x64xf32>
    %640 = math.exp %639 : vector<8x64xf32>
    %cst_225 = arith.constant 1.000000e+00 : f32
    %641 = vector.broadcast %cst_225 : f32 to vector<8x64xf32>
    %642 = arith.addf %641, %640 : vector<8x64xf32>
    %643 = arith.divf %641, %642 : vector<8x64xf32>
    %644 = vector.extract_strided_slice %638 {offsets = [0, 32], sizes = [8, 16], strides = [1, 1]} : vector<8x64xf32> to vector<8x16xf32>
    %645 = math.tanh %644 : vector<8x16xf32>
    %646 = vector.extract_strided_slice %643 {offsets = [0, 16], sizes = [8, 16], strides = [1, 1]} : vector<8x64xf32> to vector<8x16xf32>
    %647 = arith.mulf %646, %628 : vector<8x16xf32>
    %648 = vector.extract_strided_slice %643 {offsets = [0, 0], sizes = [8, 16], strides = [1, 1]} : vector<8x64xf32> to vector<8x16xf32>
    %649 = arith.mulf %648, %645 : vector<8x16xf32>
    %650 = arith.addf %647, %649 : vector<8x16xf32>
    %651 = vector.extract_strided_slice %643 {offsets = [0, 48], sizes = [8, 16], strides = [1, 1]} : vector<8x64xf32> to vector<8x16xf32>
    %652 = math.tanh %650 : vector<8x16xf32>
    %653 = arith.mulf %651, %652 : vector<8x16xf32>
    %c0_226 = arith.constant 0 : index
    %c0_227 = arith.constant 0 : index
    %c80 = arith.constant 80 : index
    %654 = vector.load %arg14[%c0_226, %c0_227, %c80] : memref<1x8x128xf32, #tpu.memory_space<vmem>>, vector<1x8x16xf32>
    %655 = vector.shape_cast %654 : vector<1x8x16xf32> to vector<8x16xf32>
    %656 = vector.shape_cast %653 : vector<8x16xf32> to vector<1x8x16xf32>
    tpu.vector_store %arg14[%c0_226, %c0_227, %c80], %656 {strides = array<i32>} : memref<1x8x128xf32, #tpu.memory_space<vmem>>, vector<1x8x16xf32>,
    %c48_228 = arith.constant 48 : index
    %c0_229 = arith.constant 0 : index
    %657 = vector.load %arg21[%c48_228, %c0_229] : memref<64x64xf32, #tpu.memory_space<vmem>>, vector<8x64xf32>
    %658 = arith.truncf %653 : vector<8x16xf32> to vector<8x16xbf16>
    %cst_230 = arith.constant dense<0.000000e+00> : vector<8x64xf32>
    %659 = tpu.matmul %658, %515, %cst_230 {dimension_numbers = #tpu.dot_dimension_numbers<[1], [0], [0], [1], [0, 0, 1, 1], [], []>} : vector<8x16xbf16>, vector<16x64xbf16>, vector<8x64xf32> -> vector<8x64xf32>
    %660 = arith.addf %657, %659 : vector<8x64xf32>
    %661 = arith.negf %660 : vector<8x64xf32>
    %662 = math.exp %661 : vector<8x64xf32>
    %cst_231 = arith.constant 1.000000e+00 : f32
    %663 = vector.broadcast %cst_231 : f32 to vector<8x64xf32>
    %664 = arith.addf %663, %662 : vector<8x64xf32>
    %665 = arith.divf %663, %664 : vector<8x64xf32>
    %666 = vector.extract_strided_slice %660 {offsets = [0, 32], sizes = [8, 16], strides = [1, 1]} : vector<8x64xf32> to vector<8x16xf32>
    %667 = math.tanh %666 : vector<8x16xf32>
    %668 = vector.extract_strided_slice %665 {offsets = [0, 16], sizes = [8, 16], strides = [1, 1]} : vector<8x64xf32> to vector<8x16xf32>
    %669 = arith.mulf %668, %650 : vector<8x16xf32>
    %670 = vector.extract_strided_slice %665 {offsets = [0, 0], sizes = [8, 16], strides = [1, 1]} : vector<8x64xf32> to vector<8x16xf32>
    %671 = arith.mulf %670, %667 : vector<8x16xf32>
    %672 = arith.addf %669, %671 : vector<8x16xf32>
    %673 = vector.extract_strided_slice %665 {offsets = [0, 48], sizes = [8, 16], strides = [1, 1]} : vector<8x64xf32> to vector<8x16xf32>
    %674 = math.tanh %672 : vector<8x16xf32>
    %675 = arith.mulf %673, %674 : vector<8x16xf32>
    %c0_232 = arith.constant 0 : index
    %c0_233 = arith.constant 0 : index
    %c96 = arith.constant 96 : index
    %676 = vector.load %arg14[%c0_232, %c0_233, %c96] : memref<1x8x128xf32, #tpu.memory_space<vmem>>, vector<1x8x16xf32>
    %677 = vector.shape_cast %676 : vector<1x8x16xf32> to vector<8x16xf32>
    %678 = vector.shape_cast %675 : vector<8x16xf32> to vector<1x8x16xf32>
    tpu.vector_store %arg14[%c0_232, %c0_233, %c96], %678 {strides = array<i32>} : memref<1x8x128xf32, #tpu.memory_space<vmem>>, vector<1x8x16xf32>,
    %c56_234 = arith.constant 56 : index
    %c0_235 = arith.constant 0 : index
    %679 = vector.load %arg21[%c56_234, %c0_235] : memref<64x64xf32, #tpu.memory_space<vmem>>, vector<8x64xf32>
    %680 = arith.truncf %675 : vector<8x16xf32> to vector<8x16xbf16>
    %cst_236 = arith.constant dense<0.000000e+00> : vector<8x64xf32>
    %681 = tpu.matmul %680, %515, %cst_236 {dimension_numbers = #tpu.dot_dimension_numbers<[1], [0], [0], [1], [0, 0, 1, 1], [], []>} : vector<8x16xbf16>, vector<16x64xbf16>, vector<8x64xf32> -> vector<8x64xf32>
    %682 = arith.addf %679, %681 : vector<8x64xf32>
    %683 = arith.negf %682 : vector<8x64xf32>
    %684 = math.exp %683 : vector<8x64xf32>
    %cst_237 = arith.constant 1.000000e+00 : f32
    %685 = vector.broadcast %cst_237 : f32 to vector<8x64xf32>
    %686 = arith.addf %685, %684 : vector<8x64xf32>
    %687 = arith.divf %685, %686 : vector<8x64xf32>
    %688 = vector.extract_strided_slice %682 {offsets = [0, 32], sizes = [8, 16], strides = [1, 1]} : vector<8x64xf32> to vector<8x16xf32>
    %689 = math.tanh %688 : vector<8x16xf32>
    %690 = vector.extract_strided_slice %687 {offsets = [0, 16], sizes = [8, 16], strides = [1, 1]} : vector<8x64xf32> to vector<8x16xf32>
    %691 = arith.mulf %690, %672 : vector<8x16xf32>
    %692 = vector.extract_strided_slice %687 {offsets = [0, 0], sizes = [8, 16], strides = [1, 1]} : vector<8x64xf32> to vector<8x16xf32>
    %693 = arith.mulf %692, %689 : vector<8x16xf32>
    %694 = arith.addf %691, %693 : vector<8x16xf32>
    %695 = vector.extract_strided_slice %687 {offsets = [0, 48], sizes = [8, 16], strides = [1, 1]} : vector<8x64xf32> to vector<8x16xf32>
    %696 = math.tanh %694 : vector<8x16xf32>
    %697 = arith.mulf %695, %696 : vector<8x16xf32>
    %c0_238 = arith.constant 0 : index
    %c0_239 = arith.constant 0 : index
    %c112 = arith.constant 112 : index
    %698 = vector.load %arg14[%c0_238, %c0_239, %c112] : memref<1x8x128xf32, #tpu.memory_space<vmem>>, vector<1x8x16xf32>
    %699 = vector.shape_cast %698 : vector<1x8x16xf32> to vector<8x16xf32>
    %700 = vector.shape_cast %697 : vector<8x16xf32> to vector<1x8x16xf32>
    tpu.vector_store %arg14[%c0_238, %c0_239, %c112], %700 {strides = array<i32>} : memref<1x8x128xf32, #tpu.memory_space<vmem>>, vector<1x8x16xf32>,
    return
  }
  func.func @transform_0(%arg0: i32) -> (i32, i32, i32) {
    %c0_i32 = arith.constant 0 : i32
    %c0_i32_0 = arith.constant 0 : i32
    %c0_i32_1 = arith.constant 0 : i32
    return %arg0, %c0_i32, %c0_i32_0 : i32, i32, i32
  }
  func.func @transform_1(%arg0: i32) -> (i32, i32) {
    %c0_i32 = arith.constant 0 : i32
    %c0_i32_0 = arith.constant 0 : i32
    %c0_i32_1 = arith.constant 0 : i32
    return %c0_i32, %c0_i32_0 : i32, i32
  }
  func.func @transform_2(%arg0: i32) -> (i32, i32) {
    %c0_i32 = arith.constant 0 : i32
    %c0_i32_0 = arith.constant 0 : i32
    %c0_i32_1 = arith.constant 0 : i32
    return %c0_i32, %c0_i32_0 : i32, i32
  }
  func.func @transform_3(%arg0: i32) -> (i32, i32) {
    %c0_i32 = arith.constant 0 : i32
    %c0_i32_0 = arith.constant 0 : i32
    %c0_i32_1 = arith.constant 0 : i32
    return %c0_i32, %c0_i32_0 : i32, i32
  }
  func.func @transform_4(%arg0: i32) -> (i32, i32) {
    %c0_i32 = arith.constant 0 : i32
    %c0_i32_0 = arith.constant 0 : i32
    %c0_i32_1 = arith.constant 0 : i32
    return %c0_i32, %c0_i32_0 : i32, i32
  }
  func.func @transform_5(%arg0: i32) -> (i32, i32) {
    %c0_i32 = arith.constant 0 : i32
    %c0_i32_0 = arith.constant 0 : i32
    %c0_i32_1 = arith.constant 0 : i32
    return %c0_i32, %c0_i32_0 : i32, i32
  }
  func.func @transform_6(%arg0: i32) -> (i32, i32) {
    %c0_i32 = arith.constant 0 : i32
    %c0_i32_0 = arith.constant 0 : i32
    %c0_i32_1 = arith.constant 0 : i32
    return %c0_i32, %c0_i32_0 : i32, i32
  }
  func.func @transform_7(%arg0: i32) -> (i32, i32) {
    %c0_i32 = arith.constant 0 : i32
    %c0_i32_0 = arith.constant 0 : i32
    %c0_i32_1 = arith.constant 0 : i32
    return %c0_i32, %c0_i32_0 : i32, i32
  }
  func.func @transform_8(%arg0: i32) -> (i32, i32) {
    %c0_i32 = arith.constant 0 : i32
    %c0_i32_0 = arith.constant 0 : i32
    %c0_i32_1 = arith.constant 0 : i32
    return %c0_i32, %c0_i32_0 : i32, i32
  }
  func.func @transform_9(%arg0: i32) -> (i32, i32) {
    %c0_i32 = arith.constant 0 : i32
    %c0_i32_0 = arith.constant 0 : i32
    %c0_i32_1 = arith.constant 0 : i32
    return %c0_i32, %c0_i32_0 : i32, i32
  }
  func.func @transform_10(%arg0: i32) -> (i32, i32) {
    %c0_i32 = arith.constant 0 : i32
    %c0_i32_0 = arith.constant 0 : i32
    %c0_i32_1 = arith.constant 0 : i32
    return %c0_i32, %c0_i32_0 : i32, i32
  }
  func.func @transform_11(%arg0: i32) -> (i32, i32) {
    %c0_i32 = arith.constant 0 : i32
    %c0_i32_0 = arith.constant 0 : i32
    %c0_i32_1 = arith.constant 0 : i32
    return %c0_i32, %c0_i32_0 : i32, i32
  }
  func.func @transform_12(%arg0: i32) -> (i32, i32) {
    %c0_i32 = arith.constant 0 : i32
    %c0_i32_0 = arith.constant 0 : i32
    %c0_i32_1 = arith.constant 0 : i32
    return %c0_i32, %c0_i32_0 : i32, i32
  }
  func.func @transform_13(%arg0: i32) -> (i32, i32, i32) {
    %c0_i32 = arith.constant 0 : i32
    %c0_i32_0 = arith.constant 0 : i32
    %c0_i32_1 = arith.constant 0 : i32
    return %arg0, %c0_i32, %c0_i32_0 : i32, i32, i32
  }
}

</mosaic_0001>

<llo_original>
// kernel: lstm_autoencoder_forward.1
$region0: #{lstm_autoencoder_forward.1}
  #allocation0 [shape = 'u32[]', space=smem, size = 0x4, offset = 0x4, fixed_abs, tag = 'smem constant byte address 0x4 - core index']
  #allocation1 [shape = 'u32[144,128]{1,0:T(1,128)}', space=vmem, size = 0x12000, scoped, tag = 'internal scratch']
  #allocation2 [shape = 'f32[64,32]{1,0:T(8,128)}', space=vmem, size = 0x8000, scoped, tag = 'scratch operand']
  #allocation3 [shape = 'f32[64,32]{1,0:T(8,128)}', space=vmem, size = 0x8000, scoped, tag = 'scratch operand']
  #allocation4 [shape = 'f32[64,16]{1,0:T(8,128)}', space=vmem, size = 0x8000, scoped, tag = 'scratch operand']
  #allocation5 [shape = 'f32[64,128]{1,0:T(8,128)}', space=vmem, size = 0x8000, scoped, tag = 'scratch operand']
  #allocation6 [shape = 'f32[64,128]{1,0:T(8,128)}', space=vmem, size = 0x8000, scoped, tag = 'scratch operand']
  #allocation7 [shape = 'f32[64,64]{1,0:T(8,128)}', space=vmem, size = 0x8000, scoped, tag = 'scratch operand']
  #allocation8 [shape = 'f32[64,64]{1,0:T(8,128)}', space=vmem, size = 0x8000, scoped, tag = 'scratch operand']
  %s0 = inlined_call_operand.vmem [shape: f32[1,64,16], index: 0, kind: input, shape index: {}]
  %s1 = inlined_call_operand.vmem [shape: bf16[16,128], index: 1, kind: input, shape index: {}]
  %s2 = inlined_call_operand.vmem [shape: bf16[32,128], index: 2, kind: input, shape index: {}]
  %s3 = inlined_call_operand.vmem [shape: f32[1,128], index: 3, kind: input, shape index: {}]
  %s4 = inlined_call_operand.vmem [shape: bf16[32,128], index: 4, kind: input, shape index: {}]
  %s5 = inlined_call_operand.vmem [shape: bf16[32,128], index: 5, kind: input, shape index: {}]
  %s6 = inlined_call_operand.vmem [shape: f32[1,128], index: 6, kind: input, shape index: {}]
  %s7 = inlined_call_operand.vmem [shape: bf16[32,64], index: 7, kind: input, shape index: {}]
  %s8 = inlined_call_operand.vmem [shape: bf16[16,64], index: 8, kind: input, shape index: {}]
  %s9 = inlined_call_operand.vmem [shape: f32[1,64], index: 9, kind: input, shape index: {}]
  %s10 = inlined_call_operand.vmem [shape: bf16[16,64], index: 10, kind: input, shape index: {}]
  %s11 = inlined_call_operand.vmem [shape: bf16[16,64], index: 11, kind: input, shape index: {}]
  %s12 = inlined_call_operand.vmem [shape: f32[1,64], index: 12, kind: input, shape index: {}]
  %s13 = inlined_call_operand.vmem [shape: f32[1,8,128], index: 13, kind: output, shape index: {}]
  %s14 = sld [smem:[#allocation0]]
  $region62: #{lstm_autoencoder_forward.1} parent=0
    _
  %s16 = ssub.s32 1, %s14
  %s17 = scalar_select 0, %s16, %s14
  // Predicated region
  $region2: #{lstm_autoencoder_forward.1} parent=0 // pred_check
    _
  $region3: #{lstm_autoencoder_forward.1} parent=0 // pred_check_branch
    %19 = sbr.rel (0) target = $region5
  $region4: #{lstm_autoencoder_forward.1} parent=0 // pred_region
    _
  $region5: #{lstm_autoencoder_forward.1} parent=0 // pred_fallthru
    _
  // Predicated region
  $region6: #{lstm_autoencoder_forward.1} parent=0 // pred_check
    _
  $region7: #{lstm_autoencoder_forward.1} parent=0 // pred_check_branch
    %21 = sbr.rel (0) target = $region9
  $region8: #{lstm_autoencoder_forward.1} parent=0 // pred_region
    _
  $region9: #{lstm_autoencoder_forward.1} parent=0 // pred_fallthru
    _
  // Predicated region
  $region10: #{lstm_autoencoder_forward.1} parent=0 // pred_check
    _
  $region11: #{lstm_autoencoder_forward.1} parent=0 // pred_check_branch
    %23 = sbr.rel (0) target = $region13
  $region12: #{lstm_autoencoder_forward.1} parent=0 // pred_region
    _
  $region13: #{lstm_autoencoder_forward.1} parent=0 // pred_fallthru
    _
  // Predicated region
  $region14: #{lstm_autoencoder_forward.1} parent=0 // pred_check
    _
  $region15: #{lstm_autoencoder_forward.1} parent=0 // pred_check_branch
    %25 = sbr.rel (0) target = $region17
  $region16: #{lstm_autoencoder_forward.1} parent=0 // pred_region
    _
  $region17: #{lstm_autoencoder_forward.1} parent=0 // pred_fallthru
    _
  // Predicated region
  $region18: #{lstm_autoencoder_forward.1} parent=0 // pred_check
    _
  $region19: #{lstm_autoencoder_forward.1} parent=0 // pred_check_branch
    %27 = sbr.rel (0) target = $region21
  $region20: #{lstm_autoencoder_forward.1} parent=0 // pred_region
    _
  $region21: #{lstm_autoencoder_forward.1} parent=0 // pred_fallthru
    _
  // Predicated region
  $region22: #{lstm_autoencoder_forward.1} parent=0 // pred_check
    _
  $region23: #{lstm_autoencoder_forward.1} parent=0 // pred_check_branch
    %29 = sbr.rel (0) target = $region25
  $region24: #{lstm_autoencoder_forward.1} parent=0 // pred_region
    _
  $region25: #{lstm_autoencoder_forward.1} parent=0 // pred_fallthru
    _
  // Predicated region
  $region26: #{lstm_autoencoder_forward.1} parent=0 // pred_check
    _
  $region27: #{lstm_autoencoder_forward.1} parent=0 // pred_check_branch
    %31 = sbr.rel (0) target = $region29
  $region28: #{lstm_autoencoder_forward.1} parent=0 // pred_region
    _
  $region29: #{lstm_autoencoder_forward.1} parent=0 // pred_fallthru
    _
  // Predicated region
  $region30: #{lstm_autoencoder_forward.1} parent=0 // pred_check
    _
  $region31: #{lstm_autoencoder_forward.1} parent=0 // pred_check_branch
    %33 = sbr.rel (0) target = $region33
  $region32: #{lstm_autoencoder_forward.1} parent=0 // pred_region
    _
  $region33: #{lstm_autoencoder_forward.1} parent=0 // pred_fallthru
    _
  // Predicated region
  $region34: #{lstm_autoencoder_forward.1} parent=0 // pred_check
    _
  $region35: #{lstm_autoencoder_forward.1} parent=0 // pred_check_branch
    %35 = sbr.rel (0) target = $region37
  $region36: #{lstm_autoencoder_forward.1} parent=0 // pred_region
    _
  $region37: #{lstm_autoencoder_forward.1} parent=0 // pred_fallthru
    _
  // Predicated region
  $region38: #{lstm_autoencoder_forward.1} parent=0 // pred_check
    _
  $region39: #{lstm_autoencoder_forward.1} parent=0 // pred_check_branch
    %37 = sbr.rel (0) target = $region41
  $region40: #{lstm_autoencoder_forward.1} parent=0 // pred_region
    _
  $region41: #{lstm_autoencoder_forward.1} parent=0 // pred_fallthru
    _
  // Predicated region
  $region42: #{lstm_autoencoder_forward.1} parent=0 // pred_check
    _
  $region43: #{lstm_autoencoder_forward.1} parent=0 // pred_check_branch
    %39 = sbr.rel (0) target = $region45
  $region44: #{lstm_autoencoder_forward.1} parent=0 // pred_region
    _
  $region45: #{lstm_autoencoder_forward.1} parent=0 // pred_fallthru
    _
  // Predicated region
  $region46: #{lstm_autoencoder_forward.1} parent=0 // pred_check
    _
  $region47: #{lstm_autoencoder_forward.1} parent=0 // pred_check_branch
    %41 = sbr.rel (0) target = $region49
  $region48: #{lstm_autoencoder_forward.1} parent=0 // pred_region
    _
  $region49: #{lstm_autoencoder_forward.1} parent=0 // pred_fallthru
    _
  // Predicated region
  $region50: #{lstm_autoencoder_forward.1} parent=0 // pred_check
    _
  $region51: #{lstm_autoencoder_forward.1} parent=0 // pred_check_branch
    %43 = sbr.rel (0) target = $region53
  $region52: #{lstm_autoencoder_forward.1} parent=0 // pred_region
    _
  $region53: #{lstm_autoencoder_forward.1} parent=0 // pred_fallthru
    _
  %v45 = vld [vmem:[%s1] sm:$0xf]
  %v46 = vld [vmem:[%s1 + $0x4] sm:$0xf]
  %v47 = vld [vmem:[%s2] sm:$0xf]
  %v48 = vld [vmem:[%s2 + $0x4] sm:$0xf]
  %v49 = vld [vmem:[%s2 + $0x8] sm:$0xf]
  %v50 = vld [vmem:[%s2 + $0xc] sm:$0xf]
  %v51 = vld [vmem:[%s3] sm:$0x1]
  %v52 = vld [vmem:[%s0] sm:$0xff]
  %v53 = vld [vmem:[%s0 + $0x8] sm:$0xff]
  %v54 = vld [vmem:[%s0 + $0x10] sm:$0xff]
  %v55 = vld [vmem:[%s0 + $0x18] sm:$0xff]
  %v56 = vld [vmem:[%s0 + $0x20] sm:$0xff]
  %v57 = vld [vmem:[%s0 + $0x28] sm:$0xff]
  %v58 = vld [vmem:[%s0 + $0x30] sm:$0xff]
  %v59 = vld [vmem:[%s0 + $0x38] sm:$0xff]
  %v60 = vpack.c.bf16 %v53, %v52
  %v61 = vpack.c.bf16 %v55, %v54
  %v62 = vpack.c.bf16 %v57, %v56
  %v63 = vpack.c.bf16 %v59, %v58
  %v65 = vlaneseq
  %v66 = vshrl.u32 %v65, 7
  %v67 = vsub.s32 0, %v66
  %v68 = vrot.slane %v51, %v67
  %v72 = vunpack.c.l.b16 %v45
  %v73 = vunpack.c.l.b16 %v46
  %v74 = vpack.c.b16 %v73, %v72
  %vm76 = vcmask 130048
  %v78 = vsel %vm76, %v60, 0
  %v81 = vsel %vm76, %v61, 0
  %v84 = vsel %vm76, %v62, 0
  %v87 = vsel %vm76, %v63, 0
  %89 = vmatprep.subr.bf16.mxu0 0
  %90 = vmatpush1.bf16.msra.mxu0 %v74
  %91 = vmatprep.subr.bf16.mxu0 0
  %92 = vmatpush1.bf16.msra.mxu0 0
  %93 = vmatprep.subr.bf16.mxu0 0
  %94 = vmatpush1.bf16.msra.mxu0 0
  %95 = vmatprep.subr.bf16.mxu0 0
  %96 = vmatpush1.bf16.msra.mxu0 0
  %97 = vmatprep.subr.bf16.mxu0 0
  %98 = vmatpush1.bf16.msra.mxu0 0
  %99 = vmatprep.subr.bf16.mxu0 0
  %100 = vmatpush1.bf16.msra.mxu0 0
  %101 = vmatprep.subr.bf16.mxu0 0
  %102 = vmatpush1.bf16.msra.mxu0 0
  %103 = vmatprep.subr.bf16.mxu0 0
  %104 = vmatpush1.bf16.msra.mxu0 0
  %105 = vmatprep.subr.bf16.mxu0 0
  %106 = vmatpush1.bf16.msra.mxu0 0
  %107 = vmatprep.subr.bf16.mxu0 0
  %108 = vmatpush1.bf16.msra.mxu0 0
  %109 = vmatprep.subr.bf16.mxu0 0
  %110 = vmatpush1.bf16.msra.mxu0 0
  %111 = vmatprep.subr.bf16.mxu0 0
  %112 = vmatpush1.bf16.msra.mxu0 0
  %113 = vmatprep.subr.bf16.mxu0 0
  %114 = vmatpush1.bf16.msra.mxu0 0
  %115 = vmatprep.subr.bf16.mxu0 0
  %116 = vmatpush1.bf16.msra.mxu0 0
  %117 = vmatprep.subr.bf16.mxu0 0
  %118 = vmatpush1.bf16.msra.mxu0 0
  %119 = vmatprep.subr.bf16.mxu0 0
  %120 = vmatpush1.bf16.msra.mxu0 0
  %121 = vmatprep.mubr.bf16.mxu0 0
  %122 = vmatmul.mubr.bf16.gmra.mrb[0].mxu0 %v78
  %v123 = vpop.f32.mrb[0].mxu0
  %v124 = vadd.f32 %v68, %v123
  %v125 = vpop.f32.mrb[0].mxu0
  %v126 = vpop.f32.mrb[0].mxu0
  %v127 = vadd.f32 %v68, %v126
  %v128 = vpop.f32.mrb[0].mxu0
  %129 = vmatprep.mubr.bf16.mxu0 0
  %130 = vmatmul.mubr.bf16.gmra.mrb[0].mxu0 %v81
  %v131 = vpop.f32.mrb[0].mxu0
  %v132 = vadd.f32 %v68, %v131
  %v133 = vpop.f32.mrb[0].mxu0
  %v134 = vpop.f32.mrb[0].mxu0
  %v135 = vadd.f32 %v68, %v134
  %v136 = vpop.f32.mrb[0].mxu0
  %137 = vmatprep.mubr.bf16.mxu0 0
  %138 = vmatmul.mubr.bf16.gmra.mrb[0].mxu0 %v84
  %v139 = vpop.f32.mrb[0].mxu0
  %v140 = vadd.f32 %v68, %v139
  %v141 = vpop.f32.mrb[0].mxu0
  %v142 = vpop.f32.mrb[0].mxu0
  %v143 = vadd.f32 %v68, %v142
  %v144 = vpop.f32.mrb[0].mxu0
  %145 = vmatprep.mubr.bf16.mxu0 0
  %146 = vmatmul.mubr.bf16.gmra.mrb[0].mxu0 %v87
  %v147 = vpop.f32.mrb[0].mxu0
  %v148 = vadd.f32 %v68, %v147
  %v149 = vpop.f32.mrb[0].mxu0
  %v150 = vpop.f32.mrb[0].mxu0
  %v151 = vadd.f32 %v68, %v150
  %v152 = vpop.f32.mrb[0].mxu0
  %153 = vdwg.mxu0
  %154 = vst [vmem:[#allocation5] sm:$0xff] %v124
  %155 = vst [vmem:[#allocation5 + $0x8] sm:$0xff] %v127
  %156 = vst [vmem:[#allocation5 + $0x10] sm:$0xff] %v132
  %157 = vst [vmem:[#allocation5 + $0x18] sm:$0xff] %v135
  %158 = vst [vmem:[#allocation5 + $0x20] sm:$0xff] %v140
  %159 = vst [vmem:[#allocation5 + $0x28] sm:$0xff] %v143
  %160 = vst [vmem:[#allocation5 + $0x30] sm:$0xff] %v148
  %161 = vst [vmem:[#allocation5 + $0x38] sm:$0xff] %v151
  %v162 = vld [vmem:[#allocation5] sm:$0xff]
  %v167 = vunpack.c.l.b16 %v47
  %v168 = vunpack.c.l.b16 %v48
  %v169 = vunpack.c.l.b16 %v49
  %v170 = vunpack.c.l.b16 %v50
  %v171 = vpack.c.b16 %v168, %v167
  %v172 = vpack.c.b16 %v170, %v169
  %vm175 = vcmask 261120
  %v177 = vsel %vm175, 0, 0
  %179 = vmatprep.subr.bf16.mxu0 0
  %180 = vmatpush1.bf16.msra.mxu0 %v171
  %181 = vmatprep.subr.bf16.mxu0 0
  %182 = vmatpush1.bf16.msra.mxu0 %v172
  %183 = vmatprep.subr.bf16.mxu0 0
  %184 = vmatpush1.bf16.msra.mxu0 0
  %185 = vmatprep.subr.bf16.mxu0 0
  %186 = vmatpush1.bf16.msra.mxu0 0
  %187 = vmatprep.subr.bf16.mxu0 0
  %188 = vmatpush1.bf16.msra.mxu0 0
  %189 = vmatprep.subr.bf16.mxu0 0
  %190 = vmatpush1.bf16.msra.mxu0 0
  %191 = vmatprep.subr.bf16.mxu0 0
  %192 = vmatpush1.bf16.msra.mxu0 0
  %193 = vmatprep.subr.bf16.mxu0 0
  %194 = vmatpush1.bf16.msra.mxu0 0
  %195 = vmatprep.subr.bf16.mxu0 0
  %196 = vmatpush1.bf16.msra.mxu0 0
  %197 = vmatprep.subr.bf16.mxu0 0
  %198 = vmatpush1.bf16.msra.mxu0 0
  %199 = vmatprep.subr.bf16.mxu0 0
  %200 = vmatpush1.bf16.msra.mxu0 0
  %201 = vmatprep.subr.bf16.mxu0 0
  %202 = vmatpush1.bf16.msra.mxu0 0
  %203 = vmatprep.subr.bf16.mxu0 0
  %204 = vmatpush1.bf16.msra.mxu0 0
  %205 = vmatprep.subr.bf16.mxu0 0
  %206 = vmatpush1.bf16.msra.mxu0 0
  %207 = vmatprep.subr.bf16.mxu0 0
  %208 = vmatpush1.bf16.msra.mxu0 0
  %209 = vmatprep.subr.bf16.mxu0 0
  %210 = vmatpush1.bf16.msra.mxu0 0
  %211 = vmatprep.mubr.bf16.mxu0 0
  %212 = vmatmul.mubr.bf16.gmra.mrb[0].mxu0 %v177
  %v213 = vpop.f32.mrb[0].mxu0
  %v214 = vadd.f32 0.0, %v213
  %v215 = vpop.f32.mrb[0].mxu0
  %v216 = vpop.f32.mrb[0].mxu0
  %v217 = vpop.f32.mrb[0].mxu0
  %218 = vdwg.mxu0
  %v219 = vadd.f32 %v162, %v214
  %v220 = vxor.u32 %v219, 2147483648
  %v221 = vmul.f32 %v220, 1.442695
  %v222 = vpow.pop %v221
  %v223 = vadd.f32 %v222, 1.0
  %v224 = vrcp.pop %v223
  %v225 = vmul.f32 1.0, %v224
  %v226 = vtanh.pop %v219
  %v227 = vmul.f32 %v225, 0.0
  %229 = vrot.lane.b32.xlu0 %v226, 64
  %v230 = vpop.permute.xlu0 %229
  %v232 = vmul.f32 %v225, %v230
  %234 = vrot.lane.b32.xlu0 %v232, 32
  %v235 = vpop.permute.xlu0 %234
  %v237 = vadd.f32 %v227, %v235
  %v238 = vtanh.pop %v237
  %240 = vrot.lane.b32.xlu0 %v238, 64
  %v241 = vpop.permute.xlu0 %240
  %v243 = vmul.f32 %v225, %v241
  %245 = vrot.lane.b32.xlu0 %v243, 32
  %v246 = vpop.permute.xlu0 %245
  %248 = vst.msk [vmem:[#allocation2] sm:$0xff] %vm175, %v246
  %v249 = vld [vmem:[#allocation5 + $0x8] sm:$0xff]
  %v250 = vpack.c.bf16 %v243, %v243
  %252 = vrot.lane.b32.xlu0 %v250, 32
  %v253 = vpop.permute.xlu0 %252
  %v255 = vsel %vm175, %v253, 0
  %257 = vmatprep.subr.bf16.mxu0 0
  %258 = vmatpush1.bf16.msra.mxu0 %v171
  %259 = vmatprep.subr.bf16.mxu0 0
  %260 = vmatpush1.bf16.msra.mxu0 %v172
  %261 = vmatprep.subr.bf16.mxu0 0
  %262 = vmatpush1.bf16.msra.mxu0 0
  %263 = vmatprep.subr.bf16.mxu0 0
  %264 = vmatpush1.bf16.msra.mxu0 0
  %265 = vmatprep.subr.bf16.mxu0 0
  %266 = vmatpush1.bf16.msra.mxu0 0
  %267 = vmatprep.subr.bf16.mxu0 0
  %268 = vmatpush1.bf16.msra.mxu0 0
  %269 = vmatprep.subr.bf16.mxu0 0
  %270 = vmatpush1.bf16.msra.mxu0 0
  %271 = vmatprep.subr.bf16.mxu0 0
  %272 = vmatpush1.bf16.msra.mxu0 0
  %273 = vmatprep.subr.bf16.mxu0 0
  %274 = vmatpush1.bf16.msra.mxu0 0
  %275 = vmatprep.subr.bf16.mxu0 0
  %276 = vmatpush1.bf16.msra.mxu0 0
  %277 = vmatprep.subr.bf16.mxu0 0
  %278 = vmatpush1.bf16.msra.mxu0 0
  %279 = vmatprep.subr.bf16.mxu0 0
  %280 = vmatpush1.bf16.msra.mxu0 0
  %281 = vmatprep.subr.bf16.mxu0 0
  %282 = vmatpush1.bf16.msra.mxu0 0
  %283 = vmatprep.subr.bf16.mxu0 0
  %284 = vmatpush1.bf16.msra.mxu0 0
  %285 = vmatprep.subr.bf16.mxu0 0
  %286 = vmatpush1.bf16.msra.mxu0 0
  %287 = vmatprep.subr.bf16.mxu0 0
  %288 = vmatpush1.bf16.msra.mxu0 0
  %289 = vmatprep.mubr.bf16.mxu0 0
  %290 = vmatmul.mubr.bf16.gmra.mrb[0].mxu0 %v255
  %v291 = vpop.f32.mrb[0].mxu0
  %v292 = vadd.f32 0.0, %v291
  %v293 = vpop.f32.mrb[0].mxu0
  %v294 = vpop.f32.mrb[0].mxu0
  %v295 = vpop.f32.mrb[0].mxu0
  %296 = vdwg.mxu0
  %v297 = vadd.f32 %v249, %v292
  %v298 = vxor.u32 %v297, 2147483648
  %v299 = vmul.f32 %v298, 1.442695
  %v300 = vpow.pop %v299
  %v301 = vadd.f32 %v300, 1.0
  %v302 = vrcp.pop %v301
  %v303 = vmul.f32 1.0, %v302
  %v304 = vtanh.pop %v297
  %v305 = vmul.f32 %v303, %v237
  %307 = vrot.lane.b32.xlu0 %v304, 64
  %v308 = vpop.permute.xlu0 %307
  %v310 = vmul.f32 %v303, %v308
  %312 = vrot.lane.b32.xlu0 %v310, 32
  %v313 = vpop.permute.xlu0 %312
  %v315 = vadd.f32 %v305, %v313
  %v316 = vtanh.pop %v315
  %318 = vrot.lane.b32.xlu0 %v316, 64
  %v319 = vpop.permute.xlu0 %318
  %v321 = vmul.f32 %v303, %v319
  %323 = vrot.lane.b32.xlu0 %v321, 32
  %v324 = vpop.permute.xlu0 %323
  %326 = vst.msk [vmem:[#allocation2 + $0x8] sm:$0xff] %vm175, %v324
  %v327 = vld [vmem:[#allocation5 + $0x10] sm:$0xff]
  %v328 = vpack.c.bf16 %v321, %v321
  %330 = vrot.lane.b32.xlu0 %v328, 32
  %v331 = vpop.permute.xlu0 %330
  %v333 = vsel %vm175, %v331, 0
  %335 = vmatprep.subr.bf16.mxu0 0
  %336 = vmatpush1.bf16.msra.mxu0 %v171
  %337 = vmatprep.subr.bf16.mxu0 0
  %338 = vmatpush1.bf16.msra.mxu0 %v172
  %339 = vmatprep.subr.bf16.mxu0 0
  %340 = vmatpush1.bf16.msra.mxu0 0
  %341 = vmatprep.subr.bf16.mxu0 0
  %342 = vmatpush1.bf16.msra.mxu0 0
  %343 = vmatprep.subr.bf16.mxu0 0
  %344 = vmatpush1.bf16.msra.mxu0 0
  %345 = vmatprep.subr.bf16.mxu0 0
  %346 = vmatpush1.bf16.msra.mxu0 0
  %347 = vmatprep.subr.bf16.mxu0 0
  %348 = vmatpush1.bf16.msra.mxu0 0
  %349 = vmatprep.subr.bf16.mxu0 0
  %350 = vmatpush1.bf16.msra.mxu0 0
  %351 = vmatprep.subr.bf16.mxu0 0
  %352 = vmatpush1.bf16.msra.mxu0 0
  %353 = vmatprep.subr.bf16.mxu0 0
  %354 = vmatpush1.bf16.msra.mxu0 0
  %355 = vmatprep.subr.bf16.mxu0 0
  %356 = vmatpush1.bf16.msra.mxu0 0
  %357 = vmatprep.subr.bf16.mxu0 0
  %358 = vmatpush1.bf16.msra.mxu0 0
  %359 = vmatprep.subr.bf16.mxu0 0
  %360 = vmatpush1.bf16.msra.mxu0 0
  %361 = vmatprep.subr.bf16.mxu0 0
  %362 = vmatpush1.bf16.msra.mxu0 0
  %363 = vmatprep.subr.bf16.mxu0 0
  %364 = vmatpush1.bf16.msra.mxu0 0
  %365 = vmatprep.subr.bf16.mxu0 0
  %366 = vmatpush1.bf16.msra.mxu0 0
  %367 = vmatprep.mubr.bf16.mxu0 0
  %368 = vmatmul.mubr.bf16.gmra.mrb[0].mxu0 %v333
  %v369 = vpop.f32.mrb[0].mxu0
  %v370 = vadd.f32 0.0, %v369
  %v371 = vpop.f32.mrb[0].mxu0
  %v372 = vpop.f32.mrb[0].mxu0
  %v373 = vpop.f32.mrb[0].mxu0
  %374 = vdwg.mxu0
  %v375 = vadd.f32 %v327, %v370
  %v376 = vxor.u32 %v375, 2147483648
  %v377 = vmul.f32 %v376, 1.442695
  %v378 = vpow.pop %v377
  %v379 = vadd.f32 %v378, 1.0
  %v380 = vrcp.pop %v379
  %v381 = vmul.f32 1.0, %v380
  %v382 = vtanh.pop %v375
  %v383 = vmul.f32 %v381, %v315
  %385 = vrot.lane.b32.xlu0 %v382, 64
  %v386 = vpop.permute.xlu0 %385
  %v388 = vmul.f32 %v381, %v386
  %390 = vrot.lane.b32.xlu0 %v388, 32
  %v391 = vpop.permute.xlu0 %390
  %v393 = vadd.f32 %v383, %v391
  %v394 = vtanh.pop %v393
  %396 = vrot.lane.b32.xlu0 %v394, 64
  %v397 = vpop.permute.xlu0 %396
  %v399 = vmul.f32 %v381, %v397
  %401 = vrot.lane.b32.xlu0 %v399, 32
  %v402 = vpop.permute.xlu0 %401
  %404 = vst.msk [vmem:[#allocation2 + $0x10] sm:$0xff] %vm175, %v402
  %v405 = vld [vmem:[#allocation5 + $0x18] sm:$0xff]
  %v406 = vpack.c.bf16 %v399, %v399
  %408 = vrot.lane.b32.xlu0 %v406, 32
  %v409 = vpop.permute.xlu0 %408
  %v411 = vsel %vm175, %v409, 0
  %413 = vmatprep.subr.bf16.mxu0 0
  %414 = vmatpush1.bf16.msra.mxu0 %v171
  %415 = vmatprep.subr.bf16.mxu0 0
  %416 = vmatpush1.bf16.msra.mxu0 %v172
  %417 = vmatprep.subr.bf16.mxu0 0
  %418 = vmatpush1.bf16.msra.mxu0 0
  %419 = vmatprep.subr.bf16.mxu0 0
  %420 = vmatpush1.bf16.msra.mxu0 0
  %421 = vmatprep.subr.bf16.mxu0 0
  %422 = vmatpush1.bf16.msra.mxu0 0
  %423 = vmatprep.subr.bf16.mxu0 0
  %424 = vmatpush1.bf16.msra.mxu0 0
  %425 = vmatprep.subr.bf16.mxu0 0
  %426 = vmatpush1.bf16.msra.mxu0 0
  %427 = vmatprep.subr.bf16.mxu0 0
  %428 = vmatpush1.bf16.msra.mxu0 0
  %429 = vmatprep.subr.bf16.mxu0 0
  %430 = vmatpush1.bf16.msra.mxu0 0
  %431 = vmatprep.subr.bf16.mxu0 0
  %432 = vmatpush1.bf16.msra.mxu0 0
  %433 = vmatprep.subr.bf16.mxu0 0
  %434 = vmatpush1.bf16.msra.mxu0 0
  %435 = vmatprep.subr.bf16.mxu0 0
  %436 = vmatpush1.bf16.msra.mxu0 0
  %437 = vmatprep.subr.bf16.mxu0 0
  %438 = vmatpush1.bf16.msra.mxu0 0
  %439 = vmatprep.subr.bf16.mxu0 0
  %440 = vmatpush1.bf16.msra.mxu0 0
  %441 = vmatprep.subr.bf16.mxu0 0
  %442 = vmatpush1.bf16.msra.mxu0 0
  %443 = vmatprep.subr.bf16.mxu0 0
  %444 = vmatpush1.bf16.msra.mxu0 0
  %445 = vmatprep.mubr.bf16.mxu0 0
  %446 = vmatmul.mubr.bf16.gmra.mrb[0].mxu0 %v411
  %v447 = vpop.f32.mrb[0].mxu0
  %v448 = vadd.f32 0.0, %v447
  %v449 = vpop.f32.mrb[0].mxu0
  %v450 = vpop.f32.mrb[0].mxu0
  %v451 = vpop.f32.mrb[0].mxu0
  %452 = vdwg.mxu0
  %v453 = vadd.f32 %v405, %v448
  %v454 = vxor.u32 %v453, 2147483648
  %v455 = vmul.f32 %v454, 1.442695
  %v456 = vpow.pop %v455
  %v457 = vadd.f32 %v456, 1.0
  %v458 = vrcp.pop %v457
  %v459 = vmul.f32 1.0, %v458
  %v460 = vtanh.pop %v453
  %v461 = vmul.f32 %v459, %v393
  %463 = vrot.lane.b32.xlu0 %v460, 64
  %v464 = vpop.permute.xlu0 %463
  %v466 = vmul.f32 %v459, %v464
  %468 = vrot.lane.b32.xlu0 %v466, 32
  %v469 = vpop.permute.xlu0 %468
  %v471 = vadd.f32 %v461, %v469
  %v472 = vtanh.pop %v471
  %474 = vrot.lane.b32.xlu0 %v472, 64
  %v475 = vpop.permute.xlu0 %474
  %v477 = vmul.f32 %v459, %v475
  %479 = vrot.lane.b32.xlu0 %v477, 32
  %v480 = vpop.permute.xlu0 %479
  %482 = vst.msk [vmem:[#allocation2 + $0x18] sm:$0xff] %vm175, %v480
  %v483 = vld [vmem:[#allocation5 + $0x20] sm:$0xff]
  %v484 = vpack.c.bf16 %v477, %v477
  %486 = vrot.lane.b32.xlu0 %v484, 32
  %v487 = vpop.permute.xlu0 %486
  %v489 = vsel %vm175, %v487, 0
  %491 = vmatprep.subr.bf16.mxu0 0
  %492 = vmatpush1.bf16.msra.mxu0 %v171
  %493 = vmatprep.subr.bf16.mxu0 0
  %494 = vmatpush1.bf16.msra.mxu0 %v172
  %495 = vmatprep.subr.bf16.mxu0 0
  %496 = vmatpush1.bf16.msra.mxu0 0
  %497 = vmatprep.subr.bf16.mxu0 0
  %498 = vmatpush1.bf16.msra.mxu0 0
  %499 = vmatprep.subr.bf16.mxu0 0
  %500 = vmatpush1.bf16.msra.mxu0 0
  %501 = vmatprep.subr.bf16.mxu0 0
  %502 = vmatpush1.bf16.msra.mxu0 0
  %503 = vmatprep.subr.bf16.mxu0 0
  %504 = vmatpush1.bf16.msra.mxu0 0
  %505 = vmatprep.subr.bf16.mxu0 0
  %506 = vmatpush1.bf16.msra.mxu0 0
  %507 = vmatprep.subr.bf16.mxu0 0
  %508 = vmatpush1.bf16.msra.mxu0 0
  %509 = vmatprep.subr.bf16.mxu0 0
  %510 = vmatpush1.bf16.msra.mxu0 0
  %511 = vmatprep.subr.bf16.mxu0 0
  %512 = vmatpush1.bf16.msra.mxu0 0
  %513 = vmatprep.subr.bf16.mxu0 0
  %514 = vmatpush1.bf16.msra.mxu0 0
  %515 = vmatprep.subr.bf16.mxu0 0
  %516 = vmatpush1.bf16.msra.mxu0 0
  %517 = vmatprep.subr.bf16.mxu0 0
  %518 = vmatpush1.bf16.msra.mxu0 0
  %519 = vmatprep.subr.bf16.mxu0 0
  %520 = vmatpush1.bf16.msra.mxu0 0
  %521 = vmatprep.subr.bf16.mxu0 0
  %522 = vmatpush1.bf16.msra.mxu0 0
  %523 = vmatprep.mubr.bf16.mxu0 0
  %524 = vmatmul.mubr.bf16.gmra.mrb[0].mxu0 %v489
  %v525 = vpop.f32.mrb[0].mxu0
  %v526 = vadd.f32 0.0, %v525
  %v527 = vpop.f32.mrb[0].mxu0
  %v528 = vpop.f32.mrb[0].mxu0
  %v529 = vpop.f32.mrb[0].mxu0
  %530 = vdwg.mxu0
  %v531 = vadd.f32 %v483, %v526
  %v532 = vxor.u32 %v531, 2147483648
  %v533 = vmul.f32 %v532, 1.442695
  %v534 = vpow.pop %v533
  %v535 = vadd.f32 %v534, 1.0
  %v536 = vrcp.pop %v535
  %v537 = vmul.f32 1.0, %v536
  %v538 = vtanh.pop %v531
  %v539 = vmul.f32 %v537, %v471
  %541 = vrot.lane.b32.xlu0 %v538, 64
  %v542 = vpop.permute.xlu0 %541
  %v544 = vmul.f32 %v537, %v542
  %546 = vrot.lane.b32.xlu0 %v544, 32
  %v547 = vpop.permute.xlu0 %546
  %v549 = vadd.f32 %v539, %v547
  %v550 = vtanh.pop %v549
  %552 = vrot.lane.b32.xlu0 %v550, 64
  %v553 = vpop.permute.xlu0 %552
  %v555 = vmul.f32 %v537, %v553
  %557 = vrot.lane.b32.xlu0 %v555, 32
  %v558 = vpop.permute.xlu0 %557
  %560 = vst.msk [vmem:[#allocation2 + $0x20] sm:$0xff] %vm175, %v558
  %v561 = vld [vmem:[#allocation5 + $0x28] sm:$0xff]
  %v562 = vpack.c.bf16 %v555, %v555
  %564 = vrot.lane.b32.xlu0 %v562, 32
  %v565 = vpop.permute.xlu0 %564
  %v567 = vsel %vm175, %v565, 0
  %569 = vmatprep.subr.bf16.mxu0 0
  %570 = vmatpush1.bf16.msra.mxu0 %v171
  %571 = vmatprep.subr.bf16.mxu0 0
  %572 = vmatpush1.bf16.msra.mxu0 %v172
  %573 = vmatprep.subr.bf16.mxu0 0
  %574 = vmatpush1.bf16.msra.mxu0 0
  %575 = vmatprep.subr.bf16.mxu0 0
  %576 = vmatpush1.bf16.msra.mxu0 0
  %577 = vmatprep.subr.bf16.mxu0 0
  %578 = vmatpush1.bf16.msra.mxu0 0
  %579 = vmatprep.subr.bf16.mxu0 0
  %580 = vmatpush1.bf16.msra.mxu0 0
  %581 = vmatprep.subr.bf16.mxu0 0
  %582 = vmatpush1.bf16.msra.mxu0 0
  %583 = vmatprep.subr.bf16.mxu0 0
  %584 = vmatpush1.bf16.msra.mxu0 0
  %585 = vmatprep.subr.bf16.mxu0 0
  %586 = vmatpush1.bf16.msra.mxu0 0
  %587 = vmatprep.subr.bf16.mxu0 0
  %588 = vmatpush1.bf16.msra.mxu0 0
  %589 = vmatprep.subr.bf16.mxu0 0
  %590 = vmatpush1.bf16.msra.mxu0 0
  %591 = vmatprep.subr.bf16.mxu0 0
  %592 = vmatpush1.bf16.msra.mxu0 0
  %593 = vmatprep.subr.bf16.mxu0 0
  %594 = vmatpush1.bf16.msra.mxu0 0
  %595 = vmatprep.subr.bf16.mxu0 0
  %596 = vmatpush1.bf16.msra.mxu0 0
  %597 = vmatprep.subr.bf16.mxu0 0
  %598 = vmatpush1.bf16.msra.mxu0 0
  %599 = vmatprep.subr.bf16.mxu0 0
  %600 = vmatpush1.bf16.msra.mxu0 0
  %601 = vmatprep.mubr.bf16.mxu0 0
  %602 = vmatmul.mubr.bf16.gmra.mrb[0].mxu0 %v567
  %v603 = vpop.f32.mrb[0].mxu0
  %v604 = vadd.f32 0.0, %v603
  %v605 = vpop.f32.mrb[0].mxu0
  %v606 = vpop.f32.mrb[0].mxu0
  %v607 = vpop.f32.mrb[0].mxu0
  %608 = vdwg.mxu0
  %v609 = vadd.f32 %v561, %v604
  %v610 = vxor.u32 %v609, 2147483648
  %v611 = vmul.f32 %v610, 1.442695
  %v612 = vpow.pop %v611
  %v613 = vadd.f32 %v612, 1.0
  %v614 = vrcp.pop %v613
  %v615 = vmul.f32 1.0, %v614
  %v616 = vtanh.pop %v609
  %v617 = vmul.f32 %v615, %v549
  %619 = vrot.lane.b32.xlu0 %v616, 64
  %v620 = vpop.permute.xlu0 %619
  %v622 = vmul.f32 %v615, %v620
  %624 = vrot.lane.b32.xlu0 %v622, 32
  %v625 = vpop.permute.xlu0 %624
  %v627 = vadd.f32 %v617, %v625
  %v628 = vtanh.pop %v627
  %630 = vrot.lane.b32.xlu0 %v628, 64
  %v631 = vpop.permute.xlu0 %630
  %v633 = vmul.f32 %v615, %v631
  %635 = vrot.lane.b32.xlu0 %v633, 32
  %v636 = vpop.permute.xlu0 %635
  %638 = vst.msk [vmem:[#allocation2 + $0x28] sm:$0xff] %vm175, %v636
  %v639 = vld [vmem:[#allocation5 + $0x30] sm:$0xff]
  %v640 = vpack.c.bf16 %v633, %v633
  %642 = vrot.lane.b32.xlu0 %v640, 32
  %v643 = vpop.permute.xlu0 %642
  %v645 = vsel %vm175, %v643, 0
  %647 = vmatprep.subr.bf16.mxu0 0
  %648 = vmatpush1.bf16.msra.mxu0 %v171
  %649 = vmatprep.subr.bf16.mxu0 0
  %650 = vmatpush1.bf16.msra.mxu0 %v172
  %651 = vmatprep.subr.bf16.mxu0 0
  %652 = vmatpush1.bf16.msra.mxu0 0
  %653 = vmatprep.subr.bf16.mxu0 0
  %654 = vmatpush1.bf16.msra.mxu0 0
  %655 = vmatprep.subr.bf16.mxu0 0
  %656 = vmatpush1.bf16.msra.mxu0 0
  %657 = vmatprep.subr.bf16.mxu0 0
  %658 = vmatpush1.bf16.msra.mxu0 0
  %659 = vmatprep.subr.bf16.mxu0 0
  %660 = vmatpush1.bf16.msra.mxu0 0
  %661 = vmatprep.subr.bf16.mxu0 0
  %662 = vmatpush1.bf16.msra.mxu0 0
  %663 = vmatprep.subr.bf16.mxu0 0
  %664 = vmatpush1.bf16.msra.mxu0 0
  %665 = vmatprep.subr.bf16.mxu0 0
  %666 = vmatpush1.bf16.msra.mxu0 0
  %667 = vmatprep.subr.bf16.mxu0 0
  %668 = vmatpush1.bf16.msra.mxu0 0
  %669 = vmatprep.subr.bf16.mxu0 0
  %670 = vmatpush1.bf16.msra.mxu0 0
  %671 = vmatprep.subr.bf16.mxu0 0
  %672 = vmatpush1.bf16.msra.mxu0 0
  %673 = vmatprep.subr.bf16.mxu0 0
  %674 = vmatpush1.bf16.msra.mxu0 0
  %675 = vmatprep.subr.bf16.mxu0 0
  %676 = vmatpush1.bf16.msra.mxu0 0
  %677 = vmatprep.subr.bf16.mxu0 0
  %678 = vmatpush1.bf16.msra.mxu0 0
  %679 = vmatprep.mubr.bf16.mxu0 0
  %680 = vmatmul.mubr.bf16.gmra.mrb[0].mxu0 %v645
  %v681 = vpop.f32.mrb[0].mxu0
  %v682 = vadd.f32 0.0, %v681
  %v683 = vpop.f32.mrb[0].mxu0
  %v684 = vpop.f32.mrb[0].mxu0
  %v685 = vpop.f32.mrb[0].mxu0
  %686 = vdwg.mxu0
  %v687 = vadd.f32 %v639, %v682
  %v688 = vxor.u32 %v687, 2147483648
  %v689 = vmul.f32 %v688, 1.442695
  %v690 = vpow.pop %v689
  %v691 = vadd.f32 %v690, 1.0
  %v692 = vrcp.pop %v691
  %v693 = vmul.f32 1.0, %v692
  %v694 = vtanh.pop %v687
  %v695 = vmul.f32 %v693, %v627
  %697 = vrot.lane.b32.xlu0 %v694, 64
  %v698 = vpop.permute.xlu0 %697
  %v700 = vmul.f32 %v693, %v698
  %702 = vrot.lane.b32.xlu0 %v700, 32
  %v703 = vpop.permute.xlu0 %702
  %v705 = vadd.f32 %v695, %v703
  %v706 = vtanh.pop %v705
  %708 = vrot.lane.b32.xlu0 %v706, 64
  %v709 = vpop.permute.xlu0 %708
  %v711 = vmul.f32 %v693, %v709
  %713 = vrot.lane.b32.xlu0 %v711, 32
  %v714 = vpop.permute.xlu0 %713
  %716 = vst.msk [vmem:[#allocation2 + $0x30] sm:$0xff] %vm175, %v714
  %v717 = vld [vmem:[#allocation5 + $0x38] sm:$0xff]
  %v718 = vpack.c.bf16 %v711, %v711
  %720 = vrot.lane.b32.xlu0 %v718, 32
  %v721 = vpop.permute.xlu0 %720
  %v723 = vsel %vm175, %v721, 0
  %725 = vmatprep.subr.bf16.mxu0 0
  %726 = vmatpush1.bf16.msra.mxu0 %v171
  %727 = vmatprep.subr.bf16.mxu0 0
  %728 = vmatpush1.bf16.msra.mxu0 %v172
  %729 = vmatprep.subr.bf16.mxu0 0
  %730 = vmatpush1.bf16.msra.mxu0 0
  %731 = vmatprep.subr.bf16.mxu0 0
  %732 = vmatpush1.bf16.msra.mxu0 0
  %733 = vmatprep.subr.bf16.mxu0 0
  %734 = vmatpush1.bf16.msra.mxu0 0
  %735 = vmatprep.subr.bf16.mxu0 0
  %736 = vmatpush1.bf16.msra.mxu0 0
  %737 = vmatprep.subr.bf16.mxu0 0
  %738 = vmatpush1.bf16.msra.mxu0 0
  %739 = vmatprep.subr.bf16.mxu0 0
  %740 = vmatpush1.bf16.msra.mxu0 0
  %741 = vmatprep.subr.bf16.mxu0 0
  %742 = vmatpush1.bf16.msra.mxu0 0
  %743 = vmatprep.subr.bf16.mxu0 0
  %744 = vmatpush1.bf16.msra.mxu0 0
  %745 = vmatprep.subr.bf16.mxu0 0
  %746 = vmatpush1.bf16.msra.mxu0 0
  %747 = vmatprep.subr.bf16.mxu0 0
  %748 = vmatpush1.bf16.msra.mxu0 0
  %749 = vmatprep.subr.bf16.mxu0 0
  %750 = vmatpush1.bf16.msra.mxu0 0
  %751 = vmatprep.subr.bf16.mxu0 0
  %752 = vmatpush1.bf16.msra.mxu0 0
  %753 = vmatprep.subr.bf16.mxu0 0
  %754 = vmatpush1.bf16.msra.mxu0 0
  %755 = vmatprep.subr.bf16.mxu0 0
  %756 = vmatpush1.bf16.msra.mxu0 0
  %757 = vmatprep.mubr.bf16.mxu0 0
  %758 = vmatmul.mubr.bf16.gmra.mrb[0].mxu0 %v723
  %v759 = vpop.f32.mrb[0].mxu0
  %v760 = vadd.f32 0.0, %v759
  %v761 = vpop.f32.mrb[0].mxu0
  %v762 = vpop.f32.mrb[0].mxu0
  %v763 = vpop.f32.mrb[0].mxu0
  %764 = vdwg.mxu0
  %v765 = vadd.f32 %v717, %v760
  %v766 = vxor.u32 %v765, 2147483648
  %v767 = vmul.f32 %v766, 1.442695
  %v768 = vpow.pop %v767
  %v769 = vadd.f32 %v768, 1.0
  %v770 = vrcp.pop %v769
  %v771 = vmul.f32 1.0, %v770
  %v772 = vtanh.pop %v765
  %v773 = vmul.f32 %v771, %v705
  %775 = vrot.lane.b32.xlu0 %v772, 64
  %v776 = vpop.permute.xlu0 %775
  %v778 = vmul.f32 %v771, %v776
  %780 = vrot.lane.b32.xlu0 %v778, 32
  %v781 = vpop.permute.xlu0 %780
  %v783 = vadd.f32 %v773, %v781
  %v784 = vtanh.pop %v783
  %786 = vrot.lane.b32.xlu0 %v784, 64
  %v787 = vpop.permute.xlu0 %786
  %v789 = vmul.f32 %v771, %v787
  %791 = vrot.lane.b32.xlu0 %v789, 32
  %v792 = vpop.permute.xlu0 %791
  %794 = vst.msk [vmem:[#allocation2 + $0x38] sm:$0xff] %vm175, %v792
  %v795 = vld [vmem:[%s4] sm:$0xf]
  %v796 = vld [vmem:[%s4 + $0x4] sm:$0xf]
  %v797 = vld [vmem:[%s4 + $0x8] sm:$0xf]
  %v798 = vld [vmem:[%s4 + $0xc] sm:$0xf]
  %v799 = vld [vmem:[%s5] sm:$0xf]
  %v800 = vld [vmem:[%s5 + $0x4] sm:$0xf]
  %v801 = vld [vmem:[%s5 + $0x8] sm:$0xf]
  %v802 = vld [vmem:[%s5 + $0xc] sm:$0xf]
  %v803 = vld [vmem:[%s6] sm:$0x1]
  %v804 = vld [vmem:[#allocation2] sm:$0xff]
  %v805 = vld [vmem:[#allocation2 + $0x8] sm:$0xff]
  %v806 = vld [vmem:[#allocation2 + $0x10] sm:$0xff]
  %v807 = vld [vmem:[#allocation2 + $0x18] sm:$0xff]
  %v808 = vld [vmem:[#allocation2 + $0x20] sm:$0xff]
  %v809 = vld [vmem:[#allocation2 + $0x28] sm:$0xff]
  %v810 = vld [vmem:[#allocation2 + $0x30] sm:$0xff]
  %v811 = vld [vmem:[#allocation2 + $0x38] sm:$0xff]
  %v812 = vpack.c.bf16 %v805, %v804
  %v813 = vpack.c.bf16 %v807, %v806
  %v814 = vpack.c.bf16 %v809, %v808
  %v815 = vpack.c.bf16 %v811, %v810
  %v817 = vlaneseq
  %v818 = vshrl.u32 %v817, 7
  %v819 = vsub.s32 0, %v818
  %v820 = vrot.slane %v803, %v819
  %v826 = vunpack.c.l.b16 %v795
  %v827 = vunpack.c.l.b16 %v796
  %v828 = vunpack.c.l.b16 %v797
  %v829 = vunpack.c.l.b16 %v798
  %v830 = vpack.c.b16 %v827, %v826
  %v831 = vpack.c.b16 %v829, %v828
  %v835 = vsel %vm175, %v812, 0
  %v838 = vsel %vm175, %v813, 0
  %v841 = vsel %vm175, %v814, 0
  %v844 = vsel %vm175, %v815, 0
  %846 = vmatprep.subr.bf16.mxu0 0
  %847 = vmatpush1.bf16.msra.mxu0 %v830
  %848 = vmatprep.subr.bf16.mxu0 0
  %849 = vmatpush1.bf16.msra.mxu0 %v831
  %850 = vmatprep.subr.bf16.mxu0 0
  %851 = vmatpush1.bf16.msra.mxu0 0
  %852 = vmatprep.subr.bf16.mxu0 0
  %853 = vmatpush1.bf16.msra.mxu0 0
  %854 = vmatprep.subr.bf16.mxu0 0
  %855 = vmatpush1.bf16.msra.mxu0 0
  %856 = vmatprep.subr.bf16.mxu0 0
  %857 = vmatpush1.bf16.msra.mxu0 0
  %858 = vmatprep.subr.bf16.mxu0 0
  %859 = vmatpush1.bf16.msra.mxu0 0
  %860 = vmatprep.subr.bf16.mxu0 0
  %861 = vmatpush1.bf16.msra.mxu0 0
  %862 = vmatprep.subr.bf16.mxu0 0
  %863 = vmatpush1.bf16.msra.mxu0 0
  %864 = vmatprep.subr.bf16.mxu0 0
  %865 = vmatpush1.bf16.msra.mxu0 0
  %866 = vmatprep.subr.bf16.mxu0 0
  %867 = vmatpush1.bf16.msra.mxu0 0
  %868 = vmatprep.subr.bf16.mxu0 0
  %869 = vmatpush1.bf16.msra.mxu0 0
  %870 = vmatprep.subr.bf16.mxu0 0
  %871 = vmatpush1.bf16.msra.mxu0 0
  %872 = vmatprep.subr.bf16.mxu0 0
  %873 = vmatpush1.bf16.msra.mxu0 0
  %874 = vmatprep.subr.bf16.mxu0 0
  %875 = vmatpush1.bf16.msra.mxu0 0
  %876 = vmatprep.subr.bf16.mxu0 0
  %877 = vmatpush1.bf16.msra.mxu0 0
  %878 = vmatprep.mubr.bf16.mxu0 0
  %879 = vmatmul.mubr.bf16.gmra.mrb[0].mxu0 %v835
  %v880 = vpop.f32.mrb[0].mxu0
  %v881 = vadd.f32 %v820, %v880
  %v882 = vpop.f32.mrb[0].mxu0
  %v883 = vpop.f32.mrb[0].mxu0
  %v884 = vadd.f32 %v820, %v883
  %v885 = vpop.f32.mrb[0].mxu0
  %886 = vmatprep.mubr.bf16.mxu0 0
  %887 = vmatmul.mubr.bf16.gmra.mrb[0].mxu0 %v838
  %v888 = vpop.f32.mrb[0].mxu0
  %v889 = vadd.f32 %v820, %v888
  %v890 = vpop.f32.mrb[0].mxu0
  %v891 = vpop.f32.mrb[0].mxu0
  %v892 = vadd.f32 %v820, %v891
  %v893 = vpop.f32.mrb[0].mxu0
  %894 = vmatprep.mubr.bf16.mxu0 0
  %895 = vmatmul.mubr.bf16.gmra.mrb[0].mxu0 %v841
  %v896 = vpop.f32.mrb[0].mxu0
  %v897 = vadd.f32 %v820, %v896
  %v898 = vpop.f32.mrb[0].mxu0
  %v899 = vpop.f32.mrb[0].mxu0
  %v900 = vadd.f32 %v820, %v899
  %v901 = vpop.f32.mrb[0].mxu0
  %902 = vmatprep.mubr.bf16.mxu0 0
  %903 = vmatmul.mubr.bf16.gmra.mrb[0].mxu0 %v844
  %v904 = vpop.f32.mrb[0].mxu0
  %v905 = vadd.f32 %v820, %v904
  %v906 = vpop.f32.mrb[0].mxu0
  %v907 = vpop.f32.mrb[0].mxu0
  %v908 = vadd.f32 %v820, %v907
  %v909 = vpop.f32.mrb[0].mxu0
  %910 = vdwg.mxu0
  %911 = vst [vmem:[#allocation6] sm:$0xff] %v881
  %912 = vst [vmem:[#allocation6 + $0x8] sm:$0xff] %v884
  %913 = vst [vmem:[#allocation6 + $0x10] sm:$0xff] %v889
  %914 = vst [vmem:[#allocation6 + $0x18] sm:$0xff] %v892
  %915 = vst [vmem:[#allocation6 + $0x20] sm:$0xff] %v897
  %916 = vst [vmem:[#allocation6 + $0x28] sm:$0xff] %v900
  %917 = vst [vmem:[#allocation6 + $0x30] sm:$0xff] %v905
  %918 = vst [vmem:[#allocation6 + $0x38] sm:$0xff] %v908
  %v919 = vld [vmem:[#allocation6] sm:$0xff]
  %v924 = vunpack.c.l.b16 %v799
  %v925 = vunpack.c.l.b16 %v800
  %v926 = vunpack.c.l.b16 %v801
  %v927 = vunpack.c.l.b16 %v802
  %v928 = vpack.c.b16 %v925, %v924
  %v929 = vpack.c.b16 %v927, %v926
  %932 = vmatprep.subr.bf16.mxu0 0
  %933 = vmatpush1.bf16.msra.mxu0 %v928
  %934 = vmatprep.subr.bf16.mxu0 0
  %935 = vmatpush1.bf16.msra.mxu0 %v929
  %936 = vmatprep.subr.bf16.mxu0 0
  %937 = vmatpush1.bf16.msra.mxu0 0
  %938 = vmatprep.subr.bf16.mxu0 0
  %939 = vmatpush1.bf16.msra.mxu0 0
  %940 = vmatprep.subr.bf16.mxu0 0
  %941 = vmatpush1.bf16.msra.mxu0 0
  %942 = vmatprep.subr.bf16.mxu0 0
  %943 = vmatpush1.bf16.msra.mxu0 0
  %944 = vmatprep.subr.bf16.mxu0 0
  %945 = vmatpush1.bf16.msra.mxu0 0
  %946 = vmatprep.subr.bf16.mxu0 0
  %947 = vmatpush1.bf16.msra.mxu0 0
  %948 = vmatprep.subr.bf16.mxu0 0
  %949 = vmatpush1.bf16.msra.mxu0 0
  %950 = vmatprep.subr.bf16.mxu0 0
  %951 = vmatpush1.bf16.msra.mxu0 0
  %952 = vmatprep.subr.bf16.mxu0 0
  %953 = vmatpush1.bf16.msra.mxu0 0
  %954 = vmatprep.subr.bf16.mxu0 0
  %955 = vmatpush1.bf16.msra.mxu0 0
  %956 = vmatprep.subr.bf16.mxu0 0
  %957 = vmatpush1.bf16.msra.mxu0 0
  %958 = vmatprep.subr.bf16.mxu0 0
  %959 = vmatpush1.bf16.msra.mxu0 0
  %960 = vmatprep.subr.bf16.mxu0 0
  %961 = vmatpush1.bf16.msra.mxu0 0
  %962 = vmatprep.subr.bf16.mxu0 0
  %963 = vmatpush1.bf16.msra.mxu0 0
  %964 = vmatprep.mubr.bf16.mxu0 0
  %965 = vmatmul.mubr.bf16.gmra.mrb[0].mxu0 %v177
  %v966 = vpop.f32.mrb[0].mxu0
  %v967 = vadd.f32 0.0, %v966
  %v968 = vpop.f32.mrb[0].mxu0
  %v969 = vpop.f32.mrb[0].mxu0
  %v970 = vpop.f32.mrb[0].mxu0
  %971 = vdwg.mxu0
  %v972 = vadd.f32 %v919, %v967
  %v973 = vxor.u32 %v972, 2147483648
  %v974 = vmul.f32 %v973, 1.442695
  %v975 = vpow.pop %v974
  %v976 = vadd.f32 %v975, 1.0
  %v977 = vrcp.pop %v976
  %v978 = vmul.f32 1.0, %v977
  %v979 = vtanh.pop %v972
  %v980 = vmul.f32 %v978, 0.0
  %982 = vrot.lane.b32.xlu0 %v979, 64
  %v983 = vpop.permute.xlu0 %982
  %v985 = vmul.f32 %v978, %v983
  %987 = vrot.lane.b32.xlu0 %v985, 32
  %v988 = vpop.permute.xlu0 %987
  %v990 = vadd.f32 %v980, %v988
  %v991 = vtanh.pop %v990
  %993 = vrot.lane.b32.xlu0 %v991, 64
  %v994 = vpop.permute.xlu0 %993
  %v996 = vmul.f32 %v978, %v994
  %998 = vrot.lane.b32.xlu0 %v996, 32
  %v999 = vpop.permute.xlu0 %998
  %1001 = vst.msk [vmem:[#allocation3] sm:$0xff] %vm175, %v999
  %v1002 = vld [vmem:[#allocation6 + $0x8] sm:$0xff]
  %v1003 = vpack.c.bf16 %v996, %v996
  %1005 = vrot.lane.b32.xlu0 %v1003, 32
  %v1006 = vpop.permute.xlu0 %1005
  %v1008 = vsel %vm175, %v1006, 0
  %1010 = vmatprep.subr.bf16.mxu0 0
  %1011 = vmatpush1.bf16.msra.mxu0 %v928
  %1012 = vmatprep.subr.bf16.mxu0 0
  %1013 = vmatpush1.bf16.msra.mxu0 %v929
  %1014 = vmatprep.subr.bf16.mxu0 0
  %1015 = vmatpush1.bf16.msra.mxu0 0
  %1016 = vmatprep.subr.bf16.mxu0 0
  %1017 = vmatpush1.bf16.msra.mxu0 0
  %1018 = vmatprep.subr.bf16.mxu0 0
  %1019 = vmatpush1.bf16.msra.mxu0 0
  %1020 = vmatprep.subr.bf16.mxu0 0
  %1021 = vmatpush1.bf16.msra.mxu0 0
  %1022 = vmatprep.subr.bf16.mxu0 0
  %1023 = vmatpush1.bf16.msra.mxu0 0
  %1024 = vmatprep.subr.bf16.mxu0 0
  %1025 = vmatpush1.bf16.msra.mxu0 0
  %1026 = vmatprep.subr.bf16.mxu0 0
  %1027 = vmatpush1.bf16.msra.mxu0 0
  %1028 = vmatprep.subr.bf16.mxu0 0
  %1029 = vmatpush1.bf16.msra.mxu0 0
  %1030 = vmatprep.subr.bf16.mxu0 0
  %1031 = vmatpush1.bf16.msra.mxu0 0
  %1032 = vmatprep.subr.bf16.mxu0 0
  %1033 = vmatpush1.bf16.msra.mxu0 0
  %1034 = vmatprep.subr.bf16.mxu0 0
  %1035 = vmatpush1.bf16.msra.mxu0 0
  %1036 = vmatprep.subr.bf16.mxu0 0
  %1037 = vmatpush1.bf16.msra.mxu0 0
  %1038 = vmatprep.subr.bf16.mxu0 0
  %1039 = vmatpush1.bf16.msra.mxu0 0
  %1040 = vmatprep.subr.bf16.mxu0 0
  %1041 = vmatpush1.bf16.msra.mxu0 0
  %1042 = vmatprep.mubr.bf16.mxu0 0
  %1043 = vmatmul.mubr.bf16.gmra.mrb[0].mxu0 %v1008
  %v1044 = vpop.f32.mrb[0].mxu0
  %v1045 = vadd.f32 0.0, %v1044
  %v1046 = vpop.f32.mrb[0].mxu0
  %v1047 = vpop.f32.mrb[0].mxu0
  %v1048 = vpop.f32.mrb[0].mxu0
  %1049 = vdwg.mxu0
  %v1050 = vadd.f32 %v1002, %v1045
  %v1051 = vxor.u32 %v1050, 2147483648
  %v1052 = vmul.f32 %v1051, 1.442695
  %v1053 = vpow.pop %v1052
  %v1054 = vadd.f32 %v1053, 1.0
  %v1055 = vrcp.pop %v1054
  %v1056 = vmul.f32 1.0, %v1055
  %v1057 = vtanh.pop %v1050
  %v1058 = vmul.f32 %v1056, %v990
  %1060 = vrot.lane.b32.xlu0 %v1057, 64
  %v1061 = vpop.permute.xlu0 %1060
  %v1063 = vmul.f32 %v1056, %v1061
  %1065 = vrot.lane.b32.xlu0 %v1063, 32
  %v1066 = vpop.permute.xlu0 %1065
  %v1068 = vadd.f32 %v1058, %v1066
  %v1069 = vtanh.pop %v1068
  %1071 = vrot.lane.b32.xlu0 %v1069, 64
  %v1072 = vpop.permute.xlu0 %1071
  %v1074 = vmul.f32 %v1056, %v1072
  %1076 = vrot.lane.b32.xlu0 %v1074, 32
  %v1077 = vpop.permute.xlu0 %1076
  %1079 = vst.msk [vmem:[#allocation3 + $0x8] sm:$0xff] %vm175, %v1077
  %v1080 = vld [vmem:[#allocation6 + $0x10] sm:$0xff]
  %v1081 = vpack.c.bf16 %v1074, %v1074
  %1083 = vrot.lane.b32.xlu0 %v1081, 32
  %v1084 = vpop.permute.xlu0 %1083
  %v1086 = vsel %vm175, %v1084, 0
  %1088 = vmatprep.subr.bf16.mxu0 0
  %1089 = vmatpush1.bf16.msra.mxu0 %v928
  %1090 = vmatprep.subr.bf16.mxu0 0
  %1091 = vmatpush1.bf16.msra.mxu0 %v929
  %1092 = vmatprep.subr.bf16.mxu0 0
  %1093 = vmatpush1.bf16.msra.mxu0 0
  %1094 = vmatprep.subr.bf16.mxu0 0
  %1095 = vmatpush1.bf16.msra.mxu0 0
  %1096 = vmatprep.subr.bf16.mxu0 0
  %1097 = vmatpush1.bf16.msra.mxu0 0
  %1098 = vmatprep.subr.bf16.mxu0 0
  %1099 = vmatpush1.bf16.msra.mxu0 0
  %1100 = vmatprep.subr.bf16.mxu0 0
  %1101 = vmatpush1.bf16.msra.mxu0 0
  %1102 = vmatprep.subr.bf16.mxu0 0
  %1103 = vmatpush1.bf16.msra.mxu0 0
  %1104 = vmatprep.subr.bf16.mxu0 0
  %1105 = vmatpush1.bf16.msra.mxu0 0
  %1106 = vmatprep.subr.bf16.mxu0 0
  %1107 = vmatpush1.bf16.msra.mxu0 0
  %1108 = vmatprep.subr.bf16.mxu0 0
  %1109 = vmatpush1.bf16.msra.mxu0 0
  %1110 = vmatprep.subr.bf16.mxu0 0
  %1111 = vmatpush1.bf16.msra.mxu0 0
  %1112 = vmatprep.subr.bf16.mxu0 0
  %1113 = vmatpush1.bf16.msra.mxu0 0
  %1114 = vmatprep.subr.bf16.mxu0 0
  %1115 = vmatpush1.bf16.msra.mxu0 0
  %1116 = vmatprep.subr.bf16.mxu0 0
  %1117 = vmatpush1.bf16.msra.mxu0 0
  %1118 = vmatprep.subr.bf16.mxu0 0
  %1119 = vmatpush1.bf16.msra.mxu0 0
  %1120 = vmatprep.mubr.bf16.mxu0 0
  %1121 = vmatmul.mubr.bf16.gmra.mrb[0].mxu0 %v1086
  %v1122 = vpop.f32.mrb[0].mxu0
  %v1123 = vadd.f32 0.0, %v1122
  %v1124 = vpop.f32.mrb[0].mxu0
  %v1125 = vpop.f32.mrb[0].mxu0
  %v1126 = vpop.f32.mrb[0].mxu0
  %1127 = vdwg.mxu0
  %v1128 = vadd.f32 %v1080, %v1123
  %v1129 = vxor.u32 %v1128, 2147483648
  %v1130 = vmul.f32 %v1129, 1.442695
  %v1131 = vpow.pop %v1130
  %v1132 = vadd.f32 %v1131, 1.0
  %v1133 = vrcp.pop %v1132
  %v1134 = vmul.f32 1.0, %v1133
  %v1135 = vtanh.pop %v1128
  %v1136 = vmul.f32 %v1134, %v1068
  %1138 = vrot.lane.b32.xlu0 %v1135, 64
  %v1139 = vpop.permute.xlu0 %1138
  %v1141 = vmul.f32 %v1134, %v1139
  %1143 = vrot.lane.b32.xlu0 %v1141, 32
  %v1144 = vpop.permute.xlu0 %1143
  %v1146 = vadd.f32 %v1136, %v1144
  %v1147 = vtanh.pop %v1146
  %1149 = vrot.lane.b32.xlu0 %v1147, 64
  %v1150 = vpop.permute.xlu0 %1149
  %v1152 = vmul.f32 %v1134, %v1150
  %1154 = vrot.lane.b32.xlu0 %v1152, 32
  %v1155 = vpop.permute.xlu0 %1154
  %1157 = vst.msk [vmem:[#allocation3 + $0x10] sm:$0xff] %vm175, %v1155
  %v1158 = vld [vmem:[#allocation6 + $0x18] sm:$0xff]
  %v1159 = vpack.c.bf16 %v1152, %v1152
  %1161 = vrot.lane.b32.xlu0 %v1159, 32
  %v1162 = vpop.permute.xlu0 %1161
  %v1164 = vsel %vm175, %v1162, 0
  %1166 = vmatprep.subr.bf16.mxu0 0
  %1167 = vmatpush1.bf16.msra.mxu0 %v928
  %1168 = vmatprep.subr.bf16.mxu0 0
  %1169 = vmatpush1.bf16.msra.mxu0 %v929
  %1170 = vmatprep.subr.bf16.mxu0 0
  %1171 = vmatpush1.bf16.msra.mxu0 0
  %1172 = vmatprep.subr.bf16.mxu0 0
  %1173 = vmatpush1.bf16.msra.mxu0 0
  %1174 = vmatprep.subr.bf16.mxu0 0
  %1175 = vmatpush1.bf16.msra.mxu0 0
  %1176 = vmatprep.subr.bf16.mxu0 0
  %1177 = vmatpush1.bf16.msra.mxu0 0
  %1178 = vmatprep.subr.bf16.mxu0 0
  %1179 = vmatpush1.bf16.msra.mxu0 0
  %1180 = vmatprep.subr.bf16.mxu0 0
  %1181 = vmatpush1.bf16.msra.mxu0 0
  %1182 = vmatprep.subr.bf16.mxu0 0
  %1183 = vmatpush1.bf16.msra.mxu0 0
  %1184 = vmatprep.subr.bf16.mxu0 0
  %1185 = vmatpush1.bf16.msra.mxu0 0
  %1186 = vmatprep.subr.bf16.mxu0 0
  %1187 = vmatpush1.bf16.msra.mxu0 0
  %1188 = vmatprep.subr.bf16.mxu0 0
  %1189 = vmatpush1.bf16.msra.mxu0 0
  %1190 = vmatprep.subr.bf16.mxu0 0
  %1191 = vmatpush1.bf16.msra.mxu0 0
  %1192 = vmatprep.subr.bf16.mxu0 0
  %1193 = vmatpush1.bf16.msra.mxu0 0
  %1194 = vmatprep.subr.bf16.mxu0 0
  %1195 = vmatpush1.bf16.msra.mxu0 0
  %1196 = vmatprep.subr.bf16.mxu0 0
  %1197 = vmatpush1.bf16.msra.mxu0 0
  %1198 = vmatprep.mubr.bf16.mxu0 0
  %1199 = vmatmul.mubr.bf16.gmra.mrb[0].mxu0 %v1164
  %v1200 = vpop.f32.mrb[0].mxu0
  %v1201 = vadd.f32 0.0, %v1200
  %v1202 = vpop.f32.mrb[0].mxu0
  %v1203 = vpop.f32.mrb[0].mxu0
  %v1204 = vpop.f32.mrb[0].mxu0
  %1205 = vdwg.mxu0
  %v1206 = vadd.f32 %v1158, %v1201
  %v1207 = vxor.u32 %v1206, 2147483648
  %v1208 = vmul.f32 %v1207, 1.442695
  %v1209 = vpow.pop %v1208
  %v1210 = vadd.f32 %v1209, 1.0
  %v1211 = vrcp.pop %v1210
  %v1212 = vmul.f32 1.0, %v1211
  %v1213 = vtanh.pop %v1206
  %v1214 = vmul.f32 %v1212, %v1146
  %1216 = vrot.lane.b32.xlu0 %v1213, 64
  %v1217 = vpop.permute.xlu0 %1216
  %v1219 = vmul.f32 %v1212, %v1217
  %1221 = vrot.lane.b32.xlu0 %v1219, 32
  %v1222 = vpop.permute.xlu0 %1221
  %v1224 = vadd.f32 %v1214, %v1222
  %v1225 = vtanh.pop %v1224
  %1227 = vrot.lane.b32.xlu0 %v1225, 64
  %v1228 = vpop.permute.xlu0 %1227
  %v1230 = vmul.f32 %v1212, %v1228
  %1232 = vrot.lane.b32.xlu0 %v1230, 32
  %v1233 = vpop.permute.xlu0 %1232
  %1235 = vst.msk [vmem:[#allocation3 + $0x18] sm:$0xff] %vm175, %v1233
  %v1236 = vld [vmem:[#allocation6 + $0x20] sm:$0xff]
  %v1237 = vpack.c.bf16 %v1230, %v1230
  %1239 = vrot.lane.b32.xlu0 %v1237, 32
  %v1240 = vpop.permute.xlu0 %1239
  %v1242 = vsel %vm175, %v1240, 0
  %1244 = vmatprep.subr.bf16.mxu0 0
  %1245 = vmatpush1.bf16.msra.mxu0 %v928
  %1246 = vmatprep.subr.bf16.mxu0 0
  %1247 = vmatpush1.bf16.msra.mxu0 %v929
  %1248 = vmatprep.subr.bf16.mxu0 0
  %1249 = vmatpush1.bf16.msra.mxu0 0
  %1250 = vmatprep.subr.bf16.mxu0 0
  %1251 = vmatpush1.bf16.msra.mxu0 0
  %1252 = vmatprep.subr.bf16.mxu0 0
  %1253 = vmatpush1.bf16.msra.mxu0 0
  %1254 = vmatprep.subr.bf16.mxu0 0
  %1255 = vmatpush1.bf16.msra.mxu0 0
  %1256 = vmatprep.subr.bf16.mxu0 0
  %1257 = vmatpush1.bf16.msra.mxu0 0
  %1258 = vmatprep.subr.bf16.mxu0 0
  %1259 = vmatpush1.bf16.msra.mxu0 0
  %1260 = vmatprep.subr.bf16.mxu0 0
  %1261 = vmatpush1.bf16.msra.mxu0 0
  %1262 = vmatprep.subr.bf16.mxu0 0
  %1263 = vmatpush1.bf16.msra.mxu0 0
  %1264 = vmatprep.subr.bf16.mxu0 0
  %1265 = vmatpush1.bf16.msra.mxu0 0
  %1266 = vmatprep.subr.bf16.mxu0 0
  %1267 = vmatpush1.bf16.msra.mxu0 0
  %1268 = vmatprep.subr.bf16.mxu0 0
  %1269 = vmatpush1.bf16.msra.mxu0 0
  %1270 = vmatprep.subr.bf16.mxu0 0
  %1271 = vmatpush1.bf16.msra.mxu0 0
  %1272 = vmatprep.subr.bf16.mxu0 0
  %1273 = vmatpush1.bf16.msra.mxu0 0
  %1274 = vmatprep.subr.bf16.mxu0 0
  %1275 = vmatpush1.bf16.msra.mxu0 0
  %1276 = vmatprep.mubr.bf16.mxu0 0
  %1277 = vmatmul.mubr.bf16.gmra.mrb[0].mxu0 %v1242
  %v1278 = vpop.f32.mrb[0].mxu0
  %v1279 = vadd.f32 0.0, %v1278
  %v1280 = vpop.f32.mrb[0].mxu0
  %v1281 = vpop.f32.mrb[0].mxu0
  %v1282 = vpop.f32.mrb[0].mxu0
  %1283 = vdwg.mxu0
  %v1284 = vadd.f32 %v1236, %v1279
  %v1285 = vxor.u32 %v1284, 2147483648
  %v1286 = vmul.f32 %v1285, 1.442695
  %v1287 = vpow.pop %v1286
  %v1288 = vadd.f32 %v1287, 1.0
  %v1289 = vrcp.pop %v1288
  %v1290 = vmul.f32 1.0, %v1289
  %v1291 = vtanh.pop %v1284
  %v1292 = vmul.f32 %v1290, %v1224
  %1294 = vrot.lane.b32.xlu0 %v1291, 64
  %v1295 = vpop.permute.xlu0 %1294
  %v1297 = vmul.f32 %v1290, %v1295
  %1299 = vrot.lane.b32.xlu0 %v1297, 32
  %v1300 = vpop.permute.xlu0 %1299
  %v1302 = vadd.f32 %v1292, %v1300
  %v1303 = vtanh.pop %v1302
  %1305 = vrot.lane.b32.xlu0 %v1303, 64
  %v1306 = vpop.permute.xlu0 %1305
  %v1308 = vmul.f32 %v1290, %v1306
  %1310 = vrot.lane.b32.xlu0 %v1308, 32
  %v1311 = vpop.permute.xlu0 %1310
  %1313 = vst.msk [vmem:[#allocation3 + $0x20] sm:$0xff] %vm175, %v1311
  %v1314 = vld [vmem:[#allocation6 + $0x28] sm:$0xff]
  %v1315 = vpack.c.bf16 %v1308, %v1308
  %1317 = vrot.lane.b32.xlu0 %v1315, 32
  %v1318 = vpop.permute.xlu0 %1317
  %v1320 = vsel %vm175, %v1318, 0
  %1322 = vmatprep.subr.bf16.mxu0 0
  %1323 = vmatpush1.bf16.msra.mxu0 %v928
  %1324 = vmatprep.subr.bf16.mxu0 0
  %1325 = vmatpush1.bf16.msra.mxu0 %v929
  %1326 = vmatprep.subr.bf16.mxu0 0
  %1327 = vmatpush1.bf16.msra.mxu0 0
  %1328 = vmatprep.subr.bf16.mxu0 0
  %1329 = vmatpush1.bf16.msra.mxu0 0
  %1330 = vmatprep.subr.bf16.mxu0 0
  %1331 = vmatpush1.bf16.msra.mxu0 0
  %1332 = vmatprep.subr.bf16.mxu0 0
  %1333 = vmatpush1.bf16.msra.mxu0 0
  %1334 = vmatprep.subr.bf16.mxu0 0
  %1335 = vmatpush1.bf16.msra.mxu0 0
  %1336 = vmatprep.subr.bf16.mxu0 0
  %1337 = vmatpush1.bf16.msra.mxu0 0
  %1338 = vmatprep.subr.bf16.mxu0 0
  %1339 = vmatpush1.bf16.msra.mxu0 0
  %1340 = vmatprep.subr.bf16.mxu0 0
  %1341 = vmatpush1.bf16.msra.mxu0 0
  %1342 = vmatprep.subr.bf16.mxu0 0
  %1343 = vmatpush1.bf16.msra.mxu0 0
  %1344 = vmatprep.subr.bf16.mxu0 0
  %1345 = vmatpush1.bf16.msra.mxu0 0
  %1346 = vmatprep.subr.bf16.mxu0 0
  %1347 = vmatpush1.bf16.msra.mxu0 0
  %1348 = vmatprep.subr.bf16.mxu0 0
  %1349 = vmatpush1.bf16.msra.mxu0 0
  %1350 = vmatprep.subr.bf16.mxu0 0
  %1351 = vmatpush1.bf16.msra.mxu0 0
  %1352 = vmatprep.subr.bf16.mxu0 0
  %1353 = vmatpush1.bf16.msra.mxu0 0
  %1354 = vmatprep.mubr.bf16.mxu0 0
  %1355 = vmatmul.mubr.bf16.gmra.mrb[0].mxu0 %v1320
  %v1356 = vpop.f32.mrb[0].mxu0
  %v1357 = vadd.f32 0.0, %v1356
  %v1358 = vpop.f32.mrb[0].mxu0
  %v1359 = vpop.f32.mrb[0].mxu0
  %v1360 = vpop.f32.mrb[0].mxu0
  %1361 = vdwg.mxu0
  %v1362 = vadd.f32 %v1314, %v1357
  %v1363 = vxor.u32 %v1362, 2147483648
  %v1364 = vmul.f32 %v1363, 1.442695
  %v1365 = vpow.pop %v1364
  %v1366 = vadd.f32 %v1365, 1.0
  %v1367 = vrcp.pop %v1366
  %v1368 = vmul.f32 1.0, %v1367
  %v1369 = vtanh.pop %v1362
  %v1370 = vmul.f32 %v1368, %v1302
  %1372 = vrot.lane.b32.xlu0 %v1369, 64
  %v1373 = vpop.permute.xlu0 %1372
  %v1375 = vmul.f32 %v1368, %v1373
  %1377 = vrot.lane.b32.xlu0 %v1375, 32
  %v1378 = vpop.permute.xlu0 %1377
  %v1380 = vadd.f32 %v1370, %v1378
  %v1381 = vtanh.pop %v1380
  %1383 = vrot.lane.b32.xlu0 %v1381, 64
  %v1384 = vpop.permute.xlu0 %1383
  %v1386 = vmul.f32 %v1368, %v1384
  %1388 = vrot.lane.b32.xlu0 %v1386, 32
  %v1389 = vpop.permute.xlu0 %1388
  %1391 = vst.msk [vmem:[#allocation3 + $0x28] sm:$0xff] %vm175, %v1389
  %v1392 = vld [vmem:[#allocation6 + $0x30] sm:$0xff]
  %v1393 = vpack.c.bf16 %v1386, %v1386
  %1395 = vrot.lane.b32.xlu0 %v1393, 32
  %v1396 = vpop.permute.xlu0 %1395
  %v1398 = vsel %vm175, %v1396, 0
  %1400 = vmatprep.subr.bf16.mxu0 0
  %1401 = vmatpush1.bf16.msra.mxu0 %v928
  %1402 = vmatprep.subr.bf16.mxu0 0
  %1403 = vmatpush1.bf16.msra.mxu0 %v929
  %1404 = vmatprep.subr.bf16.mxu0 0
  %1405 = vmatpush1.bf16.msra.mxu0 0
  %1406 = vmatprep.subr.bf16.mxu0 0
  %1407 = vmatpush1.bf16.msra.mxu0 0
  %1408 = vmatprep.subr.bf16.mxu0 0
  %1409 = vmatpush1.bf16.msra.mxu0 0
  %1410 = vmatprep.subr.bf16.mxu0 0
  %1411 = vmatpush1.bf16.msra.mxu0 0
  %1412 = vmatprep.subr.bf16.mxu0 0
  %1413 = vmatpush1.bf16.msra.mxu0 0
  %1414 = vmatprep.subr.bf16.mxu0 0
  %1415 = vmatpush1.bf16.msra.mxu0 0
  %1416 = vmatprep.subr.bf16.mxu0 0
  %1417 = vmatpush1.bf16.msra.mxu0 0
  %1418 = vmatprep.subr.bf16.mxu0 0
  %1419 = vmatpush1.bf16.msra.mxu0 0
  %1420 = vmatprep.subr.bf16.mxu0 0
  %1421 = vmatpush1.bf16.msra.mxu0 0
  %1422 = vmatprep.subr.bf16.mxu0 0
  %1423 = vmatpush1.bf16.msra.mxu0 0
  %1424 = vmatprep.subr.bf16.mxu0 0
  %1425 = vmatpush1.bf16.msra.mxu0 0
  %1426 = vmatprep.subr.bf16.mxu0 0
  %1427 = vmatpush1.bf16.msra.mxu0 0
  %1428 = vmatprep.subr.bf16.mxu0 0
  %1429 = vmatpush1.bf16.msra.mxu0 0
  %1430 = vmatprep.subr.bf16.mxu0 0
  %1431 = vmatpush1.bf16.msra.mxu0 0
  %1432 = vmatprep.mubr.bf16.mxu0 0
  %1433 = vmatmul.mubr.bf16.gmra.mrb[0].mxu0 %v1398
  %v1434 = vpop.f32.mrb[0].mxu0
  %v1435 = vadd.f32 0.0, %v1434
  %v1436 = vpop.f32.mrb[0].mxu0
  %v1437 = vpop.f32.mrb[0].mxu0
  %v1438 = vpop.f32.mrb[0].mxu0
  %1439 = vdwg.mxu0
  %v1440 = vadd.f32 %v1392, %v1435
  %v1441 = vxor.u32 %v1440, 2147483648
  %v1442 = vmul.f32 %v1441, 1.442695
  %v1443 = vpow.pop %v1442
  %v1444 = vadd.f32 %v1443, 1.0
  %v1445 = vrcp.pop %v1444
  %v1446 = vmul.f32 1.0, %v1445
  %v1447 = vtanh.pop %v1440
  %v1448 = vmul.f32 %v1446, %v1380
  %1450 = vrot.lane.b32.xlu0 %v1447, 64
  %v1451 = vpop.permute.xlu0 %1450
  %v1453 = vmul.f32 %v1446, %v1451
  %1455 = vrot.lane.b32.xlu0 %v1453, 32
  %v1456 = vpop.permute.xlu0 %1455
  %v1458 = vadd.f32 %v1448, %v1456
  %v1459 = vtanh.pop %v1458
  %1461 = vrot.lane.b32.xlu0 %v1459, 64
  %v1462 = vpop.permute.xlu0 %1461
  %v1464 = vmul.f32 %v1446, %v1462
  %1466 = vrot.lane.b32.xlu0 %v1464, 32
  %v1467 = vpop.permute.xlu0 %1466
  %1469 = vst.msk [vmem:[#allocation3 + $0x30] sm:$0xff] %vm175, %v1467
  %v1470 = vld [vmem:[#allocation6 + $0x38] sm:$0xff]
  %v1471 = vpack.c.bf16 %v1464, %v1464
  %1473 = vrot.lane.b32.xlu0 %v1471, 32
  %v1474 = vpop.permute.xlu0 %1473
  %v1476 = vsel %vm175, %v1474, 0
  %1478 = vmatprep.subr.bf16.mxu0 0
  %1479 = vmatpush1.bf16.msra.mxu0 %v928
  %1480 = vmatprep.subr.bf16.mxu0 0
  %1481 = vmatpush1.bf16.msra.mxu0 %v929
  %1482 = vmatprep.subr.bf16.mxu0 0
  %1483 = vmatpush1.bf16.msra.mxu0 0
  %1484 = vmatprep.subr.bf16.mxu0 0
  %1485 = vmatpush1.bf16.msra.mxu0 0
  %1486 = vmatprep.subr.bf16.mxu0 0
  %1487 = vmatpush1.bf16.msra.mxu0 0
  %1488 = vmatprep.subr.bf16.mxu0 0
  %1489 = vmatpush1.bf16.msra.mxu0 0
  %1490 = vmatprep.subr.bf16.mxu0 0
  %1491 = vmatpush1.bf16.msra.mxu0 0
  %1492 = vmatprep.subr.bf16.mxu0 0
  %1493 = vmatpush1.bf16.msra.mxu0 0
  %1494 = vmatprep.subr.bf16.mxu0 0
  %1495 = vmatpush1.bf16.msra.mxu0 0
  %1496 = vmatprep.subr.bf16.mxu0 0
  %1497 = vmatpush1.bf16.msra.mxu0 0
  %1498 = vmatprep.subr.bf16.mxu0 0
  %1499 = vmatpush1.bf16.msra.mxu0 0
  %1500 = vmatprep.subr.bf16.mxu0 0
  %1501 = vmatpush1.bf16.msra.mxu0 0
  %1502 = vmatprep.subr.bf16.mxu0 0
  %1503 = vmatpush1.bf16.msra.mxu0 0
  %1504 = vmatprep.subr.bf16.mxu0 0
  %1505 = vmatpush1.bf16.msra.mxu0 0
  %1506 = vmatprep.subr.bf16.mxu0 0
  %1507 = vmatpush1.bf16.msra.mxu0 0
  %1508 = vmatprep.subr.bf16.mxu0 0
  %1509 = vmatpush1.bf16.msra.mxu0 0
  %1510 = vmatprep.mubr.bf16.mxu0 0
  %1511 = vmatmul.mubr.bf16.gmra.mrb[0].mxu0 %v1476
  %v1512 = vpop.f32.mrb[0].mxu0
  %v1513 = vadd.f32 0.0, %v1512
  %v1514 = vpop.f32.mrb[0].mxu0
  %v1515 = vpop.f32.mrb[0].mxu0
  %v1516 = vpop.f32.mrb[0].mxu0
  %1517 = vdwg.mxu0
  %v1518 = vadd.f32 %v1470, %v1513
  %v1519 = vxor.u32 %v1518, 2147483648
  %v1520 = vmul.f32 %v1519, 1.442695
  %v1521 = vpow.pop %v1520
  %v1522 = vadd.f32 %v1521, 1.0
  %v1523 = vrcp.pop %v1522
  %v1524 = vmul.f32 1.0, %v1523
  %v1525 = vtanh.pop %v1518
  %v1526 = vmul.f32 %v1524, %v1458
  %1528 = vrot.lane.b32.xlu0 %v1525, 64
  %v1529 = vpop.permute.xlu0 %1528
  %v1531 = vmul.f32 %v1524, %v1529
  %1533 = vrot.lane.b32.xlu0 %v1531, 32
  %v1534 = vpop.permute.xlu0 %1533
  %v1536 = vadd.f32 %v1526, %v1534
  %v1537 = vtanh.pop %v1536
  %1539 = vrot.lane.b32.xlu0 %v1537, 64
  %v1540 = vpop.permute.xlu0 %1539
  %v1542 = vmul.f32 %v1524, %v1540
  %1544 = vrot.lane.b32.xlu0 %v1542, 32
  %v1545 = vpop.permute.xlu0 %1544
  %1547 = vst.msk [vmem:[#allocation3 + $0x38] sm:$0xff] %vm175, %v1545
  %v1548 = vld [vmem:[%s7] sm:$0xf]
  %v1549 = vld [vmem:[%s7 + $0x4] sm:$0xf]
  %v1550 = vld [vmem:[%s7 + $0x8] sm:$0xf]
  %v1551 = vld [vmem:[%s7 + $0xc] sm:$0xf]
  %v1552 = vld [vmem:[%s8] sm:$0xf]
  %v1553 = vld [vmem:[%s8 + $0x4] sm:$0xf]
  %v1554 = vld [vmem:[%s9] sm:$0x1]
  %v1555 = vld [vmem:[#allocation3] sm:$0xff]
  %v1556 = vld [vmem:[#allocation3 + $0x8] sm:$0xff]
  %v1557 = vld [vmem:[#allocation3 + $0x10] sm:$0xff]
  %v1558 = vld [vmem:[#allocation3 + $0x18] sm:$0xff]
  %v1559 = vld [vmem:[#allocation3 + $0x20] sm:$0xff]
  %v1560 = vld [vmem:[#allocation3 + $0x28] sm:$0xff]
  %v1561 = vld [vmem:[#allocation3 + $0x30] sm:$0xff]
  %v1562 = vld [vmem:[#allocation3 + $0x38] sm:$0xff]
  %v1563 = vpack.c.bf16 %v1556, %v1555
  %v1564 = vpack.c.bf16 %v1558, %v1557
  %v1565 = vpack.c.bf16 %v1560, %v1559
  %v1566 = vpack.c.bf16 %v1562, %v1561
  %v1568 = vlaneseq
  %v1569 = vshrl.u32 %v1568, 7
  %v1570 = vsub.s32 0, %v1569
  %v1571 = vrot.slane %v1554, %v1570
  %v1577 = vunpack.c.l.b16 %v1548
  %v1578 = vunpack.c.l.b16 %v1549
  %v1579 = vunpack.c.l.b16 %v1550
  %v1580 = vunpack.c.l.b16 %v1551
  %v1581 = vpack.c.b16 %v1578, %v1577
  %v1582 = vpack.c.b16 %v1580, %v1579
  %v1586 = vsel %vm175, %v1563, 0
  %v1589 = vsel %vm175, %v1564, 0
  %v1592 = vsel %vm175, %v1565, 0
  %v1595 = vsel %vm175, %v1566, 0
  %1597 = vmatprep.subr.bf16.mxu0 0
  %1598 = vmatpush1.bf16.msra.mxu0 %v1581
  %1599 = vmatprep.subr.bf16.mxu0 0
  %1600 = vmatpush1.bf16.msra.mxu0 %v1582
  %1601 = vmatprep.subr.bf16.mxu0 0
  %1602 = vmatpush1.bf16.msra.mxu0 0
  %1603 = vmatprep.subr.bf16.mxu0 0
  %1604 = vmatpush1.bf16.msra.mxu0 0
  %1605 = vmatprep.subr.bf16.mxu0 0
  %1606 = vmatpush1.bf16.msra.mxu0 0
  %1607 = vmatprep.subr.bf16.mxu0 0
  %1608 = vmatpush1.bf16.msra.mxu0 0
  %1609 = vmatprep.subr.bf16.mxu0 0
  %1610 = vmatpush1.bf16.msra.mxu0 0
  %1611 = vmatprep.subr.bf16.mxu0 0
  %1612 = vmatpush1.bf16.msra.mxu0 0
  %1613 = vmatprep.subr.bf16.mxu0 0
  %1614 = vmatpush1.bf16.msra.mxu0 0
  %1615 = vmatprep.subr.bf16.mxu0 0
  %1616 = vmatpush1.bf16.msra.mxu0 0
  %1617 = vmatprep.subr.bf16.mxu0 0
  %1618 = vmatpush1.bf16.msra.mxu0 0
  %1619 = vmatprep.subr.bf16.mxu0 0
  %1620 = vmatpush1.bf16.msra.mxu0 0
  %1621 = vmatprep.subr.bf16.mxu0 0
  %1622 = vmatpush1.bf16.msra.mxu0 0
  %1623 = vmatprep.subr.bf16.mxu0 0
  %1624 = vmatpush1.bf16.msra.mxu0 0
  %1625 = vmatprep.subr.bf16.mxu0 0
  %1626 = vmatpush1.bf16.msra.mxu0 0
  %1627 = vmatprep.subr.bf16.mxu0 0
  %1628 = vmatpush1.bf16.msra.mxu0 0
  %1629 = vmatprep.mubr.bf16.mxu0 0
  %1630 = vmatmul.mubr.bf16.gmra.mrb[0].mxu0 %v1586
  %v1631 = vpop.f32.mrb[0].mxu0
  %v1632 = vadd.f32 %v1571, %v1631
  %v1633 = vpop.f32.mrb[0].mxu0
  %v1634 = vpop.f32.mrb[0].mxu0
  %v1635 = vadd.f32 %v1571, %v1634
  %v1636 = vpop.f32.mrb[0].mxu0
  %1637 = vmatprep.mubr.bf16.mxu0 0
  %1638 = vmatmul.mubr.bf16.gmra.mrb[0].mxu0 %v1589
  %v1639 = vpop.f32.mrb[0].mxu0
  %v1640 = vadd.f32 %v1571, %v1639
  %v1641 = vpop.f32.mrb[0].mxu0
  %v1642 = vpop.f32.mrb[0].mxu0
  %v1643 = vadd.f32 %v1571, %v1642
  %v1644 = vpop.f32.mrb[0].mxu0
  %1645 = vmatprep.mubr.bf16.mxu0 0
  %1646 = vmatmul.mubr.bf16.gmra.mrb[0].mxu0 %v1592
  %v1647 = vpop.f32.mrb[0].mxu0
  %v1648 = vadd.f32 %v1571, %v1647
  %v1649 = vpop.f32.mrb[0].mxu0
  %v1650 = vpop.f32.mrb[0].mxu0
  %v1651 = vadd.f32 %v1571, %v1650
  %v1652 = vpop.f32.mrb[0].mxu0
  %1653 = vmatprep.mubr.bf16.mxu0 0
  %1654 = vmatmul.mubr.bf16.gmra.mrb[0].mxu0 %v1595
  %v1655 = vpop.f32.mrb[0].mxu0
  %v1656 = vadd.f32 %v1571, %v1655
  %v1657 = vpop.f32.mrb[0].mxu0
  %v1658 = vpop.f32.mrb[0].mxu0
  %v1659 = vadd.f32 %v1571, %v1658
  %v1660 = vpop.f32.mrb[0].mxu0
  %1661 = vdwg.mxu0
  %vm1662 = vcmask 523264
  %1663 = vst.msk [vmem:[#allocation7] sm:$0xff] %vm1662, %v1632
  %1664 = vst.msk [vmem:[#allocation7 + $0x8] sm:$0xff] %vm1662, %v1635
  %1665 = vst.msk [vmem:[#allocation7 + $0x10] sm:$0xff] %vm1662, %v1640
  %1666 = vst.msk [vmem:[#allocation7 + $0x18] sm:$0xff] %vm1662, %v1643
  %1667 = vst.msk [vmem:[#allocation7 + $0x20] sm:$0xff] %vm1662, %v1648
  %1668 = vst.msk [vmem:[#allocation7 + $0x28] sm:$0xff] %vm1662, %v1651
  %1669 = vst.msk [vmem:[#allocation7 + $0x30] sm:$0xff] %vm1662, %v1656
  %1670 = vst.msk [vmem:[#allocation7 + $0x38] sm:$0xff] %vm1662, %v1659
  %v1671 = vld [vmem:[#allocation7] sm:$0xff]
  %v1674 = vunpack.c.l.b16 %v1552
  %v1675 = vunpack.c.l.b16 %v1553
  %v1676 = vpack.c.b16 %v1675, %v1674
  %v1678 = vsel %vm76, 0, 0
  %1680 = vmatprep.subr.bf16.mxu0 0
  %1681 = vmatpush1.bf16.msra.mxu0 %v1676
  %1682 = vmatprep.subr.bf16.mxu0 0
  %1683 = vmatpush1.bf16.msra.mxu0 0
  %1684 = vmatprep.subr.bf16.mxu0 0
  %1685 = vmatpush1.bf16.msra.mxu0 0
  %1686 = vmatprep.subr.bf16.mxu0 0
  %1687 = vmatpush1.bf16.msra.mxu0 0
  %1688 = vmatprep.subr.bf16.mxu0 0
  %1689 = vmatpush1.bf16.msra.mxu0 0
  %1690 = vmatprep.subr.bf16.mxu0 0
  %1691 = vmatpush1.bf16.msra.mxu0 0
  %1692 = vmatprep.subr.bf16.mxu0 0
  %1693 = vmatpush1.bf16.msra.mxu0 0
  %1694 = vmatprep.subr.bf16.mxu0 0
  %1695 = vmatpush1.bf16.msra.mxu0 0
  %1696 = vmatprep.subr.bf16.mxu0 0
  %1697 = vmatpush1.bf16.msra.mxu0 0
  %1698 = vmatprep.subr.bf16.mxu0 0
  %1699 = vmatpush1.bf16.msra.mxu0 0
  %1700 = vmatprep.subr.bf16.mxu0 0
  %1701 = vmatpush1.bf16.msra.mxu0 0
  %1702 = vmatprep.subr.bf16.mxu0 0
  %1703 = vmatpush1.bf16.msra.mxu0 0
  %1704 = vmatprep.subr.bf16.mxu0 0
  %1705 = vmatpush1.bf16.msra.mxu0 0
  %1706 = vmatprep.subr.bf16.mxu0 0
  %1707 = vmatpush1.bf16.msra.mxu0 0
  %1708 = vmatprep.subr.bf16.mxu0 0
  %1709 = vmatpush1.bf16.msra.mxu0 0
  %1710 = vmatprep.subr.bf16.mxu0 0
  %1711 = vmatpush1.bf16.msra.mxu0 0
  %1712 = vmatprep.mubr.bf16.mxu0 0
  %1713 = vmatmul.mubr.bf16.gmra.mrb[0].mxu0 %v1678
  %v1714 = vpop.f32.mrb[0].mxu0
  %v1715 = vadd.f32 0.0, %v1714
  %v1716 = vpop.f32.mrb[0].mxu0
  %v1717 = vpop.f32.mrb[0].mxu0
  %v1718 = vpop.f32.mrb[0].mxu0
  %1719 = vdwg.mxu0
  %v1720 = vadd.f32 %v1671, %v1715
  %v1721 = vxor.u32 %v1720, 2147483648
  %v1722 = vmul.f32 %v1721, 1.442695
  %v1723 = vpow.pop %v1722
  %v1724 = vadd.f32 %v1723, 1.0
  %v1725 = vrcp.pop %v1724
  %v1726 = vmul.f32 1.0, %v1725
  %v1727 = vtanh.pop %v1720
  %v1728 = vmul.f32 %v1726, 0.0
  %1730 = vrot.lane.b32.xlu0 %v1727, 96
  %v1731 = vpop.permute.xlu0 %1730
  %v1733 = vmul.f32 %v1726, %v1731
  %1735 = vrot.lane.b32.xlu0 %v1733, 16
  %v1736 = vpop.permute.xlu0 %1735
  %v1738 = vadd.f32 %v1728, %v1736
  %v1739 = vtanh.pop %v1738
  %1741 = vrot.lane.b32.xlu0 %v1739, 32
  %v1742 = vpop.permute.xlu0 %1741
  %v1744 = vmul.f32 %v1726, %v1742
  %1746 = vrot.lane.b32.xlu0 %v1744, 80
  %v1747 = vpop.permute.xlu0 %1746
  %1749 = vst.msk [vmem:[#allocation4] sm:$0xff] %vm76, %v1747
  %v1750 = vld [vmem:[#allocation7 + $0x8] sm:$0xff]
  %v1751 = vpack.c.bf16 %v1744, %v1744
  %1753 = vrot.lane.b32.xlu0 %v1751, 80
  %v1754 = vpop.permute.xlu0 %1753
  %v1756 = vsel %vm76, %v1754, 0
  %1758 = vmatprep.subr.bf16.mxu0 0
  %1759 = vmatpush1.bf16.msra.mxu0 %v1676
  %1760 = vmatprep.subr.bf16.mxu0 0
  %1761 = vmatpush1.bf16.msra.mxu0 0
  %1762 = vmatprep.subr.bf16.mxu0 0
  %1763 = vmatpush1.bf16.msra.mxu0 0
  %1764 = vmatprep.subr.bf16.mxu0 0
  %1765 = vmatpush1.bf16.msra.mxu0 0
  %1766 = vmatprep.subr.bf16.mxu0 0
  %1767 = vmatpush1.bf16.msra.mxu0 0
  %1768 = vmatprep.subr.bf16.mxu0 0
  %1769 = vmatpush1.bf16.msra.mxu0 0
  %1770 = vmatprep.subr.bf16.mxu0 0
  %1771 = vmatpush1.bf16.msra.mxu0 0
  %1772 = vmatprep.subr.bf16.mxu0 0
  %1773 = vmatpush1.bf16.msra.mxu0 0
  %1774 = vmatprep.subr.bf16.mxu0 0
  %1775 = vmatpush1.bf16.msra.mxu0 0
  %1776 = vmatprep.subr.bf16.mxu0 0
  %1777 = vmatpush1.bf16.msra.mxu0 0
  %1778 = vmatprep.subr.bf16.mxu0 0
  %1779 = vmatpush1.bf16.msra.mxu0 0
  %1780 = vmatprep.subr.bf16.mxu0 0
  %1781 = vmatpush1.bf16.msra.mxu0 0
  %1782 = vmatprep.subr.bf16.mxu0 0
  %1783 = vmatpush1.bf16.msra.mxu0 0
  %1784 = vmatprep.subr.bf16.mxu0 0
  %1785 = vmatpush1.bf16.msra.mxu0 0
  %1786 = vmatprep.subr.bf16.mxu0 0
  %1787 = vmatpush1.bf16.msra.mxu0 0
  %1788 = vmatprep.subr.bf16.mxu0 0
  %1789 = vmatpush1.bf16.msra.mxu0 0
  %1790 = vmatprep.mubr.bf16.mxu0 0
  %1791 = vmatmul.mubr.bf16.gmra.mrb[0].mxu0 %v1756
  %v1792 = vpop.f32.mrb[0].mxu0
  %v1793 = vadd.f32 0.0, %v1792
  %v1794 = vpop.f32.mrb[0].mxu0
  %v1795 = vpop.f32.mrb[0].mxu0
  %v1796 = vpop.f32.mrb[0].mxu0
  %1797 = vdwg.mxu0
  %v1798 = vadd.f32 %v1750, %v1793
  %v1799 = vxor.u32 %v1798, 2147483648
  %v1800 = vmul.f32 %v1799, 1.442695
  %v1801 = vpow.pop %v1800
  %v1802 = vadd.f32 %v1801, 1.0
  %v1803 = vrcp.pop %v1802
  %v1804 = vmul.f32 1.0, %v1803
  %v1805 = vtanh.pop %v1798
  %v1806 = vmul.f32 %v1804, %v1738
  %1808 = vrot.lane.b32.xlu0 %v1805, 96
  %v1809 = vpop.permute.xlu0 %1808
  %v1811 = vmul.f32 %v1804, %v1809
  %1813 = vrot.lane.b32.xlu0 %v1811, 16
  %v1814 = vpop.permute.xlu0 %1813
  %v1816 = vadd.f32 %v1806, %v1814
  %v1817 = vtanh.pop %v1816
  %1819 = vrot.lane.b32.xlu0 %v1817, 32
  %v1820 = vpop.permute.xlu0 %1819
  %v1822 = vmul.f32 %v1804, %v1820
  %1824 = vrot.lane.b32.xlu0 %v1822, 80
  %v1825 = vpop.permute.xlu0 %1824
  %1827 = vst.msk [vmem:[#allocation4 + $0x8] sm:$0xff] %vm76, %v1825
  %v1828 = vld [vmem:[#allocation7 + $0x10] sm:$0xff]
  %v1829 = vpack.c.bf16 %v1822, %v1822
  %1831 = vrot.lane.b32.xlu0 %v1829, 80
  %v1832 = vpop.permute.xlu0 %1831
  %v1834 = vsel %vm76, %v1832, 0
  %1836 = vmatprep.subr.bf16.mxu0 0
  %1837 = vmatpush1.bf16.msra.mxu0 %v1676
  %1838 = vmatprep.subr.bf16.mxu0 0
  %1839 = vmatpush1.bf16.msra.mxu0 0
  %1840 = vmatprep.subr.bf16.mxu0 0
  %1841 = vmatpush1.bf16.msra.mxu0 0
  %1842 = vmatprep.subr.bf16.mxu0 0
  %1843 = vmatpush1.bf16.msra.mxu0 0
  %1844 = vmatprep.subr.bf16.mxu0 0
  %1845 = vmatpush1.bf16.msra.mxu0 0
  %1846 = vmatprep.subr.bf16.mxu0 0
  %1847 = vmatpush1.bf16.msra.mxu0 0
  %1848 = vmatprep.subr.bf16.mxu0 0
  %1849 = vmatpush1.bf16.msra.mxu0 0
  %1850 = vmatprep.subr.bf16.mxu0 0
  %1851 = vmatpush1.bf16.msra.mxu0 0
  %1852 = vmatprep.subr.bf16.mxu0 0
  %1853 = vmatpush1.bf16.msra.mxu0 0
  %1854 = vmatprep.subr.bf16.mxu0 0
  %1855 = vmatpush1.bf16.msra.mxu0 0
  %1856 = vmatprep.subr.bf16.mxu0 0
  %1857 = vmatpush1.bf16.msra.mxu0 0
  %1858 = vmatprep.subr.bf16.mxu0 0
  %1859 = vmatpush1.bf16.msra.mxu0 0
  %1860 = vmatprep.subr.bf16.mxu0 0
  %1861 = vmatpush1.bf16.msra.mxu0 0
  %1862 = vmatprep.subr.bf16.mxu0 0
  %1863 = vmatpush1.bf16.msra.mxu0 0
  %1864 = vmatprep.subr.bf16.mxu0 0
  %1865 = vmatpush1.bf16.msra.mxu0 0
  %1866 = vmatprep.subr.bf16.mxu0 0
  %1867 = vmatpush1.bf16.msra.mxu0 0
  %1868 = vmatprep.mubr.bf16.mxu0 0
  %1869 = vmatmul.mubr.bf16.gmra.mrb[0].mxu0 %v1834
  %v1870 = vpop.f32.mrb[0].mxu0
  %v1871 = vadd.f32 0.0, %v1870
  %v1872 = vpop.f32.mrb[0].mxu0
  %v1873 = vpop.f32.mrb[0].mxu0
  %v1874 = vpop.f32.mrb[0].mxu0
  %1875 = vdwg.mxu0
  %v1876 = vadd.f32 %v1828, %v1871
  %v1877 = vxor.u32 %v1876, 2147483648
  %v1878 = vmul.f32 %v1877, 1.442695
  %v1879 = vpow.pop %v1878
  %v1880 = vadd.f32 %v1879, 1.0
  %v1881 = vrcp.pop %v1880
  %v1882 = vmul.f32 1.0, %v1881
  %v1883 = vtanh.pop %v1876
  %v1884 = vmul.f32 %v1882, %v1816
  %1886 = vrot.lane.b32.xlu0 %v1883, 96
  %v1887 = vpop.permute.xlu0 %1886
  %v1889 = vmul.f32 %v1882, %v1887
  %1891 = vrot.lane.b32.xlu0 %v1889, 16
  %v1892 = vpop.permute.xlu0 %1891
  %v1894 = vadd.f32 %v1884, %v1892
  %v1895 = vtanh.pop %v1894
  %1897 = vrot.lane.b32.xlu0 %v1895, 32
  %v1898 = vpop.permute.xlu0 %1897
  %v1900 = vmul.f32 %v1882, %v1898
  %1902 = vrot.lane.b32.xlu0 %v1900, 80
  %v1903 = vpop.permute.xlu0 %1902
  %1905 = vst.msk [vmem:[#allocation4 + $0x10] sm:$0xff] %vm76, %v1903
  %v1906 = vld [vmem:[#allocation7 + $0x18] sm:$0xff]
  %v1907 = vpack.c.bf16 %v1900, %v1900
  %1909 = vrot.lane.b32.xlu0 %v1907, 80
  %v1910 = vpop.permute.xlu0 %1909
  %v1912 = vsel %vm76, %v1910, 0
  %1914 = vmatprep.subr.bf16.mxu0 0
  %1915 = vmatpush1.bf16.msra.mxu0 %v1676
  %1916 = vmatprep.subr.bf16.mxu0 0
  %1917 = vmatpush1.bf16.msra.mxu0 0
  %1918 = vmatprep.subr.bf16.mxu0 0
  %1919 = vmatpush1.bf16.msra.mxu0 0
  %1920 = vmatprep.subr.bf16.mxu0 0
  %1921 = vmatpush1.bf16.msra.mxu0 0
  %1922 = vmatprep.subr.bf16.mxu0 0
  %1923 = vmatpush1.bf16.msra.mxu0 0
  %1924 = vmatprep.subr.bf16.mxu0 0
  %1925 = vmatpush1.bf16.msra.mxu0 0
  %1926 = vmatprep.subr.bf16.mxu0 0
  %1927 = vmatpush1.bf16.msra.mxu0 0
  %1928 = vmatprep.subr.bf16.mxu0 0
  %1929 = vmatpush1.bf16.msra.mxu0 0
  %1930 = vmatprep.subr.bf16.mxu0 0
  %1931 = vmatpush1.bf16.msra.mxu0 0
  %1932 = vmatprep.subr.bf16.mxu0 0
  %1933 = vmatpush1.bf16.msra.mxu0 0
  %1934 = vmatprep.subr.bf16.mxu0 0
  %1935 = vmatpush1.bf16.msra.mxu0 0
  %1936 = vmatprep.subr.bf16.mxu0 0
  %1937 = vmatpush1.bf16.msra.mxu0 0
  %1938 = vmatprep.subr.bf16.mxu0 0
  %1939 = vmatpush1.bf16.msra.mxu0 0
  %1940 = vmatprep.subr.bf16.mxu0 0
  %1941 = vmatpush1.bf16.msra.mxu0 0
  %1942 = vmatprep.subr.bf16.mxu0 0
  %1943 = vmatpush1.bf16.msra.mxu0 0
  %1944 = vmatprep.subr.bf16.mxu0 0
  %1945 = vmatpush1.bf16.msra.mxu0 0
  %1946 = vmatprep.mubr.bf16.mxu0 0
  %1947 = vmatmul.mubr.bf16.gmra.mrb[0].mxu0 %v1912
  %v1948 = vpop.f32.mrb[0].mxu0
  %v1949 = vadd.f32 0.0, %v1948
  %v1950 = vpop.f32.mrb[0].mxu0
  %v1951 = vpop.f32.mrb[0].mxu0
  %v1952 = vpop.f32.mrb[0].mxu0
  %1953 = vdwg.mxu0
  %v1954 = vadd.f32 %v1906, %v1949
  %v1955 = vxor.u32 %v1954, 2147483648
  %v1956 = vmul.f32 %v1955, 1.442695
  %v1957 = vpow.pop %v1956
  %v1958 = vadd.f32 %v1957, 1.0
  %v1959 = vrcp.pop %v1958
  %v1960 = vmul.f32 1.0, %v1959
  %v1961 = vtanh.pop %v1954
  %v1962 = vmul.f32 %v1960, %v1894
  %1964 = vrot.lane.b32.xlu0 %v1961, 96
  %v1965 = vpop.permute.xlu0 %1964
  %v1967 = vmul.f32 %v1960, %v1965
  %1969 = vrot.lane.b32.xlu0 %v1967, 16
  %v1970 = vpop.permute.xlu0 %1969
  %v1972 = vadd.f32 %v1962, %v1970
  %v1973 = vtanh.pop %v1972
  %1975 = vrot.lane.b32.xlu0 %v1973, 32
  %v1976 = vpop.permute.xlu0 %1975
  %v1978 = vmul.f32 %v1960, %v1976
  %1980 = vrot.lane.b32.xlu0 %v1978, 80
  %v1981 = vpop.permute.xlu0 %1980
  %1983 = vst.msk [vmem:[#allocation4 + $0x18] sm:$0xff] %vm76, %v1981
  %v1984 = vld [vmem:[#allocation7 + $0x20] sm:$0xff]
  %v1985 = vpack.c.bf16 %v1978, %v1978
  %1987 = vrot.lane.b32.xlu0 %v1985, 80
  %v1988 = vpop.permute.xlu0 %1987
  %v1990 = vsel %vm76, %v1988, 0
  %1992 = vmatprep.subr.bf16.mxu0 0
  %1993 = vmatpush1.bf16.msra.mxu0 %v1676
  %1994 = vmatprep.subr.bf16.mxu0 0
  %1995 = vmatpush1.bf16.msra.mxu0 0
  %1996 = vmatprep.subr.bf16.mxu0 0
  %1997 = vmatpush1.bf16.msra.mxu0 0
  %1998 = vmatprep.subr.bf16.mxu0 0
  %1999 = vmatpush1.bf16.msra.mxu0 0
  %2000 = vmatprep.subr.bf16.mxu0 0
  %2001 = vmatpush1.bf16.msra.mxu0 0
  %2002 = vmatprep.subr.bf16.mxu0 0
  %2003 = vmatpush1.bf16.msra.mxu0 0
  %2004 = vmatprep.subr.bf16.mxu0 0
  %2005 = vmatpush1.bf16.msra.mxu0 0
  %2006 = vmatprep.subr.bf16.mxu0 0
  %2007 = vmatpush1.bf16.msra.mxu0 0
  %2008 = vmatprep.subr.bf16.mxu0 0
  %2009 = vmatpush1.bf16.msra.mxu0 0
  %2010 = vmatprep.subr.bf16.mxu0 0
  %2011 = vmatpush1.bf16.msra.mxu0 0
  %2012 = vmatprep.subr.bf16.mxu0 0
  %2013 = vmatpush1.bf16.msra.mxu0 0
  %2014 = vmatprep.subr.bf16.mxu0 0
  %2015 = vmatpush1.bf16.msra.mxu0 0
  %2016 = vmatprep.subr.bf16.mxu0 0
  %2017 = vmatpush1.bf16.msra.mxu0 0
  %2018 = vmatprep.subr.bf16.mxu0 0
  %2019 = vmatpush1.bf16.msra.mxu0 0
  %2020 = vmatprep.subr.bf16.mxu0 0
  %2021 = vmatpush1.bf16.msra.mxu0 0
  %2022 = vmatprep.subr.bf16.mxu0 0
  %2023 = vmatpush1.bf16.msra.mxu0 0
  %2024 = vmatprep.mubr.bf16.mxu0 0
  %2025 = vmatmul.mubr.bf16.gmra.mrb[0].mxu0 %v1990
  %v2026 = vpop.f32.mrb[0].mxu0
  %v2027 = vadd.f32 0.0, %v2026
  %v2028 = vpop.f32.mrb[0].mxu0
  %v2029 = vpop.f32.mrb[0].mxu0
  %v2030 = vpop.f32.mrb[0].mxu0
  %2031 = vdwg.mxu0
  %v2032 = vadd.f32 %v1984, %v2027
  %v2033 = vxor.u32 %v2032, 2147483648
  %v2034 = vmul.f32 %v2033, 1.442695
  %v2035 = vpow.pop %v2034
  %v2036 = vadd.f32 %v2035, 1.0
  %v2037 = vrcp.pop %v2036
  %v2038 = vmul.f32 1.0, %v2037
  %v2039 = vtanh.pop %v2032
  %v2040 = vmul.f32 %v2038, %v1972
  %2042 = vrot.lane.b32.xlu0 %v2039, 96
  %v2043 = vpop.permute.xlu0 %2042
  %v2045 = vmul.f32 %v2038, %v2043
  %2047 = vrot.lane.b32.xlu0 %v2045, 16
  %v2048 = vpop.permute.xlu0 %2047
  %v2050 = vadd.f32 %v2040, %v2048
  %v2051 = vtanh.pop %v2050
  %2053 = vrot.lane.b32.xlu0 %v2051, 32
  %v2054 = vpop.permute.xlu0 %2053
  %v2056 = vmul.f32 %v2038, %v2054
  %2058 = vrot.lane.b32.xlu0 %v2056, 80
  %v2059 = vpop.permute.xlu0 %2058
  %2061 = vst.msk [vmem:[#allocation4 + $0x20] sm:$0xff] %vm76, %v2059
  %v2062 = vld [vmem:[#allocation7 + $0x28] sm:$0xff]
  %v2063 = vpack.c.bf16 %v2056, %v2056
  %2065 = vrot.lane.b32.xlu0 %v2063, 80
  %v2066 = vpop.permute.xlu0 %2065
  %v2068 = vsel %vm76, %v2066, 0
  %2070 = vmatprep.subr.bf16.mxu0 0
  %2071 = vmatpush1.bf16.msra.mxu0 %v1676
  %2072 = vmatprep.subr.bf16.mxu0 0
  %2073 = vmatpush1.bf16.msra.mxu0 0
  %2074 = vmatprep.subr.bf16.mxu0 0
  %2075 = vmatpush1.bf16.msra.mxu0 0
  %2076 = vmatprep.subr.bf16.mxu0 0
  %2077 = vmatpush1.bf16.msra.mxu0 0
  %2078 = vmatprep.subr.bf16.mxu0 0
  %2079 = vmatpush1.bf16.msra.mxu0 0
  %2080 = vmatprep.subr.bf16.mxu0 0
  %2081 = vmatpush1.bf16.msra.mxu0 0
  %2082 = vmatprep.subr.bf16.mxu0 0
  %2083 = vmatpush1.bf16.msra.mxu0 0
  %2084 = vmatprep.subr.bf16.mxu0 0
  %2085 = vmatpush1.bf16.msra.mxu0 0
  %2086 = vmatprep.subr.bf16.mxu0 0
  %2087 = vmatpush1.bf16.msra.mxu0 0
  %2088 = vmatprep.subr.bf16.mxu0 0
  %2089 = vmatpush1.bf16.msra.mxu0 0
  %2090 = vmatprep.subr.bf16.mxu0 0
  %2091 = vmatpush1.bf16.msra.mxu0 0
  %2092 = vmatprep.subr.bf16.mxu0 0
  %2093 = vmatpush1.bf16.msra.mxu0 0
  %2094 = vmatprep.subr.bf16.mxu0 0
  %2095 = vmatpush1.bf16.msra.mxu0 0
  %2096 = vmatprep.subr.bf16.mxu0 0
  %2097 = vmatpush1.bf16.msra.mxu0 0
  %2098 = vmatprep.subr.bf16.mxu0 0
  %2099 = vmatpush1.bf16.msra.mxu0 0
  %2100 = vmatprep.subr.bf16.mxu0 0
  %2101 = vmatpush1.bf16.msra.mxu0 0
  %2102 = vmatprep.mubr.bf16.mxu0 0
  %2103 = vmatmul.mubr.bf16.gmra.mrb[0].mxu0 %v2068
  %v2104 = vpop.f32.mrb[0].mxu0
  %v2105 = vadd.f32 0.0, %v2104
  %v2106 = vpop.f32.mrb[0].mxu0
  %v2107 = vpop.f32.mrb[0].mxu0
  %v2108 = vpop.f32.mrb[0].mxu0
  %2109 = vdwg.mxu0
  %v2110 = vadd.f32 %v2062, %v2105
  %v2111 = vxor.u32 %v2110, 2147483648
  %v2112 = vmul.f32 %v2111, 1.442695
  %v2113 = vpow.pop %v2112
  %v2114 = vadd.f32 %v2113, 1.0
  %v2115 = vrcp.pop %v2114
  %v2116 = vmul.f32 1.0, %v2115
  %v2117 = vtanh.pop %v2110
  %v2118 = vmul.f32 %v2116, %v2050
  %2120 = vrot.lane.b32.xlu0 %v2117, 96
  %v2121 = vpop.permute.xlu0 %2120
  %v2123 = vmul.f32 %v2116, %v2121
  %2125 = vrot.lane.b32.xlu0 %v2123, 16
  %v2126 = vpop.permute.xlu0 %2125
  %v2128 = vadd.f32 %v2118, %v2126
  %v2129 = vtanh.pop %v2128
  %2131 = vrot.lane.b32.xlu0 %v2129, 32
  %v2132 = vpop.permute.xlu0 %2131
  %v2134 = vmul.f32 %v2116, %v2132
  %2136 = vrot.lane.b32.xlu0 %v2134, 80
  %v2137 = vpop.permute.xlu0 %2136
  %2139 = vst.msk [vmem:[#allocation4 + $0x28] sm:$0xff] %vm76, %v2137
  %v2140 = vld [vmem:[#allocation7 + $0x30] sm:$0xff]
  %v2141 = vpack.c.bf16 %v2134, %v2134
  %2143 = vrot.lane.b32.xlu0 %v2141, 80
  %v2144 = vpop.permute.xlu0 %2143
  %v2146 = vsel %vm76, %v2144, 0
  %2148 = vmatprep.subr.bf16.mxu0 0
  %2149 = vmatpush1.bf16.msra.mxu0 %v1676
  %2150 = vmatprep.subr.bf16.mxu0 0
  %2151 = vmatpush1.bf16.msra.mxu0 0
  %2152 = vmatprep.subr.bf16.mxu0 0
  %2153 = vmatpush1.bf16.msra.mxu0 0
  %2154 = vmatprep.subr.bf16.mxu0 0
  %2155 = vmatpush1.bf16.msra.mxu0 0
  %2156 = vmatprep.subr.bf16.mxu0 0
  %2157 = vmatpush1.bf16.msra.mxu0 0
  %2158 = vmatprep.subr.bf16.mxu0 0
  %2159 = vmatpush1.bf16.msra.mxu0 0
  %2160 = vmatprep.subr.bf16.mxu0 0
  %2161 = vmatpush1.bf16.msra.mxu0 0
  %2162 = vmatprep.subr.bf16.mxu0 0
  %2163 = vmatpush1.bf16.msra.mxu0 0
  %2164 = vmatprep.subr.bf16.mxu0 0
  %2165 = vmatpush1.bf16.msra.mxu0 0
  %2166 = vmatprep.subr.bf16.mxu0 0
  %2167 = vmatpush1.bf16.msra.mxu0 0
  %2168 = vmatprep.subr.bf16.mxu0 0
  %2169 = vmatpush1.bf16.msra.mxu0 0
  %2170 = vmatprep.subr.bf16.mxu0 0
  %2171 = vmatpush1.bf16.msra.mxu0 0
  %2172 = vmatprep.subr.bf16.mxu0 0
  %2173 = vmatpush1.bf16.msra.mxu0 0
  %2174 = vmatprep.subr.bf16.mxu0 0
  %2175 = vmatpush1.bf16.msra.mxu0 0
  %2176 = vmatprep.subr.bf16.mxu0 0
  %2177 = vmatpush1.bf16.msra.mxu0 0
  %2178 = vmatprep.subr.bf16.mxu0 0
  %2179 = vmatpush1.bf16.msra.mxu0 0
  %2180 = vmatprep.mubr.bf16.mxu0 0
  %2181 = vmatmul.mubr.bf16.gmra.mrb[0].mxu0 %v2146
  %v2182 = vpop.f32.mrb[0].mxu0
  %v2183 = vadd.f32 0.0, %v2182
  %v2184 = vpop.f32.mrb[0].mxu0
  %v2185 = vpop.f32.mrb[0].mxu0
  %v2186 = vpop.f32.mrb[0].mxu0
  %2187 = vdwg.mxu0
  %v2188 = vadd.f32 %v2140, %v2183
  %v2189 = vxor.u32 %v2188, 2147483648
  %v2190 = vmul.f32 %v2189, 1.442695
  %v2191 = vpow.pop %v2190
  %v2192 = vadd.f32 %v2191, 1.0
  %v2193 = vrcp.pop %v2192
  %v2194 = vmul.f32 1.0, %v2193
  %v2195 = vtanh.pop %v2188
  %v2196 = vmul.f32 %v2194, %v2128
  %2198 = vrot.lane.b32.xlu0 %v2195, 96
  %v2199 = vpop.permute.xlu0 %2198
  %v2201 = vmul.f32 %v2194, %v2199
  %2203 = vrot.lane.b32.xlu0 %v2201, 16
  %v2204 = vpop.permute.xlu0 %2203
  %v2206 = vadd.f32 %v2196, %v2204
  %v2207 = vtanh.pop %v2206
  %2209 = vrot.lane.b32.xlu0 %v2207, 32
  %v2210 = vpop.permute.xlu0 %2209
  %v2212 = vmul.f32 %v2194, %v2210
  %2214 = vrot.lane.b32.xlu0 %v2212, 80
  %v2215 = vpop.permute.xlu0 %2214
  %2217 = vst.msk [vmem:[#allocation4 + $0x30] sm:$0xff] %vm76, %v2215
  %v2218 = vld [vmem:[#allocation7 + $0x38] sm:$0xff]
  %v2219 = vpack.c.bf16 %v2212, %v2212
  %2221 = vrot.lane.b32.xlu0 %v2219, 80
  %v2222 = vpop.permute.xlu0 %2221
  %v2224 = vsel %vm76, %v2222, 0
  %2226 = vmatprep.subr.bf16.mxu0 0
  %2227 = vmatpush1.bf16.msra.mxu0 %v1676
  %2228 = vmatprep.subr.bf16.mxu0 0
  %2229 = vmatpush1.bf16.msra.mxu0 0
  %2230 = vmatprep.subr.bf16.mxu0 0
  %2231 = vmatpush1.bf16.msra.mxu0 0
  %2232 = vmatprep.subr.bf16.mxu0 0
  %2233 = vmatpush1.bf16.msra.mxu0 0
  %2234 = vmatprep.subr.bf16.mxu0 0
  %2235 = vmatpush1.bf16.msra.mxu0 0
  %2236 = vmatprep.subr.bf16.mxu0 0
  %2237 = vmatpush1.bf16.msra.mxu0 0
  %2238 = vmatprep.subr.bf16.mxu0 0
  %2239 = vmatpush1.bf16.msra.mxu0 0
  %2240 = vmatprep.subr.bf16.mxu0 0
  %2241 = vmatpush1.bf16.msra.mxu0 0
  %2242 = vmatprep.subr.bf16.mxu0 0
  %2243 = vmatpush1.bf16.msra.mxu0 0
  %2244 = vmatprep.subr.bf16.mxu0 0
  %2245 = vmatpush1.bf16.msra.mxu0 0
  %2246 = vmatprep.subr.bf16.mxu0 0
  %2247 = vmatpush1.bf16.msra.mxu0 0
  %2248 = vmatprep.subr.bf16.mxu0 0
  %2249 = vmatpush1.bf16.msra.mxu0 0
  %2250 = vmatprep.subr.bf16.mxu0 0
  %2251 = vmatpush1.bf16.msra.mxu0 0
  %2252 = vmatprep.subr.bf16.mxu0 0
  %2253 = vmatpush1.bf16.msra.mxu0 0
  %2254 = vmatprep.subr.bf16.mxu0 0
  %2255 = vmatpush1.bf16.msra.mxu0 0
  %2256 = vmatprep.subr.bf16.mxu0 0
  %2257 = vmatpush1.bf16.msra.mxu0 0
  %2258 = vmatprep.mubr.bf16.mxu0 0
  %2259 = vmatmul.mubr.bf16.gmra.mrb[0].mxu0 %v2224
  %v2260 = vpop.f32.mrb[0].mxu0
  %v2261 = vadd.f32 0.0, %v2260
  %v2262 = vpop.f32.mrb[0].mxu0
  %v2263 = vpop.f32.mrb[0].mxu0
  %v2264 = vpop.f32.mrb[0].mxu0
  %2265 = vdwg.mxu0
  %v2266 = vadd.f32 %v2218, %v2261
  %v2267 = vxor.u32 %v2266, 2147483648
  %v2268 = vmul.f32 %v2267, 1.442695
  %v2269 = vpow.pop %v2268
  %v2270 = vadd.f32 %v2269, 1.0
  %v2271 = vrcp.pop %v2270
  %v2272 = vmul.f32 1.0, %v2271
  %v2273 = vtanh.pop %v2266
  %v2274 = vmul.f32 %v2272, %v2206
  %2276 = vrot.lane.b32.xlu0 %v2273, 96
  %v2277 = vpop.permute.xlu0 %2276
  %v2279 = vmul.f32 %v2272, %v2277
  %2281 = vrot.lane.b32.xlu0 %v2279, 16
  %v2282 = vpop.permute.xlu0 %2281
  %v2284 = vadd.f32 %v2274, %v2282
  %v2285 = vtanh.pop %v2284
  %2287 = vrot.lane.b32.xlu0 %v2285, 32
  %v2288 = vpop.permute.xlu0 %2287
  %v2290 = vmul.f32 %v2272, %v2288
  %2292 = vrot.lane.b32.xlu0 %v2290, 80
  %v2293 = vpop.permute.xlu0 %2292
  %2295 = vst.msk [vmem:[#allocation4 + $0x38] sm:$0xff] %vm76, %v2293
  %v2296 = vld [vmem:[%s10] sm:$0xf]
  %v2297 = vld [vmem:[%s10 + $0x4] sm:$0xf]
  %v2298 = vld [vmem:[%s11] sm:$0xf]
  %v2299 = vld [vmem:[%s11 + $0x4] sm:$0xf]
  %v2300 = vld [vmem:[%s12] sm:$0x1]
  %v2301 = vld [vmem:[#allocation4] sm:$0xff]
  %v2302 = vld [vmem:[#allocation4 + $0x8] sm:$0xff]
  %v2303 = vld [vmem:[#allocation4 + $0x10] sm:$0xff]
  %v2304 = vld [vmem:[#allocation4 + $0x18] sm:$0xff]
  %v2305 = vld [vmem:[#allocation4 + $0x20] sm:$0xff]
  %v2306 = vld [vmem:[#allocation4 + $0x28] sm:$0xff]
  %v2307 = vld [vmem:[#allocation4 + $0x30] sm:$0xff]
  %v2308 = vld [vmem:[#allocation4 + $0x38] sm:$0xff]
  %v2309 = vpack.c.bf16 %v2302, %v2301
  %v2310 = vpack.c.bf16 %v2304, %v2303
  %v2311 = vpack.c.bf16 %v2306, %v2305
  %v2312 = vpack.c.bf16 %v2308, %v2307
  %v2314 = vlaneseq
  %v2315 = vshrl.u32 %v2314, 7
  %v2316 = vsub.s32 0, %v2315
  %v2317 = vrot.slane %v2300, %v2316
  %v2321 = vunpack.c.l.b16 %v2296
  %v2322 = vunpack.c.l.b16 %v2297
  %v2323 = vpack.c.b16 %v2322, %v2321
  %v2326 = vsel %vm76, %v2309, 0
  %v2329 = vsel %vm76, %v2310, 0
  %v2332 = vsel %vm76, %v2311, 0
  %v2335 = vsel %vm76, %v2312, 0
  %2337 = vmatprep.subr.bf16.mxu0 0
  %2338 = vmatpush1.bf16.msra.mxu0 %v2323
  %2339 = vmatprep.subr.bf16.mxu0 0
  %2340 = vmatpush1.bf16.msra.mxu0 0
  %2341 = vmatprep.subr.bf16.mxu0 0
  %2342 = vmatpush1.bf16.msra.mxu0 0
  %2343 = vmatprep.subr.bf16.mxu0 0
  %2344 = vmatpush1.bf16.msra.mxu0 0
  %2345 = vmatprep.subr.bf16.mxu0 0
  %2346 = vmatpush1.bf16.msra.mxu0 0
  %2347 = vmatprep.subr.bf16.mxu0 0
  %2348 = vmatpush1.bf16.msra.mxu0 0
  %2349 = vmatprep.subr.bf16.mxu0 0
  %2350 = vmatpush1.bf16.msra.mxu0 0
  %2351 = vmatprep.subr.bf16.mxu0 0
  %2352 = vmatpush1.bf16.msra.mxu0 0
  %2353 = vmatprep.subr.bf16.mxu0 0
  %2354 = vmatpush1.bf16.msra.mxu0 0
  %2355 = vmatprep.subr.bf16.mxu0 0
  %2356 = vmatpush1.bf16.msra.mxu0 0
  %2357 = vmatprep.subr.bf16.mxu0 0
  %2358 = vmatpush1.bf16.msra.mxu0 0
  %2359 = vmatprep.subr.bf16.mxu0 0
  %2360 = vmatpush1.bf16.msra.mxu0 0
  %2361 = vmatprep.subr.bf16.mxu0 0
  %2362 = vmatpush1.bf16.msra.mxu0 0
  %2363 = vmatprep.subr.bf16.mxu0 0
  %2364 = vmatpush1.bf16.msra.mxu0 0
  %2365 = vmatprep.subr.bf16.mxu0 0
  %2366 = vmatpush1.bf16.msra.mxu0 0
  %2367 = vmatprep.subr.bf16.mxu0 0
  %2368 = vmatpush1.bf16.msra.mxu0 0
  %2369 = vmatprep.mubr.bf16.mxu0 0
  %2370 = vmatmul.mubr.bf16.gmra.mrb[0].mxu0 %v2326
  %v2371 = vpop.f32.mrb[0].mxu0
  %v2372 = vadd.f32 %v2317, %v2371
  %v2373 = vpop.f32.mrb[0].mxu0
  %v2374 = vpop.f32.mrb[0].mxu0
  %v2375 = vadd.f32 %v2317, %v2374
  %v2376 = vpop.f32.mrb[0].mxu0
  %2377 = vmatprep.mubr.bf16.mxu0 0
  %2378 = vmatmul.mubr.bf16.gmra.mrb[0].mxu0 %v2329
  %v2379 = vpop.f32.mrb[0].mxu0
  %v2380 = vadd.f32 %v2317, %v2379
  %v2381 = vpop.f32.mrb[0].mxu0
  %v2382 = vpop.f32.mrb[0].mxu0
  %v2383 = vadd.f32 %v2317, %v2382
  %v2384 = vpop.f32.mrb[0].mxu0
  %2385 = vmatprep.mubr.bf16.mxu0 0
  %2386 = vmatmul.mubr.bf16.gmra.mrb[0].mxu0 %v2332
  %v2387 = vpop.f32.mrb[0].mxu0
  %v2388 = vadd.f32 %v2317, %v2387
  %v2389 = vpop.f32.mrb[0].mxu0
  %v2390 = vpop.f32.mrb[0].mxu0
  %v2391 = vadd.f32 %v2317, %v2390
  %v2392 = vpop.f32.mrb[0].mxu0
  %2393 = vmatprep.mubr.bf16.mxu0 0
  %2394 = vmatmul.mubr.bf16.gmra.mrb[0].mxu0 %v2335
  %v2395 = vpop.f32.mrb[0].mxu0
  %v2396 = vadd.f32 %v2317, %v2395
  %v2397 = vpop.f32.mrb[0].mxu0
  %v2398 = vpop.f32.mrb[0].mxu0
  %v2399 = vadd.f32 %v2317, %v2398
  %v2400 = vpop.f32.mrb[0].mxu0
  %2401 = vdwg.mxu0
  %2402 = vst.msk [vmem:[#allocation8] sm:$0xff] %vm1662, %v2372
  %2403 = vst.msk [vmem:[#allocation8 + $0x8] sm:$0xff] %vm1662, %v2375
  %2404 = vst.msk [vmem:[#allocation8 + $0x10] sm:$0xff] %vm1662, %v2380
  %2405 = vst.msk [vmem:[#allocation8 + $0x18] sm:$0xff] %vm1662, %v2383
  %2406 = vst.msk [vmem:[#allocation8 + $0x20] sm:$0xff] %vm1662, %v2388
  %2407 = vst.msk [vmem:[#allocation8 + $0x28] sm:$0xff] %vm1662, %v2391
  %2408 = vst.msk [vmem:[#allocation8 + $0x30] sm:$0xff] %vm1662, %v2396
  %2409 = vst.msk [vmem:[#allocation8 + $0x38] sm:$0xff] %vm1662, %v2399
  %v2410 = vld [vmem:[#allocation8] sm:$0xff]
  %v2413 = vunpack.c.l.b16 %v2298
  %v2414 = vunpack.c.l.b16 %v2299
  %v2415 = vpack.c.b16 %v2414, %v2413
  %2417 = vmatprep.subr.bf16.mxu0 0
  %2418 = vmatpush1.bf16.msra.mxu0 %v2415
  %2419 = vmatprep.subr.bf16.mxu0 0
  %2420 = vmatpush1.bf16.msra.mxu0 0
  %2421 = vmatprep.subr.bf16.mxu0 0
  %2422 = vmatpush1.bf16.msra.mxu0 0
  %2423 = vmatprep.subr.bf16.mxu0 0
  %2424 = vmatpush1.bf16.msra.mxu0 0
  %2425 = vmatprep.subr.bf16.mxu0 0
  %2426 = vmatpush1.bf16.msra.mxu0 0
  %2427 = vmatprep.subr.bf16.mxu0 0
  %2428 = vmatpush1.bf16.msra.mxu0 0
  %2429 = vmatprep.subr.bf16.mxu0 0
  %2430 = vmatpush1.bf16.msra.mxu0 0
  %2431 = vmatprep.subr.bf16.mxu0 0
  %2432 = vmatpush1.bf16.msra.mxu0 0
  %2433 = vmatprep.subr.bf16.mxu0 0
  %2434 = vmatpush1.bf16.msra.mxu0 0
  %2435 = vmatprep.subr.bf16.mxu0 0
  %2436 = vmatpush1.bf16.msra.mxu0 0
  %2437 = vmatprep.subr.bf16.mxu0 0
  %2438 = vmatpush1.bf16.msra.mxu0 0
  %2439 = vmatprep.subr.bf16.mxu0 0
  %2440 = vmatpush1.bf16.msra.mxu0 0
  %2441 = vmatprep.subr.bf16.mxu0 0
  %2442 = vmatpush1.bf16.msra.mxu0 0
  %2443 = vmatprep.subr.bf16.mxu0 0
  %2444 = vmatpush1.bf16.msra.mxu0 0
  %2445 = vmatprep.subr.bf16.mxu0 0
  %2446 = vmatpush1.bf16.msra.mxu0 0
  %2447 = vmatprep.subr.bf16.mxu0 0
  %2448 = vmatpush1.bf16.msra.mxu0 0
  %2449 = vmatprep.mubr.bf16.mxu0 0
  %2450 = vmatmul.mubr.bf16.gmra.mrb[0].mxu0 %v1678
  %v2451 = vpop.f32.mrb[0].mxu0
  %v2452 = vadd.f32 0.0, %v2451
  %v2453 = vpop.f32.mrb[0].mxu0
  %v2454 = vpop.f32.mrb[0].mxu0
  %v2455 = vpop.f32.mrb[0].mxu0
  %2456 = vdwg.mxu0
  %v2457 = vadd.f32 %v2410, %v2452
  %v2458 = vxor.u32 %v2457, 2147483648
  %v2459 = vmul.f32 %v2458, 1.442695
  %v2460 = vpow.pop %v2459
  %v2461 = vadd.f32 %v2460, 1.0
  %v2462 = vrcp.pop %v2461
  %v2463 = vmul.f32 1.0, %v2462
  %v2464 = vtanh.pop %v2457
  %v2465 = vmul.f32 %v2463, 0.0
  %2467 = vrot.lane.b32.xlu0 %v2464, 96
  %v2468 = vpop.permute.xlu0 %2467
  %v2470 = vmul.f32 %v2463, %v2468
  %2472 = vrot.lane.b32.xlu0 %v2470, 16
  %v2473 = vpop.permute.xlu0 %2472
  %v2475 = vadd.f32 %v2465, %v2473
  %v2476 = vtanh.pop %v2475
  %2478 = vrot.lane.b32.xlu0 %v2476, 32
  %v2479 = vpop.permute.xlu0 %2478
  %v2481 = vmul.f32 %v2463, %v2479
  %2483 = vrot.lane.b32.xlu0 %v2481, 80
  %v2484 = vpop.permute.xlu0 %2483
  %2486 = vst.msk [vmem:[%s13] sm:$0xff] %vm76, %v2484
  %v2487 = vld [vmem:[#allocation8 + $0x8] sm:$0xff]
  %v2488 = vpack.c.bf16 %v2481, %v2481
  %2490 = vrot.lane.b32.xlu0 %v2488, 80
  %v2491 = vpop.permute.xlu0 %2490
  %v2493 = vsel %vm76, %v2491, 0
  %2495 = vmatprep.subr.bf16.mxu0 0
  %2496 = vmatpush1.bf16.msra.mxu0 %v2415
  %2497 = vmatprep.subr.bf16.mxu0 0
  %2498 = vmatpush1.bf16.msra.mxu0 0
  %2499 = vmatprep.subr.bf16.mxu0 0
  %2500 = vmatpush1.bf16.msra.mxu0 0
  %2501 = vmatprep.subr.bf16.mxu0 0
  %2502 = vmatpush1.bf16.msra.mxu0 0
  %2503 = vmatprep.subr.bf16.mxu0 0
  %2504 = vmatpush1.bf16.msra.mxu0 0
  %2505 = vmatprep.subr.bf16.mxu0 0
  %2506 = vmatpush1.bf16.msra.mxu0 0
  %2507 = vmatprep.subr.bf16.mxu0 0
  %2508 = vmatpush1.bf16.msra.mxu0 0
  %2509 = vmatprep.subr.bf16.mxu0 0
  %2510 = vmatpush1.bf16.msra.mxu0 0
  %2511 = vmatprep.subr.bf16.mxu0 0
  %2512 = vmatpush1.bf16.msra.mxu0 0
  %2513 = vmatprep.subr.bf16.mxu0 0
  %2514 = vmatpush1.bf16.msra.mxu0 0
  %2515 = vmatprep.subr.bf16.mxu0 0
  %2516 = vmatpush1.bf16.msra.mxu0 0
  %2517 = vmatprep.subr.bf16.mxu0 0
  %2518 = vmatpush1.bf16.msra.mxu0 0
  %2519 = vmatprep.subr.bf16.mxu0 0
  %2520 = vmatpush1.bf16.msra.mxu0 0
  %2521 = vmatprep.subr.bf16.mxu0 0
  %2522 = vmatpush1.bf16.msra.mxu0 0
  %2523 = vmatprep.subr.bf16.mxu0 0
  %2524 = vmatpush1.bf16.msra.mxu0 0
  %2525 = vmatprep.subr.bf16.mxu0 0
  %2526 = vmatpush1.bf16.msra.mxu0 0
  %2527 = vmatprep.mubr.bf16.mxu0 0
  %2528 = vmatmul.mubr.bf16.gmra.mrb[0].mxu0 %v2493
  %v2529 = vpop.f32.mrb[0].mxu0
  %v2530 = vadd.f32 0.0, %v2529
  %v2531 = vpop.f32.mrb[0].mxu0
  %v2532 = vpop.f32.mrb[0].mxu0
  %v2533 = vpop.f32.mrb[0].mxu0
  %2534 = vdwg.mxu0
  %v2535 = vadd.f32 %v2487, %v2530
  %v2536 = vxor.u32 %v2535, 2147483648
  %v2537 = vmul.f32 %v2536, 1.442695
  %v2538 = vpow.pop %v2537
  %v2539 = vadd.f32 %v2538, 1.0
  %v2540 = vrcp.pop %v2539
  %v2541 = vmul.f32 1.0, %v2540
  %v2542 = vtanh.pop %v2535
  %v2543 = vmul.f32 %v2541, %v2475
  %2545 = vrot.lane.b32.xlu0 %v2542, 96
  %v2546 = vpop.permute.xlu0 %2545
  %v2548 = vmul.f32 %v2541, %v2546
  %2550 = vrot.lane.b32.xlu0 %v2548, 16
  %v2551 = vpop.permute.xlu0 %2550
  %v2553 = vadd.f32 %v2543, %v2551
  %v2554 = vtanh.pop %v2553
  %2556 = vrot.lane.b32.xlu0 %v2554, 32
  %v2557 = vpop.permute.xlu0 %2556
  %v2559 = vmul.f32 %v2541, %v2557
  %2561 = vrot.lane.b32.xlu0 %v2559, 96
  %v2562 = vpop.permute.xlu0 %2561
  %vm2564 = vcmask 261248
  %2565 = vst.msk [vmem:[%s13] sm:$0xff] %vm2564, %v2562
  %v2566 = vld [vmem:[#allocation8 + $0x10] sm:$0xff]
  %v2567 = vpack.c.bf16 %v2559, %v2559
  %2569 = vrot.lane.b32.xlu0 %v2567, 80
  %v2570 = vpop.permute.xlu0 %2569
  %v2572 = vsel %vm76, %v2570, 0
  %2574 = vmatprep.subr.bf16.mxu0 0
  %2575 = vmatpush1.bf16.msra.mxu0 %v2415
  %2576 = vmatprep.subr.bf16.mxu0 0
  %2577 = vmatpush1.bf16.msra.mxu0 0
  %2578 = vmatprep.subr.bf16.mxu0 0
  %2579 = vmatpush1.bf16.msra.mxu0 0
  %2580 = vmatprep.subr.bf16.mxu0 0
  %2581 = vmatpush1.bf16.msra.mxu0 0
  %2582 = vmatprep.subr.bf16.mxu0 0
  %2583 = vmatpush1.bf16.msra.mxu0 0
  %2584 = vmatprep.subr.bf16.mxu0 0
  %2585 = vmatpush1.bf16.msra.mxu0 0
  %2586 = vmatprep.subr.bf16.mxu0 0
  %2587 = vmatpush1.bf16.msra.mxu0 0
  %2588 = vmatprep.subr.bf16.mxu0 0
  %2589 = vmatpush1.bf16.msra.mxu0 0
  %2590 = vmatprep.subr.bf16.mxu0 0
  %2591 = vmatpush1.bf16.msra.mxu0 0
  %2592 = vmatprep.subr.bf16.mxu0 0
  %2593 = vmatpush1.bf16.msra.mxu0 0
  %2594 = vmatprep.subr.bf16.mxu0 0
  %2595 = vmatpush1.bf16.msra.mxu0 0
  %2596 = vmatprep.subr.bf16.mxu0 0
  %2597 = vmatpush1.bf16.msra.mxu0 0
  %2598 = vmatprep.subr.bf16.mxu0 0
  %2599 = vmatpush1.bf16.msra.mxu0 0
  %2600 = vmatprep.subr.bf16.mxu0 0
  %2601 = vmatpush1.bf16.msra.mxu0 0
  %2602 = vmatprep.subr.bf16.mxu0 0
  %2603 = vmatpush1.bf16.msra.mxu0 0
  %2604 = vmatprep.subr.bf16.mxu0 0
  %2605 = vmatpush1.bf16.msra.mxu0 0
  %2606 = vmatprep.mubr.bf16.mxu0 0
  %2607 = vmatmul.mubr.bf16.gmra.mrb[0].mxu0 %v2572
  %v2608 = vpop.f32.mrb[0].mxu0
  %v2609 = vadd.f32 0.0, %v2608
  %v2610 = vpop.f32.mrb[0].mxu0
  %v2611 = vpop.f32.mrb[0].mxu0
  %v2612 = vpop.f32.mrb[0].mxu0
  %2613 = vdwg.mxu0
  %v2614 = vadd.f32 %v2566, %v2609
  %v2615 = vxor.u32 %v2614, 2147483648
  %v2616 = vmul.f32 %v2615, 1.442695
  %v2617 = vpow.pop %v2616
  %v2618 = vadd.f32 %v2617, 1.0
  %v2619 = vrcp.pop %v2618
  %v2620 = vmul.f32 1.0, %v2619
  %v2621 = vtanh.pop %v2614
  %v2622 = vmul.f32 %v2620, %v2553
  %2624 = vrot.lane.b32.xlu0 %v2621, 96
  %v2625 = vpop.permute.xlu0 %2624
  %v2627 = vmul.f32 %v2620, %v2625
  %2629 = vrot.lane.b32.xlu0 %v2627, 16
  %v2630 = vpop.permute.xlu0 %2629
  %v2632 = vadd.f32 %v2622, %v2630
  %v2633 = vtanh.pop %v2632
  %2635 = vrot.lane.b32.xlu0 %v2633, 32
  %v2636 = vpop.permute.xlu0 %2635
  %v2638 = vmul.f32 %v2620, %v2636
  %2640 = vrot.lane.b32.xlu0 %v2638, 112
  %v2641 = vpop.permute.xlu0 %2640
  %vm2643 = vcmask 392448
  %2644 = vst.msk [vmem:[%s13] sm:$0xff] %vm2643, %v2641
  %v2645 = vld [vmem:[#allocation8 + $0x18] sm:$0xff]
  %v2646 = vpack.c.bf16 %v2638, %v2638
  %2648 = vrot.lane.b32.xlu0 %v2646, 80
  %v2649 = vpop.permute.xlu0 %2648
  %v2651 = vsel %vm76, %v2649, 0
  %2653 = vmatprep.subr.bf16.mxu0 0
  %2654 = vmatpush1.bf16.msra.mxu0 %v2415
  %2655 = vmatprep.subr.bf16.mxu0 0
  %2656 = vmatpush1.bf16.msra.mxu0 0
  %2657 = vmatprep.subr.bf16.mxu0 0
  %2658 = vmatpush1.bf16.msra.mxu0 0
  %2659 = vmatprep.subr.bf16.mxu0 0
  %2660 = vmatpush1.bf16.msra.mxu0 0
  %2661 = vmatprep.subr.bf16.mxu0 0
  %2662 = vmatpush1.bf16.msra.mxu0 0
  %2663 = vmatprep.subr.bf16.mxu0 0
  %2664 = vmatpush1.bf16.msra.mxu0 0
  %2665 = vmatprep.subr.bf16.mxu0 0
  %2666 = vmatpush1.bf16.msra.mxu0 0
  %2667 = vmatprep.subr.bf16.mxu0 0
  %2668 = vmatpush1.bf16.msra.mxu0 0
  %2669 = vmatprep.subr.bf16.mxu0 0
  %2670 = vmatpush1.bf16.msra.mxu0 0
  %2671 = vmatprep.subr.bf16.mxu0 0
  %2672 = vmatpush1.bf16.msra.mxu0 0
  %2673 = vmatprep.subr.bf16.mxu0 0
  %2674 = vmatpush1.bf16.msra.mxu0 0
  %2675 = vmatprep.subr.bf16.mxu0 0
  %2676 = vmatpush1.bf16.msra.mxu0 0
  %2677 = vmatprep.subr.bf16.mxu0 0
  %2678 = vmatpush1.bf16.msra.mxu0 0
  %2679 = vmatprep.subr.bf16.mxu0 0
  %2680 = vmatpush1.bf16.msra.mxu0 0
  %2681 = vmatprep.subr.bf16.mxu0 0
  %2682 = vmatpush1.bf16.msra.mxu0 0
  %2683 = vmatprep.subr.bf16.mxu0 0
  %2684 = vmatpush1.bf16.msra.mxu0 0
  %2685 = vmatprep.mubr.bf16.mxu0 0
  %2686 = vmatmul.mubr.bf16.gmra.mrb[0].mxu0 %v2651
  %v2687 = vpop.f32.mrb[0].mxu0
  %v2688 = vadd.f32 0.0, %v2687
  %v2689 = vpop.f32.mrb[0].mxu0
  %v2690 = vpop.f32.mrb[0].mxu0
  %v2691 = vpop.f32.mrb[0].mxu0
  %2692 = vdwg.mxu0
  %v2693 = vadd.f32 %v2645, %v2688
  %v2694 = vxor.u32 %v2693, 2147483648
  %v2695 = vmul.f32 %v2694, 1.442695
  %v2696 = vpow.pop %v2695
  %v2697 = vadd.f32 %v2696, 1.0
  %v2698 = vrcp.pop %v2697
  %v2699 = vmul.f32 1.0, %v2698
  %v2700 = vtanh.pop %v2693
  %v2701 = vmul.f32 %v2699, %v2632
  %2703 = vrot.lane.b32.xlu0 %v2700, 96
  %v2704 = vpop.permute.xlu0 %2703
  %v2706 = vmul.f32 %v2699, %v2704
  %2708 = vrot.lane.b32.xlu0 %v2706, 16
  %v2709 = vpop.permute.xlu0 %2708
  %v2711 = vadd.f32 %v2701, %v2709
  %v2712 = vtanh.pop %v2711
  %2714 = vrot.lane.b32.xlu0 %v2712, 32
  %v2715 = vpop.permute.xlu0 %2714
  %v2717 = vmul.f32 %v2699, %v2715
  %vm2718 = vcmask 523648
  %2719 = vst.msk [vmem:[%s13] sm:$0xff] %vm2718, %v2717
  %v2720 = vld [vmem:[#allocation8 + $0x20] sm:$0xff]
  %v2721 = vpack.c.bf16 %v2717, %v2717
  %2723 = vrot.lane.b32.xlu0 %v2721, 80
  %v2724 = vpop.permute.xlu0 %2723
  %v2726 = vsel %vm76, %v2724, 0
  %2728 = vmatprep.subr.bf16.mxu0 0
  %2729 = vmatpush1.bf16.msra.mxu0 %v2415
  %2730 = vmatprep.subr.bf16.mxu0 0
  %2731 = vmatpush1.bf16.msra.mxu0 0
  %2732 = vmatprep.subr.bf16.mxu0 0
  %2733 = vmatpush1.bf16.msra.mxu0 0
  %2734 = vmatprep.subr.bf16.mxu0 0
  %2735 = vmatpush1.bf16.msra.mxu0 0
  %2736 = vmatprep.subr.bf16.mxu0 0
  %2737 = vmatpush1.bf16.msra.mxu0 0
  %2738 = vmatprep.subr.bf16.mxu0 0
  %2739 = vmatpush1.bf16.msra.mxu0 0
  %2740 = vmatprep.subr.bf16.mxu0 0
  %2741 = vmatpush1.bf16.msra.mxu0 0
  %2742 = vmatprep.subr.bf16.mxu0 0
  %2743 = vmatpush1.bf16.msra.mxu0 0
  %2744 = vmatprep.subr.bf16.mxu0 0
  %2745 = vmatpush1.bf16.msra.mxu0 0
  %2746 = vmatprep.subr.bf16.mxu0 0
  %2747 = vmatpush1.bf16.msra.mxu0 0
  %2748 = vmatprep.subr.bf16.mxu0 0
  %2749 = vmatpush1.bf16.msra.mxu0 0
  %2750 = vmatprep.subr.bf16.mxu0 0
  %2751 = vmatpush1.bf16.msra.mxu0 0
  %2752 = vmatprep.subr.bf16.mxu0 0
  %2753 = vmatpush1.bf16.msra.mxu0 0
  %2754 = vmatprep.subr.bf16.mxu0 0
  %2755 = vmatpush1.bf16.msra.mxu0 0
  %2756 = vmatprep.subr.bf16.mxu0 0
  %2757 = vmatpush1.bf16.msra.mxu0 0
  %2758 = vmatprep.subr.bf16.mxu0 0
  %2759 = vmatpush1.bf16.msra.mxu0 0
  %2760 = vmatprep.mubr.bf16.mxu0 0
  %2761 = vmatmul.mubr.bf16.gmra.mrb[0].mxu0 %v2726
  %v2762 = vpop.f32.mrb[0].mxu0
  %v2763 = vadd.f32 0.0, %v2762
  %v2764 = vpop.f32.mrb[0].mxu0
  %v2765 = vpop.f32.mrb[0].mxu0
  %v2766 = vpop.f32.mrb[0].mxu0
  %2767 = vdwg.mxu0
  %v2768 = vadd.f32 %v2720, %v2763
  %v2769 = vxor.u32 %v2768, 2147483648
  %v2770 = vmul.f32 %v2769, 1.442695
  %v2771 = vpow.pop %v2770
  %v2772 = vadd.f32 %v2771, 1.0
  %v2773 = vrcp.pop %v2772
  %v2774 = vmul.f32 1.0, %v2773
  %v2775 = vtanh.pop %v2768
  %v2776 = vmul.f32 %v2774, %v2711
  %2778 = vrot.lane.b32.xlu0 %v2775, 96
  %v2779 = vpop.permute.xlu0 %2778
  %v2781 = vmul.f32 %v2774, %v2779
  %2783 = vrot.lane.b32.xlu0 %v2781, 16
  %v2784 = vpop.permute.xlu0 %2783
  %v2786 = vadd.f32 %v2776, %v2784
  %v2787 = vtanh.pop %v2786
  %2789 = vrot.lane.b32.xlu0 %v2787, 32
  %v2790 = vpop.permute.xlu0 %2789
  %v2792 = vmul.f32 %v2774, %v2790
  %2794 = vrot.lane.b32.xlu0 %v2792, 16
  %v2795 = vpop.permute.xlu0 %2794
  %vm2797 = vcmask 654848
  %2798 = vst.msk [vmem:[%s13] sm:$0xff] %vm2797, %v2795
  %v2799 = vld [vmem:[#allocation8 + $0x28] sm:$0xff]
  %v2800 = vpack.c.bf16 %v2792, %v2792
  %2802 = vrot.lane.b32.xlu0 %v2800, 80
  %v2803 = vpop.permute.xlu0 %2802
  %v2805 = vsel %vm76, %v2803, 0
  %2807 = vmatprep.subr.bf16.mxu0 0
  %2808 = vmatpush1.bf16.msra.mxu0 %v2415
  %2809 = vmatprep.subr.bf16.mxu0 0
  %2810 = vmatpush1.bf16.msra.mxu0 0
  %2811 = vmatprep.subr.bf16.mxu0 0
  %2812 = vmatpush1.bf16.msra.mxu0 0
  %2813 = vmatprep.subr.bf16.mxu0 0
  %2814 = vmatpush1.bf16.msra.mxu0 0
  %2815 = vmatprep.subr.bf16.mxu0 0
  %2816 = vmatpush1.bf16.msra.mxu0 0
  %2817 = vmatprep.subr.bf16.mxu0 0
  %2818 = vmatpush1.bf16.msra.mxu0 0
  %2819 = vmatprep.subr.bf16.mxu0 0
  %2820 = vmatpush1.bf16.msra.mxu0 0
  %2821 = vmatprep.subr.bf16.mxu0 0
  %2822 = vmatpush1.bf16.msra.mxu0 0
  %2823 = vmatprep.subr.bf16.mxu0 0
  %2824 = vmatpush1.bf16.msra.mxu0 0
  %2825 = vmatprep.subr.bf16.mxu0 0
  %2826 = vmatpush1.bf16.msra.mxu0 0
  %2827 = vmatprep.subr.bf16.mxu0 0
  %2828 = vmatpush1.bf16.msra.mxu0 0
  %2829 = vmatprep.subr.bf16.mxu0 0
  %2830 = vmatpush1.bf16.msra.mxu0 0
  %2831 = vmatprep.subr.bf16.mxu0 0
  %2832 = vmatpush1.bf16.msra.mxu0 0
  %2833 = vmatprep.subr.bf16.mxu0 0
  %2834 = vmatpush1.bf16.msra.mxu0 0
  %2835 = vmatprep.subr.bf16.mxu0 0
  %2836 = vmatpush1.bf16.msra.mxu0 0
  %2837 = vmatprep.subr.bf16.mxu0 0
  %2838 = vmatpush1.bf16.msra.mxu0 0
  %2839 = vmatprep.mubr.bf16.mxu0 0
  %2840 = vmatmul.mubr.bf16.gmra.mrb[0].mxu0 %v2805
  %v2841 = vpop.f32.mrb[0].mxu0
  %v2842 = vadd.f32 0.0, %v2841
  %v2843 = vpop.f32.mrb[0].mxu0
  %v2844 = vpop.f32.mrb[0].mxu0
  %v2845 = vpop.f32.mrb[0].mxu0
  %2846 = vdwg.mxu0
  %v2847 = vadd.f32 %v2799, %v2842
  %v2848 = vxor.u32 %v2847, 2147483648
  %v2849 = vmul.f32 %v2848, 1.442695
  %v2850 = vpow.pop %v2849
  %v2851 = vadd.f32 %v2850, 1.0
  %v2852 = vrcp.pop %v2851
  %v2853 = vmul.f32 1.0, %v2852
  %v2854 = vtanh.pop %v2847
  %v2855 = vmul.f32 %v2853, %v2786
  %2857 = vrot.lane.b32.xlu0 %v2854, 96
  %v2858 = vpop.permute.xlu0 %2857
  %v2860 = vmul.f32 %v2853, %v2858
  %2862 = vrot.lane.b32.xlu0 %v2860, 16
  %v2863 = vpop.permute.xlu0 %2862
  %v2865 = vadd.f32 %v2855, %v2863
  %v2866 = vtanh.pop %v2865
  %2868 = vrot.lane.b32.xlu0 %v2866, 32
  %v2869 = vpop.permute.xlu0 %2868
  %v2871 = vmul.f32 %v2853, %v2869
  %2873 = vrot.lane.b32.xlu0 %v2871, 32
  %v2874 = vpop.permute.xlu0 %2873
  %vm2876 = vcmask 786048
  %2877 = vst.msk [vmem:[%s13] sm:$0xff] %vm2876, %v2874
  %v2878 = vld [vmem:[#allocation8 + $0x30] sm:$0xff]
  %v2879 = vpack.c.bf16 %v2871, %v2871
  %2881 = vrot.lane.b32.xlu0 %v2879, 80
  %v2882 = vpop.permute.xlu0 %2881
  %v2884 = vsel %vm76, %v2882, 0
  %2886 = vmatprep.subr.bf16.mxu0 0
  %2887 = vmatpush1.bf16.msra.mxu0 %v2415
  %2888 = vmatprep.subr.bf16.mxu0 0
  %2889 = vmatpush1.bf16.msra.mxu0 0
  %2890 = vmatprep.subr.bf16.mxu0 0
  %2891 = vmatpush1.bf16.msra.mxu0 0
  %2892 = vmatprep.subr.bf16.mxu0 0
  %2893 = vmatpush1.bf16.msra.mxu0 0
  %2894 = vmatprep.subr.bf16.mxu0 0
  %2895 = vmatpush1.bf16.msra.mxu0 0
  %2896 = vmatprep.subr.bf16.mxu0 0
  %2897 = vmatpush1.bf16.msra.mxu0 0
  %2898 = vmatprep.subr.bf16.mxu0 0
  %2899 = vmatpush1.bf16.msra.mxu0 0
  %2900 = vmatprep.subr.bf16.mxu0 0
  %2901 = vmatpush1.bf16.msra.mxu0 0
  %2902 = vmatprep.subr.bf16.mxu0 0
  %2903 = vmatpush1.bf16.msra.mxu0 0
  %2904 = vmatprep.subr.bf16.mxu0 0
  %2905 = vmatpush1.bf16.msra.mxu0 0
  %2906 = vmatprep.subr.bf16.mxu0 0
  %2907 = vmatpush1.bf16.msra.mxu0 0
  %2908 = vmatprep.subr.bf16.mxu0 0
  %2909 = vmatpush1.bf16.msra.mxu0 0
  %2910 = vmatprep.subr.bf16.mxu0 0
  %2911 = vmatpush1.bf16.msra.mxu0 0
  %2912 = vmatprep.subr.bf16.mxu0 0
  %2913 = vmatpush1.bf16.msra.mxu0 0
  %2914 = vmatprep.subr.bf16.mxu0 0
  %2915 = vmatpush1.bf16.msra.mxu0 0
  %2916 = vmatprep.subr.bf16.mxu0 0
  %2917 = vmatpush1.bf16.msra.mxu0 0
  %2918 = vmatprep.mubr.bf16.mxu0 0
  %2919 = vmatmul.mubr.bf16.gmra.mrb[0].mxu0 %v2884
  %v2920 = vpop.f32.mrb[0].mxu0
  %v2921 = vadd.f32 0.0, %v2920
  %v2922 = vpop.f32.mrb[0].mxu0
  %v2923 = vpop.f32.mrb[0].mxu0
  %v2924 = vpop.f32.mrb[0].mxu0
  %2925 = vdwg.mxu0
  %v2926 = vadd.f32 %v2878, %v2921
  %v2927 = vxor.u32 %v2926, 2147483648
  %v2928 = vmul.f32 %v2927, 1.442695
  %v2929 = vpow.pop %v2928
  %v2930 = vadd.f32 %v2929, 1.0
  %v2931 = vrcp.pop %v2930
  %v2932 = vmul.f32 1.0, %v2931
  %v2933 = vtanh.pop %v2926
  %v2934 = vmul.f32 %v2932, %v2865
  %2936 = vrot.lane.b32.xlu0 %v2933, 96
  %v2937 = vpop.permute.xlu0 %2936
  %v2939 = vmul.f32 %v2932, %v2937
  %2941 = vrot.lane.b32.xlu0 %v2939, 16
  %v2942 = vpop.permute.xlu0 %2941
  %v2944 = vadd.f32 %v2934, %v2942
  %v2945 = vtanh.pop %v2944
  %2947 = vrot.lane.b32.xlu0 %v2945, 32
  %v2948 = vpop.permute.xlu0 %2947
  %v2950 = vmul.f32 %v2932, %v2948
  %2952 = vrot.lane.b32.xlu0 %v2950, 48
  %v2953 = vpop.permute.xlu0 %2952
  %vm2955 = vcmask 917248
  %2956 = vst.msk [vmem:[%s13] sm:$0xff] %vm2955, %v2953
  %v2957 = vld [vmem:[#allocation8 + $0x38] sm:$0xff]
  %v2958 = vpack.c.bf16 %v2950, %v2950
  %2960 = vrot.lane.b32.xlu0 %v2958, 80
  %v2961 = vpop.permute.xlu0 %2960
  %v2963 = vsel %vm76, %v2961, 0
  %2965 = vmatprep.subr.bf16.mxu0 0
  %2966 = vmatpush1.bf16.msra.mxu0 %v2415
  %2967 = vmatprep.subr.bf16.mxu0 0
  %2968 = vmatpush1.bf16.msra.mxu0 0
  %2969 = vmatprep.subr.bf16.mxu0 0
  %2970 = vmatpush1.bf16.msra.mxu0 0
  %2971 = vmatprep.subr.bf16.mxu0 0
  %2972 = vmatpush1.bf16.msra.mxu0 0
  %2973 = vmatprep.subr.bf16.mxu0 0
  %2974 = vmatpush1.bf16.msra.mxu0 0
  %2975 = vmatprep.subr.bf16.mxu0 0
  %2976 = vmatpush1.bf16.msra.mxu0 0
  %2977 = vmatprep.subr.bf16.mxu0 0
  %2978 = vmatpush1.bf16.msra.mxu0 0
  %2979 = vmatprep.subr.bf16.mxu0 0
  %2980 = vmatpush1.bf16.msra.mxu0 0
  %2981 = vmatprep.subr.bf16.mxu0 0
  %2982 = vmatpush1.bf16.msra.mxu0 0
  %2983 = vmatprep.subr.bf16.mxu0 0
  %2984 = vmatpush1.bf16.msra.mxu0 0
  %2985 = vmatprep.subr.bf16.mxu0 0
  %2986 = vmatpush1.bf16.msra.mxu0 0
  %2987 = vmatprep.subr.bf16.mxu0 0
  %2988 = vmatpush1.bf16.msra.mxu0 0
  %2989 = vmatprep.subr.bf16.mxu0 0
  %2990 = vmatpush1.bf16.msra.mxu0 0
  %2991 = vmatprep.subr.bf16.mxu0 0
  %2992 = vmatpush1.bf16.msra.mxu0 0
  %2993 = vmatprep.subr.bf16.mxu0 0
  %2994 = vmatpush1.bf16.msra.mxu0 0
  %2995 = vmatprep.subr.bf16.mxu0 0
  %2996 = vmatpush1.bf16.msra.mxu0 0
  %2997 = vmatprep.mubr.bf16.mxu0 0
  %2998 = vmatmul.mubr.bf16.gmra.mrb[0].mxu0 %v2963
  %v2999 = vpop.f32.mrb[0].mxu0
  %v3000 = vadd.f32 0.0, %v2999
  %v3001 = vpop.f32.mrb[0].mxu0
  %v3002 = vpop.f32.mrb[0].mxu0
  %v3003 = vpop.f32.mrb[0].mxu0
  %3004 = vdwg.mxu0
  %v3005 = vadd.f32 %v2957, %v3000
  %v3006 = vxor.u32 %v3005, 2147483648
  %v3007 = vmul.f32 %v3006, 1.442695
  %v3008 = vpow.pop %v3007
  %v3009 = vadd.f32 %v3008, 1.0
  %v3010 = vrcp.pop %v3009
  %v3011 = vmul.f32 1.0, %v3010
  %v3012 = vtanh.pop %v3005
  %v3013 = vmul.f32 %v3011, %v2944
  %3015 = vrot.lane.b32.xlu0 %v3012, 96
  %v3016 = vpop.permute.xlu0 %3015
  %v3018 = vmul.f32 %v3011, %v3016
  %3020 = vrot.lane.b32.xlu0 %v3018, 16
  %v3021 = vpop.permute.xlu0 %3020
  %v3023 = vadd.f32 %v3013, %v3021
  %v3024 = vtanh.pop %v3023
  %3026 = vrot.lane.b32.xlu0 %v3024, 32
  %v3027 = vpop.permute.xlu0 %3026
  %v3029 = vmul.f32 %v3011, %v3027
  %3031 = vrot.lane.b32.xlu0 %v3029, 64
  %v3032 = vpop.permute.xlu0 %3031
  %vm3034 = vcmask 1048448
  %3035 = vst.msk [vmem:[%s13] sm:$0xff] %vm3034, %v3032
  // Predicated region
  $region54: #{lstm_autoencoder_forward.1} parent=0 // pred_check
    _
  $region55: #{lstm_autoencoder_forward.1} parent=0 // pred_check_branch
    %3037 = sbr.rel (0) target = $region57
  $region56: #{lstm_autoencoder_forward.1} parent=0 // pred_region
    _
  $region57: #{lstm_autoencoder_forward.1} parent=0 // pred_fallthru
    _
  // Predicated region
  $region58: #{lstm_autoencoder_forward.1} parent=0 // pred_check
    _
  $region59: #{lstm_autoencoder_forward.1} parent=0 // pred_check_branch
    %3039 = sbr.rel (0) target = $region61
  $region60: #{lstm_autoencoder_forward.1} parent=0 // pred_region
    _
  $region61: #{lstm_autoencoder_forward.1} parent=0 // pred_fallthru
    _

</llo_original>
